<compile_context>
chip_gen: v6e
topology: v6e:2x2x1
jax: 0.10.0
libtpu: 0.0.40
codegen_flags: <defaults>
</compile_context>

<pallas_src>
import functools

import jax
import jax.numpy as jnp
from jax.experimental import pallas as pl
from jax.experimental.pallas import tpu as pltpu

BN_EPS = 1e-3
LANE = 128
VMEM_LIMIT_BYTES = 32 * 1024 * 1024  # safe on v5e/v6e (128 MiB) and v7x (64 MiB)


def _round_up(x, m):
    return ((x + m - 1) // m) * m


# ----------------------------------------------------------------------------
# Pallas kernels
# ----------------------------------------------------------------------------
def _matmul_bn_relu_kernel(a_ref, w_ref, scale_ref, bias_ref, o_ref):
    """One (TM, TN) tile of relu((a @ w) * scale + bias); f32 accum/epilogue."""
    acc = jnp.dot(a_ref[...], w_ref[...], preferred_element_type=jnp.float32)
    o_ref[...] = jnp.maximum(acc * scale_ref[...] + bias_ref[...], 0.0)


def _conv_row_bn_relu_kernel(x_ref, w_ref, scale_ref, bias_ref, o_ref, acc_ref,
                             *, kw, wo):
    """Direct conv: one output row x one cout tile, reduced over kernel rows.

    Grid = (batch, out_row, cout_tile, kh). The kernel-row axis (last,
    "arbitrary") accumulates into a VMEM f32 scratch; the KW column taps are
    statically unrolled as sublane slices of the padded input row.
    """
    i = pl.program_id(3)  # kernel-row index (reduction axis)

    @pl.when(i == 0)
    def _init():
        acc_ref[...] = jnp.zeros_like(acc_ref)

    x_row = x_ref[0, 0, :, :]          # (Wp, Cin) bf16
    acc = acc_ref[...]
    for j in range(kw):                # static unroll over column taps
        acc = acc + jnp.dot(x_row[j:j + wo, :], w_ref[0, j, :, :],
                            preferred_element_type=jnp.float32)
    acc_ref[...] = acc

    @pl.when(i == pl.num_programs(3) - 1)
    def _finalize():
        o_ref[0, 0, :, :] = jnp.maximum(
            acc_ref[...] * scale_ref[...] + bias_ref[...], 0.0)


# ----------------------------------------------------------------------------
# Pallas wrappers
# ----------------------------------------------------------------------------
def _matmul_bn_relu(a, w, scale, bias):
    """relu((a @ w) * scale + bias) with an M/N-tiled 2-D parallel grid."""
    M, K = a.shape
    _, Nc = w.shape
    N_pad = _round_up(Nc, LANE)
    TN = 256 if N_pad % 256 == 0 else 128          # 256-wide MXU on v6e/v7x
    TM = 256 if M >= 256 else _round_up(M, 8)
    M_pad = _round_up(M, TM)

    a_p = jnp.pad(a, ((0, M_pad - M), (0, 0))).astype(jnp.bfloat16)
    w_p = jnp.pad(w, ((0, 0), (0, N_pad - Nc))).astype(jnp.bfloat16)
    s_p = jnp.pad(scale, (0, N_pad - Nc)).reshape(1, N_pad).astype(jnp.float32)
    b_p = jnp.pad(bias, (0, N_pad - Nc)).reshape(1, N_pad).astype(jnp.float32)

    out = pl.pallas_call(
        _matmul_bn_relu_kernel,
        out_shape=jax.ShapeDtypeStruct((M_pad, N_pad), jnp.float32),
        grid=(M_pad // TM, N_pad // TN),
        in_specs=[
            pl.BlockSpec((TM, K), lambda i, j: (i, 0)),   # activation tile
            pl.BlockSpec((K, TN), lambda i, j: (0, j)),   # weight tile
            pl.BlockSpec((1, TN), lambda i, j: (0, j)),   # BN scale tile
            pl.BlockSpec((1, TN), lambda i, j: (0, j)),   # BN bias tile
        ],
        out_specs=pl.BlockSpec((TM, TN), lambda i, j: (i, j)),
        compiler_params=pltpu.CompilerParams(
            dimension_semantics=("parallel", "parallel"),
            vmem_limit_bytes=VMEM_LIMIT_BYTES),
        cost_estimate=pl.CostEstimate(
            flops=2 * M_pad * K * N_pad,
            transcendentals=0,
            bytes_accessed=(M_pad * K + K * N_pad) * 2 + M_pad * N_pad * 4),
    )(a_p, w_p, s_p, b_p)
    return out[:M, :Nc]


def _conv_direct_bn_relu(x_nhwc, w_oihw, scale, bias, *, padding):
    """Fused KhxKw (stride 1) conv + folded BN + ReLU, no HBM im2col."""
    cout, cin, kh, kw = w_oihw.shape
    N, H, W, _ = x_nhwc.shape
    Ho = H + 2 * padding - kh + 1
    Wo = W + 2 * padding - kw + 1
    Wp = W + 2 * padding

    cout_pad = _round_up(cout, LANE)
    TN = 256 if cout_pad % 256 == 0 else 128

    x_p = jnp.pad(
        x_nhwc, ((0, 0), (padding, padding), (padding, padding), (0, 0))
    ).astype(jnp.bfloat16)
    # (Cout, Cin, KH, KW) -> (KH, KW, Cin, Cout_pad) bf16 MXU operand.
    w_p = jnp.pad(jnp.transpose(w_oihw, (2, 3, 1, 0)),
                  ((0, 0), (0, 0), (0, 0), (0, cout_pad - cout))
                  ).astype(jnp.bfloat16)
    s_p = jnp.pad(scale, (0, cout_pad - cout)).reshape(1, cout_pad).astype(jnp.float32)
    b_p = jnp.pad(bias, (0, cout_pad - cout)).reshape(1, cout_pad).astype(jnp.float32)

    kernel = functools.partial(_conv_row_bn_relu_kernel, kw=kw, wo=Wo)
    out = pl.pallas_call(
        kernel,
        out_shape=jax.ShapeDtypeStruct((N, Ho, Wo, cout_pad), jnp.float32),
        grid=(N, Ho, cout_pad // TN, kh),
        in_specs=[
            # one padded input row (includes the KW-1 column halo), all Cin
            pl.BlockSpec((1, 1, Wp, cin), lambda n, h, c, i: (n, h + i, 0, 0)),
            # weight slab for kernel-row i, cout tile c
            pl.BlockSpec((1, kw, cin, TN), lambda n, h, c, i: (i, 0, 0, c)),
            pl.BlockSpec((1, TN), lambda n, h, c, i: (0, c)),
            pl.BlockSpec((1, TN), lambda n, h, c, i: (0, c)),
        ],
        out_specs=pl.BlockSpec((1, 1, Wo, TN), lambda n, h, c, i: (n, h, 0, c)),
        scratch_shapes=[pltpu.VMEM((Wo, TN), jnp.float32)],
        compiler_params=pltpu.CompilerParams(
            dimension_semantics=("parallel", "parallel", "parallel", "arbitrary"),
            vmem_limit_bytes=VMEM_LIMIT_BYTES),
        cost_estimate=pl.CostEstimate(
            flops=2 * N * Ho * Wo * kh * kw * cin * cout_pad,
            transcendentals=0,
            bytes_accessed=(N * Ho * kh * Wp * cin + kh * kw * cin * cout_pad) * 2
                           + N * Ho * Wo * cout_pad * 4),
    )(x_p, w_p, s_p, b_p)
    return out[..., :cout]


def _fold_bn(p):
    scale = p["gamma"] / jnp.sqrt(p["var"] + BN_EPS)
    bias = p["beta"] - p["mean"] * scale
    return scale, bias


def conv_bn_relu(x_nhwc, p, *, padding=0):
    """BasicConv2d: conv(bias=False, stride=1) -> BatchNorm2d(eps=1e-3) -> ReLU."""
    w = p["w"]                                   # torch layout (Cout, Cin, kh, kw)
    cout, cin, kh, kw = w.shape
    scale, bias = _fold_bn(p)
    if kh == 1 and kw == 1 and padding == 0:
        N, H, W, _ = x_nhwc.shape
        w2 = jnp.transpose(w.reshape(cout, cin), (1, 0))       # (Cin, Cout)
        out = _matmul_bn_relu(x_nhwc.reshape(N * H * W, cin), w2, scale, bias)
        return out.reshape(N, H, W, cout)
    return _conv_direct_bn_relu(x_nhwc, w, scale, bias, padding=padding)


def _avg_pool_conv_params(p_pool):
    """avg_pool2d(3,1,1,count_include_pad=True) followed by a 1x1 conv is
    exactly a 3x3 conv whose every spatial tap equals W_1x1 / 9."""
    w1 = p_pool["w"]                             # (pool_features, Cin, 1, 1)
    pf, cin = w1.shape[0], w1.shape[1]
    w_eff = jnp.broadcast_to(w1 / 9.0, (pf, cin, 3, 3))
    return dict(p_pool, w=w_eff)


# ----------------------------------------------------------------------------
# InceptionA module
# ----------------------------------------------------------------------------
def init_basic_conv(key, cin, cout, kh, kw):
    k1, k2, k3, k4, k5 = jax.random.split(key, 5)
    return {
        "w": 0.1 * jax.random.normal(k1, (cout, cin, kh, kw), jnp.float32),
        "gamma": jax.random.uniform(k2, (cout,), jnp.float32, 0.5, 1.5),
        "beta": 0.1 * jax.random.normal(k3, (cout,), jnp.float32),
        "mean": 0.1 * jax.random.normal(k4, (cout,), jnp.float32),
        "var": jax.random.uniform(k5, (cout,), jnp.float32, 0.5, 1.5),
    }


def init_inception_a(key, in_channels, pool_features):
    ks = jax.random.split(key, 7)
    return {
        "branch1x1": init_basic_conv(ks[0], in_channels, 64, 1, 1),
        "branch5x5_1": init_basic_conv(ks[1], in_channels, 48, 1, 1),
        "branch5x5_2": init_basic_conv(ks[2], 48, 64, 5, 5),
        "branch3x3dbl_1": init_basic_conv(ks[3], in_channels, 64, 1, 1),
        "branch3x3dbl_2": init_basic_conv(ks[4], 64, 96, 3, 3),
        "branch3x3dbl_3": init_basic_conv(ks[5], 96, 96, 3, 3),
        "branch_pool": init_basic_conv(ks[6], in_channels, pool_features, 1, 1),
    }


@jax.jit
def inception_a_forward(x_nchw, params):
    x = jnp.transpose(x_nchw, (0, 2, 3, 1))                      # NCHW -> NHWC
    b1 = conv_bn_relu(x, params["branch1x1"])                    # 1x1 -> 64
    b5 = conv_bn_relu(x, params["branch5x5_1"])                  # 1x1 -> 48
    b5 = conv_bn_relu(b5, params["branch5x5_2"], padding=2)      # 5x5 -> 64
    b3 = conv_bn_relu(x, params["branch3x3dbl_1"])               # 1x1 -> 64
    b3 = conv_bn_relu(b3, params["branch3x3dbl_2"], padding=1)   # 3x3 -> 96
    b3 = conv_bn_relu(b3, params["branch3x3dbl_3"], padding=1)   # 3x3 -> 96
    bp = conv_bn_relu(x, _avg_pool_conv_params(params["branch_pool"]),
                      padding=1)                                 # pool+1x1 fused
    out = jnp.concatenate([b1, b5, b3, bp], axis=-1)             # channel concat
    return jnp.transpose(out, (0, 3, 1, 2))                      # NHWC -> NCHW


if __name__ == "__main__":
    key = jax.random.PRNGKey(0)
    kx, kp = jax.random.split(key)

    N, Cin, H, W = 2, 4, 16, 16
    pool_features = 32
    x = jax.random.normal(kx, (N, Cin, H, W), jnp.float32)
    params = init_inception_a(kp, Cin, pool_features)

    out = inception_a_forward(x, params)
    out = jax.block_until_ready(out)

    expected = (N, 64 + 64 + 96 + pool_features, H, W)
    assert out.shape == expected, (out.shape, expected)
    assert bool(jnp.all(jnp.isfinite(out)))
    print("KERNEL_OK")
</pallas_src>

<mosaic_0001>
module attributes {stable_mosaic.version = 11 : i64} {
  func.func @_matmul_bn_relu_kernel(%arg0: i32, %arg1: i32, %arg2: memref<256x4xbf16, #tpu.memory_space<vmem>>, %arg3: memref<4x128xbf16, #tpu.memory_space<vmem>>, %arg4: memref<1x128xf32, #tpu.memory_space<vmem>>, %arg5: memref<1x128xf32, #tpu.memory_space<vmem>>, %arg6: memref<256x128xf32, #tpu.memory_space<vmem>>) attributes {dimension_semantics = [#tpu.dimension_semantics<parallel>, #tpu.dimension_semantics<parallel>], iteration_bounds = array<i64: 2, 1>, scalar_prefetch = 0 : i64, scratch_operands = 0 : i64, tpu.core_type = #tpu.core_type<tc>, window_params = [{transform_indices = @transform_0, window_bounds = array<i64: 256, 4>}, {transform_indices = @transform_1, window_bounds = array<i64: 4, 128>}, {transform_indices = @transform_2, window_bounds = array<i64: 1, 128>}, {transform_indices = @transform_3, window_bounds = array<i64: 1, 128>}, {transform_indices = @transform_4, window_bounds = array<i64: 256, 128>}]} {
    %c0 = arith.constant 0 : index
    %c0_0 = arith.constant 0 : index
    %0 = vector.load %arg2[%c0, %c0_0] : memref<256x4xbf16, #tpu.memory_space<vmem>>, vector<256x4xbf16>
    %c0_1 = arith.constant 0 : index
    %c0_2 = arith.constant 0 : index
    %1 = vector.load %arg3[%c0_1, %c0_2] : memref<4x128xbf16, #tpu.memory_space<vmem>>, vector<4x128xbf16>
    %cst = arith.constant dense<0.000000e+00> : vector<256x128xf32>
    %2 = tpu.matmul %0, %1, %cst {dimension_numbers = #tpu.dot_dimension_numbers<[1], [0], [0], [1], [0, 0, 1, 1], [], []>} : vector<256x4xbf16>, vector<4x128xbf16>, vector<256x128xf32> -> vector<256x128xf32>
    %c0_3 = arith.constant 0 : index
    %c0_4 = arith.constant 0 : index
    %3 = vector.load %arg4[%c0_3, %c0_4] : memref<1x128xf32, #tpu.memory_space<vmem>>, vector<1x128xf32>
    %4 = vector.broadcast %3 : vector<1x128xf32> to vector<256x128xf32>
    %5 = arith.mulf %2, %4 : vector<256x128xf32>
    %c0_5 = arith.constant 0 : index
    %c0_6 = arith.constant 0 : index
    %6 = vector.load %arg5[%c0_5, %c0_6] : memref<1x128xf32, #tpu.memory_space<vmem>>, vector<1x128xf32>
    %7 = vector.broadcast %6 : vector<1x128xf32> to vector<256x128xf32>
    %8 = arith.addf %5, %7 : vector<256x128xf32>
    %cst_7 = arith.constant 0.000000e+00 : f32
    %9 = vector.broadcast %cst_7 : f32 to vector<256x128xf32>
    %10 = arith.maximumf %8, %9 : vector<256x128xf32>
    %c0_8 = arith.constant 0 : index
    %c0_9 = arith.constant 0 : index
    %11 = vector.load %arg6[%c0_8, %c0_9] : memref<256x128xf32, #tpu.memory_space<vmem>>, vector<256x128xf32>
    tpu.vector_store %arg6[%c0_8, %c0_9], %10 {strides = array<i32>} : memref<256x128xf32, #tpu.memory_space<vmem>>, vector<256x128xf32>,
    return
  }
  func.func @transform_0(%arg0: i32, %arg1: i32) -> (i32, i32) {
    %c0_i32 = arith.constant 0 : i32
    %c0_i32_0 = arith.constant 0 : i32
    return %arg0, %c0_i32 : i32, i32
  }
  func.func @transform_1(%arg0: i32, %arg1: i32) -> (i32, i32) {
    %c0_i32 = arith.constant 0 : i32
    %c0_i32_0 = arith.constant 0 : i32
    return %c0_i32, %arg1 : i32, i32
  }
  func.func @transform_2(%arg0: i32, %arg1: i32) -> (i32, i32) {
    %c0_i32 = arith.constant 0 : i32
    %c0_i32_0 = arith.constant 0 : i32
    return %c0_i32, %arg1 : i32, i32
  }
  func.func @transform_3(%arg0: i32, %arg1: i32) -> (i32, i32) {
    %c0_i32 = arith.constant 0 : i32
    %c0_i32_0 = arith.constant 0 : i32
    return %c0_i32, %arg1 : i32, i32
  }
  func.func @transform_4(%arg0: i32, %arg1: i32) -> (i32, i32) {
    %c0_i32 = arith.constant 0 : i32
    return %arg0, %arg1 : i32, i32
  }
}

module attributes {stable_mosaic.version = 11 : i64} {
  func.func @_conv_row_bn_relu_kernel(%arg0: i32, %arg1: i32, %arg2: i32, %arg3: i32, %arg4: memref<1x1x18x64xbf16, #tpu.memory_space<vmem>>, %arg5: memref<1x3x64x128xbf16, #tpu.memory_space<vmem>>, %arg6: memref<1x128xf32, #tpu.memory_space<vmem>>, %arg7: memref<1x128xf32, #tpu.memory_space<vmem>>, %arg8: memref<1x1x16x128xf32, #tpu.memory_space<vmem>>, %arg9: memref<16x128xf32, #tpu.memory_space<vmem>>) attributes {dimension_semantics = [#tpu.dimension_semantics<parallel>, #tpu.dimension_semantics<parallel>, #tpu.dimension_semantics<parallel>, #tpu.dimension_semantics<arbitrary>], iteration_bounds = array<i64: 2, 16, 1, 3>, scalar_prefetch = 0 : i64, scratch_operands = 1 : i64, tpu.core_type = #tpu.core_type<tc>, window_params = [{transform_indices = @transform_0, window_bounds = array<i64: 1, 1, 18, 64>}, {transform_indices = @transform_1, window_bounds = array<i64: 1, 3, 64, 128>}, {transform_indices = @transform_2, window_bounds = array<i64: 1, 128>}, {transform_indices = @transform_3, window_bounds = array<i64: 1, 128>}, {transform_indices = @transform_4, window_bounds = array<i64: 1, 1, 16, 128>}]} {
    %c0_i32 = arith.constant 0 : i32
    %0 = arith.cmpi eq, %arg3, %c0_i32 : i32
    %1 = arith.extui %0 : i1 to i32
    %c0_i32_0 = arith.constant 0 : i32
    %2 = arith.cmpi ne, %1, %c0_i32_0 : i32
    scf.if %2 {
      %cst_21 = arith.constant 0.000000e+00 : f32
      %25 = vector.broadcast %cst_21 : f32 to vector<16x128xf32>
      %c0_22 = arith.constant 0 : index
      %c0_23 = arith.constant 0 : index
      %26 = vector.load %arg9[%c0_22, %c0_23] : memref<16x128xf32, #tpu.memory_space<vmem>>, vector<16x128xf32>
      tpu.vector_store %arg9[%c0_22, %c0_23], %25 {strides = array<i32>} : memref<16x128xf32, #tpu.memory_space<vmem>>, vector<16x128xf32>,
    } else {
    }
    %c0 = arith.constant 0 : index
    %c0_1 = arith.constant 0 : index
    %c0_2 = arith.constant 0 : index
    %c0_3 = arith.constant 0 : index
    %3 = vector.load %arg4[%c0, %c0_1, %c0_2, %c0_3] : memref<1x1x18x64xbf16, #tpu.memory_space<vmem>>, vector<1x1x18x64xbf16>
    %4 = vector.shape_cast %3 : vector<1x1x18x64xbf16> to vector<18x64xbf16>
    %c0_4 = arith.constant 0 : index
    %c0_5 = arith.constant 0 : index
    %5 = vector.load %arg9[%c0_4, %c0_5] : memref<16x128xf32, #tpu.memory_space<vmem>>, vector<16x128xf32>
    %6 = vector.extract_strided_slice %4 {offsets = [0, 0], sizes = [16, 64], strides = [1, 1]} : vector<18x64xbf16> to vector<16x64xbf16>
    %c0_6 = arith.constant 0 : index
    %c0_7 = arith.constant 0 : index
    %c0_8 = arith.constant 0 : index
    %c0_9 = arith.constant 0 : index
    %7 = vector.load %arg5[%c0_6, %c0_7, %c0_8, %c0_9] : memref<1x3x64x128xbf16, #tpu.memory_space<vmem>>, vector<1x1x64x128xbf16>
    %8 = vector.shape_cast %7 : vector<1x1x64x128xbf16> to vector<64x128xbf16>
    %cst = arith.constant dense<0.000000e+00> : vector<16x128xf32>
    %9 = tpu.matmul %6, %8, %cst {dimension_numbers = #tpu.dot_dimension_numbers<[1], [0], [0], [1], [0, 0, 1, 1], [], []>} : vector<16x64xbf16>, vector<64x128xbf16>, vector<16x128xf32> -> vector<16x128xf32>
    %10 = arith.addf %5, %9 : vector<16x128xf32>
    %11 = vector.extract_strided_slice %4 {offsets = [1, 0], sizes = [16, 64], strides = [1, 1]} : vector<18x64xbf16> to vector<16x64xbf16>
    %c0_10 = arith.constant 0 : index
    %c1 = arith.constant 1 : index
    %c0_11 = arith.constant 0 : index
    %c0_12 = arith.constant 0 : index
    %12 = vector.load %arg5[%c0_10, %c1, %c0_11, %c0_12] : memref<1x3x64x128xbf16, #tpu.memory_space<vmem>>, vector<1x1x64x128xbf16>
    %13 = vector.shape_cast %12 : vector<1x1x64x128xbf16> to vector<64x128xbf16>
    %cst_13 = arith.constant dense<0.000000e+00> : vector<16x128xf32>
    %14 = tpu.matmul %11, %13, %cst_13 {dimension_numbers = #tpu.dot_dimension_numbers<[1], [0], [0], [1], [0, 0, 1, 1], [], []>} : vector<16x64xbf16>, vector<64x128xbf16>, vector<16x128xf32> -> vector<16x128xf32>
    %15 = arith.addf %10, %14 : vector<16x128xf32>
    %16 = vector.extract_strided_slice %4 {offsets = [2, 0], sizes = [16, 64], strides = [1, 1]} : vector<18x64xbf16> to vector<16x64xbf16>
    %c0_14 = arith.constant 0 : index
    %c2 = arith.constant 2 : index
    %c0_15 = arith.constant 0 : index
    %c0_16 = arith.constant 0 : index
    %17 = vector.load %arg5[%c0_14, %c2, %c0_15, %c0_16] : memref<1x3x64x128xbf16, #tpu.memory_space<vmem>>, vector<1x1x64x128xbf16>
    %18 = vector.shape_cast %17 : vector<1x1x64x128xbf16> to vector<64x128xbf16>
    %cst_17 = arith.constant dense<0.000000e+00> : vector<16x128xf32>
    %19 = tpu.matmul %16, %18, %cst_17 {dimension_numbers = #tpu.dot_dimension_numbers<[1], [0], [0], [1], [0, 0, 1, 1], [], []>} : vector<16x64xbf16>, vector<64x128xbf16>, vector<16x128xf32> -> vector<16x128xf32>
    %20 = arith.addf %15, %19 : vector<16x128xf32>
    %c0_18 = arith.constant 0 : index
    %c0_19 = arith.constant 0 : index
    %21 = vector.load %arg9[%c0_18, %c0_19] : memref<16x128xf32, #tpu.memory_space<vmem>>, vector<16x128xf32>
    tpu.vector_store %arg9[%c0_18, %c0_19], %20 {strides = array<i32>} : memref<16x128xf32, #tpu.memory_space<vmem>>, vector<16x128xf32>,
    %c2_i32 = arith.constant 2 : i32
    %22 = arith.cmpi eq, %arg3, %c2_i32 : i32
    %23 = arith.extui %22 : i1 to i32
    %c0_i32_20 = arith.constant 0 : i32
    %24 = arith.cmpi ne, %23, %c0_i32_20 : i32
    scf.if %24 {
      %c0_21 = arith.constant 0 : index
      %c0_22 = arith.constant 0 : index
      %25 = vector.load %arg9[%c0_21, %c0_22] : memref<16x128xf32, #tpu.memory_space<vmem>>, vector<16x128xf32>
      %c0_23 = arith.constant 0 : index
      %c0_24 = arith.constant 0 : index
      %26 = vector.load %arg6[%c0_23, %c0_24] : memref<1x128xf32, #tpu.memory_space<vmem>>, vector<1x128xf32>
      %27 = vector.broadcast %26 : vector<1x128xf32> to vector<16x128xf32>
      %28 = arith.mulf %25, %27 : vector<16x128xf32>
      %c0_25 = arith.constant 0 : index
      %c0_26 = arith.constant 0 : index
      %29 = vector.load %arg7[%c0_25, %c0_26] : memref<1x128xf32, #tpu.memory_space<vmem>>, vector<1x128xf32>
      %30 = vector.broadcast %29 : vector<1x128xf32> to vector<16x128xf32>
      %31 = arith.addf %28, %30 : vector<16x128xf32>
      %cst_27 = arith.constant 0.000000e+00 : f32
      %32 = vector.broadcast %cst_27 : f32 to vector<16x128xf32>
      %33 = arith.maximumf %31, %32 : vector<16x128xf32>
      %c0_28 = arith.constant 0 : index
      %c0_29 = arith.constant 0 : index
      %c0_30 = arith.constant 0 : index
      %c0_31 = arith.constant 0 : index
      %34 = vector.load %arg8[%c0_28, %c0_29, %c0_30, %c0_31] : memref<1x1x16x128xf32, #tpu.memory_space<vmem>>, vector<1x1x16x128xf32>
      %35 = vector.shape_cast %34 : vector<1x1x16x128xf32> to vector<16x128xf32>
      %36 = vector.shape_cast %33 : vector<16x128xf32> to vector<1x1x16x128xf32>
      tpu.vector_store %arg8[%c0_28, %c0_29, %c0_30, %c0_31], %36 {strides = array<i32>} : memref<1x1x16x128xf32, #tpu.memory_space<vmem>>, vector<1x1x16x128xf32>,
    } else {
    }
    return
  }
  func.func @transform_0(%arg0: i32, %arg1: i32, %arg2: i32, %arg3: i32) -> (i32, i32, i32, i32) {
    %0 = arith.addi %arg1, %arg3 : i32
    %c0_i32 = arith.constant 0 : i32
    %c0_i32_0 = arith.constant 0 : i32
    %c0_i32_1 = arith.constant 0 : i32
    return %arg0, %0, %c0_i32, %c0_i32_0 : i32, i32, i32, i32
  }
  func.func @transform_1(%arg0: i32, %arg1: i32, %arg2: i32, %arg3: i32) -> (i32, i32, i32, i32) {
    %c0_i32 = arith.constant 0 : i32
    %c0_i32_0 = arith.constant 0 : i32
    %c0_i32_1 = arith.constant 0 : i32
    return %arg3, %c0_i32, %c0_i32_0, %arg2 : i32, i32, i32, i32
  }
  func.func @transform_2(%arg0: i32, %arg1: i32, %arg2: i32, %arg3: i32) -> (i32, i32) {
    %c0_i32 = arith.constant 0 : i32
    %c0_i32_0 = arith.constant 0 : i32
    return %c0_i32, %arg2 : i32, i32
  }
  func.func @transform_3(%arg0: i32, %arg1: i32, %arg2: i32, %arg3: i32) -> (i32, i32) {
    %c0_i32 = arith.constant 0 : i32
    %c0_i32_0 = arith.constant 0 : i32
    return %c0_i32, %arg2 : i32, i32
  }
  func.func @transform_4(%arg0: i32, %arg1: i32, %arg2: i32, %arg3: i32) -> (i32, i32, i32, i32) {
    %c0_i32 = arith.constant 0 : i32
    %c0_i32_0 = arith.constant 0 : i32
    return %arg0, %arg1, %c0_i32, %arg2 : i32, i32, i32, i32
  }
}

module attributes {stable_mosaic.version = 11 : i64} {
  func.func @_conv_row_bn_relu_kernel(%arg0: i32, %arg1: i32, %arg2: i32, %arg3: i32, %arg4: memref<1x1x18x96xbf16, #tpu.memory_space<vmem>>, %arg5: memref<1x3x96x128xbf16, #tpu.memory_space<vmem>>, %arg6: memref<1x128xf32, #tpu.memory_space<vmem>>, %arg7: memref<1x128xf32, #tpu.memory_space<vmem>>, %arg8: memref<1x1x16x128xf32, #tpu.memory_space<vmem>>, %arg9: memref<16x128xf32, #tpu.memory_space<vmem>>) attributes {dimension_semantics = [#tpu.dimension_semantics<parallel>, #tpu.dimension_semantics<parallel>, #tpu.dimension_semantics<parallel>, #tpu.dimension_semantics<arbitrary>], iteration_bounds = array<i64: 2, 16, 1, 3>, scalar_prefetch = 0 : i64, scratch_operands = 1 : i64, tpu.core_type = #tpu.core_type<tc>, window_params = [{transform_indices = @transform_0, window_bounds = array<i64: 1, 1, 18, 96>}, {transform_indices = @transform_1, window_bounds = array<i64: 1, 3, 96, 128>}, {transform_indices = @transform_2, window_bounds = array<i64: 1, 128>}, {transform_indices = @transform_3, window_bounds = array<i64: 1, 128>}, {transform_indices = @transform_4, window_bounds = array<i64: 1, 1, 16, 128>}]} {
    %c0_i32 = arith.constant 0 : i32
    %0 = arith.cmpi eq, %arg3, %c0_i32 : i32
    %1 = arith.extui %0 : i1 to i32
    %c0_i32_0 = arith.constant 0 : i32
    %2 = arith.cmpi ne, %1, %c0_i32_0 : i32
    scf.if %2 {
      %cst_21 = arith.constant 0.000000e+00 : f32
      %25 = vector.broadcast %cst_21 : f32 to vector<16x128xf32>
      %c0_22 = arith.constant 0 : index
      %c0_23 = arith.constant 0 : index
      %26 = vector.load %arg9[%c0_22, %c0_23] : memref<16x128xf32, #tpu.memory_space<vmem>>, vector<16x128xf32>
      tpu.vector_store %arg9[%c0_22, %c0_23], %25 {strides = array<i32>} : memref<16x128xf32, #tpu.memory_space<vmem>>, vector<16x128xf32>,
    } else {
    }
    %c0 = arith.constant 0 : index
    %c0_1 = arith.constant 0 : index
    %c0_2 = arith.constant 0 : index
    %c0_3 = arith.constant 0 : index
    %3 = vector.load %arg4[%c0, %c0_1, %c0_2, %c0_3] : memref<1x1x18x96xbf16, #tpu.memory_space<vmem>>, vector<1x1x18x96xbf16>
    %4 = vector.shape_cast %3 : vector<1x1x18x96xbf16> to vector<18x96xbf16>
    %c0_4 = arith.constant 0 : index
    %c0_5 = arith.constant 0 : index
    %5 = vector.load %arg9[%c0_4, %c0_5] : memref<16x128xf32, #tpu.memory_space<vmem>>, vector<16x128xf32>
    %6 = vector.extract_strided_slice %4 {offsets = [0, 0], sizes = [16, 96], strides = [1, 1]} : vector<18x96xbf16> to vector<16x96xbf16>
    %c0_6 = arith.constant 0 : index
    %c0_7 = arith.constant 0 : index
    %c0_8 = arith.constant 0 : index
    %c0_9 = arith.constant 0 : index
    %7 = vector.load %arg5[%c0_6, %c0_7, %c0_8, %c0_9] : memref<1x3x96x128xbf16, #tpu.memory_space<vmem>>, vector<1x1x96x128xbf16>
    %8 = vector.shape_cast %7 : vector<1x1x96x128xbf16> to vector<96x128xbf16>
    %cst = arith.constant dense<0.000000e+00> : vector<16x128xf32>
    %9 = tpu.matmul %6, %8, %cst {dimension_numbers = #tpu.dot_dimension_numbers<[1], [0], [0], [1], [0, 0, 1, 1], [], []>} : vector<16x96xbf16>, vector<96x128xbf16>, vector<16x128xf32> -> vector<16x128xf32>
    %10 = arith.addf %5, %9 : vector<16x128xf32>
    %11 = vector.extract_strided_slice %4 {offsets = [1, 0], sizes = [16, 96], strides = [1, 1]} : vector<18x96xbf16> to vector<16x96xbf16>
    %c0_10 = arith.constant 0 : index
    %c1 = arith.constant 1 : index
    %c0_11 = arith.constant 0 : index
    %c0_12 = arith.constant 0 : index
    %12 = vector.load %arg5[%c0_10, %c1, %c0_11, %c0_12] : memref<1x3x96x128xbf16, #tpu.memory_space<vmem>>, vector<1x1x96x128xbf16>
    %13 = vector.shape_cast %12 : vector<1x1x96x128xbf16> to vector<96x128xbf16>
    %cst_13 = arith.constant dense<0.000000e+00> : vector<16x128xf32>
    %14 = tpu.matmul %11, %13, %cst_13 {dimension_numbers = #tpu.dot_dimension_numbers<[1], [0], [0], [1], [0, 0, 1, 1], [], []>} : vector<16x96xbf16>, vector<96x128xbf16>, vector<16x128xf32> -> vector<16x128xf32>
    %15 = arith.addf %10, %14 : vector<16x128xf32>
    %16 = vector.extract_strided_slice %4 {offsets = [2, 0], sizes = [16, 96], strides = [1, 1]} : vector<18x96xbf16> to vector<16x96xbf16>
    %c0_14 = arith.constant 0 : index
    %c2 = arith.constant 2 : index
    %c0_15 = arith.constant 0 : index
    %c0_16 = arith.constant 0 : index
    %17 = vector.load %arg5[%c0_14, %c2, %c0_15, %c0_16] : memref<1x3x96x128xbf16, #tpu.memory_space<vmem>>, vector<1x1x96x128xbf16>
    %18 = vector.shape_cast %17 : vector<1x1x96x128xbf16> to vector<96x128xbf16>
    %cst_17 = arith.constant dense<0.000000e+00> : vector<16x128xf32>
    %19 = tpu.matmul %16, %18, %cst_17 {dimension_numbers = #tpu.dot_dimension_numbers<[1], [0], [0], [1], [0, 0, 1, 1], [], []>} : vector<16x96xbf16>, vector<96x128xbf16>, vector<16x128xf32> -> vector<16x128xf32>
    %20 = arith.addf %15, %19 : vector<16x128xf32>
    %c0_18 = arith.constant 0 : index
    %c0_19 = arith.constant 0 : index
    %21 = vector.load %arg9[%c0_18, %c0_19] : memref<16x128xf32, #tpu.memory_space<vmem>>, vector<16x128xf32>
    tpu.vector_store %arg9[%c0_18, %c0_19], %20 {strides = array<i32>} : memref<16x128xf32, #tpu.memory_space<vmem>>, vector<16x128xf32>,
    %c2_i32 = arith.constant 2 : i32
    %22 = arith.cmpi eq, %arg3, %c2_i32 : i32
    %23 = arith.extui %22 : i1 to i32
    %c0_i32_20 = arith.constant 0 : i32
    %24 = arith.cmpi ne, %23, %c0_i32_20 : i32
    scf.if %24 {
      %c0_21 = arith.constant 0 : index
      %c0_22 = arith.constant 0 : index
      %25 = vector.load %arg9[%c0_21, %c0_22] : memref<16x128xf32, #tpu.memory_space<vmem>>, vector<16x128xf32>
      %c0_23 = arith.constant 0 : index
      %c0_24 = arith.constant 0 : index
      %26 = vector.load %arg6[%c0_23, %c0_24] : memref<1x128xf32, #tpu.memory_space<vmem>>, vector<1x128xf32>
      %27 = vector.broadcast %26 : vector<1x128xf32> to vector<16x128xf32>
      %28 = arith.mulf %25, %27 : vector<16x128xf32>
      %c0_25 = arith.constant 0 : index
      %c0_26 = arith.constant 0 : index
      %29 = vector.load %arg7[%c0_25, %c0_26] : memref<1x128xf32, #tpu.memory_space<vmem>>, vector<1x128xf32>
      %30 = vector.broadcast %29 : vector<1x128xf32> to vector<16x128xf32>
      %31 = arith.addf %28, %30 : vector<16x128xf32>
      %cst_27 = arith.constant 0.000000e+00 : f32
      %32 = vector.broadcast %cst_27 : f32 to vector<16x128xf32>
      %33 = arith.maximumf %31, %32 : vector<16x128xf32>
      %c0_28 = arith.constant 0 : index
      %c0_29 = arith.constant 0 : index
      %c0_30 = arith.constant 0 : index
      %c0_31 = arith.constant 0 : index
      %34 = vector.load %arg8[%c0_28, %c0_29, %c0_30, %c0_31] : memref<1x1x16x128xf32, #tpu.memory_space<vmem>>, vector<1x1x16x128xf32>
      %35 = vector.shape_cast %34 : vector<1x1x16x128xf32> to vector<16x128xf32>
      %36 = vector.shape_cast %33 : vector<16x128xf32> to vector<1x1x16x128xf32>
      tpu.vector_store %arg8[%c0_28, %c0_29, %c0_30, %c0_31], %36 {strides = array<i32>} : memref<1x1x16x128xf32, #tpu.memory_space<vmem>>, vector<1x1x16x128xf32>,
    } else {
    }
    return
  }
  func.func @transform_0(%arg0: i32, %arg1: i32, %arg2: i32, %arg3: i32) -> (i32, i32, i32, i32) {
    %0 = arith.addi %arg1, %arg3 : i32
    %c0_i32 = arith.constant 0 : i32
    %c0_i32_0 = arith.constant 0 : i32
    %c0_i32_1 = arith.constant 0 : i32
    return %arg0, %0, %c0_i32, %c0_i32_0 : i32, i32, i32, i32
  }
  func.func @transform_1(%arg0: i32, %arg1: i32, %arg2: i32, %arg3: i32) -> (i32, i32, i32, i32) {
    %c0_i32 = arith.constant 0 : i32
    %c0_i32_0 = arith.constant 0 : i32
    %c0_i32_1 = arith.constant 0 : i32
    return %arg3, %c0_i32, %c0_i32_0, %arg2 : i32, i32, i32, i32
  }
  func.func @transform_2(%arg0: i32, %arg1: i32, %arg2: i32, %arg3: i32) -> (i32, i32) {
    %c0_i32 = arith.constant 0 : i32
    %c0_i32_0 = arith.constant 0 : i32
    return %c0_i32, %arg2 : i32, i32
  }
  func.func @transform_3(%arg0: i32, %arg1: i32, %arg2: i32, %arg3: i32) -> (i32, i32) {
    %c0_i32 = arith.constant 0 : i32
    %c0_i32_0 = arith.constant 0 : i32
    return %c0_i32, %arg2 : i32, i32
  }
  func.func @transform_4(%arg0: i32, %arg1: i32, %arg2: i32, %arg3: i32) -> (i32, i32, i32, i32) {
    %c0_i32 = arith.constant 0 : i32
    %c0_i32_0 = arith.constant 0 : i32
    return %arg0, %arg1, %c0_i32, %arg2 : i32, i32, i32, i32
  }
}

module attributes {stable_mosaic.version = 11 : i64} {
  func.func @_conv_row_bn_relu_kernel(%arg0: i32, %arg1: i32, %arg2: i32, %arg3: i32, %arg4: memref<1x1x20x48xbf16, #tpu.memory_space<vmem>>, %arg5: memref<1x5x48x128xbf16, #tpu.memory_space<vmem>>, %arg6: memref<1x128xf32, #tpu.memory_space<vmem>>, %arg7: memref<1x128xf32, #tpu.memory_space<vmem>>, %arg8: memref<1x1x16x128xf32, #tpu.memory_space<vmem>>, %arg9: memref<16x128xf32, #tpu.memory_space<vmem>>) attributes {dimension_semantics = [#tpu.dimension_semantics<parallel>, #tpu.dimension_semantics<parallel>, #tpu.dimension_semantics<parallel>, #tpu.dimension_semantics<arbitrary>], iteration_bounds = array<i64: 2, 16, 1, 5>, scalar_prefetch = 0 : i64, scratch_operands = 1 : i64, tpu.core_type = #tpu.core_type<tc>, window_params = [{transform_indices = @transform_0, window_bounds = array<i64: 1, 1, 20, 48>}, {transform_indices = @transform_1, window_bounds = array<i64: 1, 5, 48, 128>}, {transform_indices = @transform_2, window_bounds = array<i64: 1, 128>}, {transform_indices = @transform_3, window_bounds = array<i64: 1, 128>}, {transform_indices = @transform_4, window_bounds = array<i64: 1, 1, 16, 128>}]} {
    %c0_i32 = arith.constant 0 : i32
    %0 = arith.cmpi eq, %arg3, %c0_i32 : i32
    %1 = arith.extui %0 : i1 to i32
    %c0_i32_0 = arith.constant 0 : i32
    %2 = arith.cmpi ne, %1, %c0_i32_0 : i32
    scf.if %2 {
      %cst_29 = arith.constant 0.000000e+00 : f32
      %35 = vector.broadcast %cst_29 : f32 to vector<16x128xf32>
      %c0_30 = arith.constant 0 : index
      %c0_31 = arith.constant 0 : index
      %36 = vector.load %arg9[%c0_30, %c0_31] : memref<16x128xf32, #tpu.memory_space<vmem>>, vector<16x128xf32>
      tpu.vector_store %arg9[%c0_30, %c0_31], %35 {strides = array<i32>} : memref<16x128xf32, #tpu.memory_space<vmem>>, vector<16x128xf32>,
    } else {
    }
    %c0 = arith.constant 0 : index
    %c0_1 = arith.constant 0 : index
    %c0_2 = arith.constant 0 : index
    %c0_3 = arith.constant 0 : index
    %3 = vector.load %arg4[%c0, %c0_1, %c0_2, %c0_3] : memref<1x1x20x48xbf16, #tpu.memory_space<vmem>>, vector<1x1x20x48xbf16>
    %4 = vector.shape_cast %3 : vector<1x1x20x48xbf16> to vector<20x48xbf16>
    %c0_4 = arith.constant 0 : index
    %c0_5 = arith.constant 0 : index
    %5 = vector.load %arg9[%c0_4, %c0_5] : memref<16x128xf32, #tpu.memory_space<vmem>>, vector<16x128xf32>
    %6 = vector.extract_strided_slice %4 {offsets = [0, 0], sizes = [16, 48], strides = [1, 1]} : vector<20x48xbf16> to vector<16x48xbf16>
    %c0_6 = arith.constant 0 : index
    %c0_7 = arith.constant 0 : index
    %c0_8 = arith.constant 0 : index
    %c0_9 = arith.constant 0 : index
    %7 = vector.load %arg5[%c0_6, %c0_7, %c0_8, %c0_9] : memref<1x5x48x128xbf16, #tpu.memory_space<vmem>>, vector<1x1x48x128xbf16>
    %8 = vector.shape_cast %7 : vector<1x1x48x128xbf16> to vector<48x128xbf16>
    %cst = arith.constant dense<0.000000e+00> : vector<16x128xf32>
    %9 = tpu.matmul %6, %8, %cst {dimension_numbers = #tpu.dot_dimension_numbers<[1], [0], [0], [1], [0, 0, 1, 1], [], []>} : vector<16x48xbf16>, vector<48x128xbf16>, vector<16x128xf32> -> vector<16x128xf32>
    %10 = arith.addf %5, %9 : vector<16x128xf32>
    %11 = vector.extract_strided_slice %4 {offsets = [1, 0], sizes = [16, 48], strides = [1, 1]} : vector<20x48xbf16> to vector<16x48xbf16>
    %c0_10 = arith.constant 0 : index
    %c1 = arith.constant 1 : index
    %c0_11 = arith.constant 0 : index
    %c0_12 = arith.constant 0 : index
    %12 = vector.load %arg5[%c0_10, %c1, %c0_11, %c0_12] : memref<1x5x48x128xbf16, #tpu.memory_space<vmem>>, vector<1x1x48x128xbf16>
    %13 = vector.shape_cast %12 : vector<1x1x48x128xbf16> to vector<48x128xbf16>
    %cst_13 = arith.constant dense<0.000000e+00> : vector<16x128xf32>
    %14 = tpu.matmul %11, %13, %cst_13 {dimension_numbers = #tpu.dot_dimension_numbers<[1], [0], [0], [1], [0, 0, 1, 1], [], []>} : vector<16x48xbf16>, vector<48x128xbf16>, vector<16x128xf32> -> vector<16x128xf32>
    %15 = arith.addf %10, %14 : vector<16x128xf32>
    %16 = vector.extract_strided_slice %4 {offsets = [2, 0], sizes = [16, 48], strides = [1, 1]} : vector<20x48xbf16> to vector<16x48xbf16>
    %c0_14 = arith.constant 0 : index
    %c2 = arith.constant 2 : index
    %c0_15 = arith.constant 0 : index
    %c0_16 = arith.constant 0 : index
    %17 = vector.load %arg5[%c0_14, %c2, %c0_15, %c0_16] : memref<1x5x48x128xbf16, #tpu.memory_space<vmem>>, vector<1x1x48x128xbf16>
    %18 = vector.shape_cast %17 : vector<1x1x48x128xbf16> to vector<48x128xbf16>
    %cst_17 = arith.constant dense<0.000000e+00> : vector<16x128xf32>
    %19 = tpu.matmul %16, %18, %cst_17 {dimension_numbers = #tpu.dot_dimension_numbers<[1], [0], [0], [1], [0, 0, 1, 1], [], []>} : vector<16x48xbf16>, vector<48x128xbf16>, vector<16x128xf32> -> vector<16x128xf32>
    %20 = arith.addf %15, %19 : vector<16x128xf32>
    %21 = vector.extract_strided_slice %4 {offsets = [3, 0], sizes = [16, 48], strides = [1, 1]} : vector<20x48xbf16> to vector<16x48xbf16>
    %c0_18 = arith.constant 0 : index
    %c3 = arith.constant 3 : index
    %c0_19 = arith.constant 0 : index
    %c0_20 = arith.constant 0 : index
    %22 = vector.load %arg5[%c0_18, %c3, %c0_19, %c0_20] : memref<1x5x48x128xbf16, #tpu.memory_space<vmem>>, vector<1x1x48x128xbf16>
    %23 = vector.shape_cast %22 : vector<1x1x48x128xbf16> to vector<48x128xbf16>
    %cst_21 = arith.constant dense<0.000000e+00> : vector<16x128xf32>
    %24 = tpu.matmul %21, %23, %cst_21 {dimension_numbers = #tpu.dot_dimension_numbers<[1], [0], [0], [1], [0, 0, 1, 1], [], []>} : vector<16x48xbf16>, vector<48x128xbf16>, vector<16x128xf32> -> vector<16x128xf32>
    %25 = arith.addf %20, %24 : vector<16x128xf32>
    %26 = vector.extract_strided_slice %4 {offsets = [4, 0], sizes = [16, 48], strides = [1, 1]} : vector<20x48xbf16> to vector<16x48xbf16>
    %c0_22 = arith.constant 0 : index
    %c4 = arith.constant 4 : index
    %c0_23 = arith.constant 0 : index
    %c0_24 = arith.constant 0 : index
    %27 = vector.load %arg5[%c0_22, %c4, %c0_23, %c0_24] : memref<1x5x48x128xbf16, #tpu.memory_space<vmem>>, vector<1x1x48x128xbf16>
    %28 = vector.shape_cast %27 : vector<1x1x48x128xbf16> to vector<48x128xbf16>
    %cst_25 = arith.constant dense<0.000000e+00> : vector<16x128xf32>
    %29 = tpu.matmul %26, %28, %cst_25 {dimension_numbers = #tpu.dot_dimension_numbers<[1], [0], [0], [1], [0, 0, 1, 1], [], []>} : vector<16x48xbf16>, vector<48x128xbf16>, vector<16x128xf32> -> vector<16x128xf32>
    %30 = arith.addf %25, %29 : vector<16x128xf32>
    %c0_26 = arith.constant 0 : index
    %c0_27 = arith.constant 0 : index
    %31 = vector.load %arg9[%c0_26, %c0_27] : memref<16x128xf32, #tpu.memory_space<vmem>>, vector<16x128xf32>
    tpu.vector_store %arg9[%c0_26, %c0_27], %30 {strides = array<i32>} : memref<16x128xf32, #tpu.memory_space<vmem>>, vector<16x128xf32>,
    %c4_i32 = arith.constant 4 : i32
    %32 = arith.cmpi eq, %arg3, %c4_i32 : i32
    %33 = arith.extui %32 : i1 to i32
    %c0_i32_28 = arith.constant 0 : i32
    %34 = arith.cmpi ne, %33, %c0_i32_28 : i32
    scf.if %34 {
      %c0_29 = arith.constant 0 : index
      %c0_30 = arith.constant 0 : index
      %35 = vector.load %arg9[%c0_29, %c0_30] : memref<16x128xf32, #tpu.memory_space<vmem>>, vector<16x128xf32>
      %c0_31 = arith.constant 0 : index
      %c0_32 = arith.constant 0 : index
      %36 = vector.load %arg6[%c0_31, %c0_32] : memref<1x128xf32, #tpu.memory_space<vmem>>, vector<1x128xf32>
      %37 = vector.broadcast %36 : vector<1x128xf32> to vector<16x128xf32>
      %38 = arith.mulf %35, %37 : vector<16x128xf32>
      %c0_33 = arith.constant 0 : index
      %c0_34 = arith.constant 0 : index
      %39 = vector.load %arg7[%c0_33, %c0_34] : memref<1x128xf32, #tpu.memory_space<vmem>>, vector<1x128xf32>
      %40 = vector.broadcast %39 : vector<1x128xf32> to vector<16x128xf32>
      %41 = arith.addf %38, %40 : vector<16x128xf32>
      %cst_35 = arith.constant 0.000000e+00 : f32
      %42 = vector.broadcast %cst_35 : f32 to vector<16x128xf32>
      %43 = arith.maximumf %41, %42 : vector<16x128xf32>
      %c0_36 = arith.constant 0 : index
      %c0_37 = arith.constant 0 : index
      %c0_38 = arith.constant 0 : index
      %c0_39 = arith.constant 0 : index
      %44 = vector.load %arg8[%c0_36, %c0_37, %c0_38, %c0_39] : memref<1x1x16x128xf32, #tpu.memory_space<vmem>>, vector<1x1x16x128xf32>
      %45 = vector.shape_cast %44 : vector<1x1x16x128xf32> to vector<16x128xf32>
      %46 = vector.shape_cast %43 : vector<16x128xf32> to vector<1x1x16x128xf32>
      tpu.vector_store %arg8[%c0_36, %c0_37, %c0_38, %c0_39], %46 {strides = array<i32>} : memref<1x1x16x128xf32, #tpu.memory_space<vmem>>, vector<1x1x16x128xf32>,
    } else {
    }
    return
  }
  func.func @transform_0(%arg0: i32, %arg1: i32, %arg2: i32, %arg3: i32) -> (i32, i32, i32, i32) {
    %0 = arith.addi %arg1, %arg3 : i32
    %c0_i32 = arith.constant 0 : i32
    %c0_i32_0 = arith.constant 0 : i32
    %c0_i32_1 = arith.constant 0 : i32
    return %arg0, %0, %c0_i32, %c0_i32_0 : i32, i32, i32, i32
  }
  func.func @transform_1(%arg0: i32, %arg1: i32, %arg2: i32, %arg3: i32) -> (i32, i32, i32, i32) {
    %c0_i32 = arith.constant 0 : i32
    %c0_i32_0 = arith.constant 0 : i32
    %c0_i32_1 = arith.constant 0 : i32
    return %arg3, %c0_i32, %c0_i32_0, %arg2 : i32, i32, i32, i32
  }
  func.func @transform_2(%arg0: i32, %arg1: i32, %arg2: i32, %arg3: i32) -> (i32, i32) {
    %c0_i32 = arith.constant 0 : i32
    %c0_i32_0 = arith.constant 0 : i32
    return %c0_i32, %arg2 : i32, i32
  }
  func.func @transform_3(%arg0: i32, %arg1: i32, %arg2: i32, %arg3: i32) -> (i32, i32) {
    %c0_i32 = arith.constant 0 : i32
    %c0_i32_0 = arith.constant 0 : i32
    return %c0_i32, %arg2 : i32, i32
  }
  func.func @transform_4(%arg0: i32, %arg1: i32, %arg2: i32, %arg3: i32) -> (i32, i32, i32, i32) {
    %c0_i32 = arith.constant 0 : i32
    %c0_i32_0 = arith.constant 0 : i32
    return %arg0, %arg1, %c0_i32, %arg2 : i32, i32, i32, i32
  }
}

module attributes {stable_mosaic.version = 11 : i64} {
  func.func @_conv_row_bn_relu_kernel(%arg0: i32, %arg1: i32, %arg2: i32, %arg3: i32, %arg4: memref<1x1x18x4xbf16, #tpu.memory_space<vmem>>, %arg5: memref<1x3x4x128xbf16, #tpu.memory_space<vmem>>, %arg6: memref<1x128xf32, #tpu.memory_space<vmem>>, %arg7: memref<1x128xf32, #tpu.memory_space<vmem>>, %arg8: memref<1x1x16x128xf32, #tpu.memory_space<vmem>>, %arg9: memref<16x128xf32, #tpu.memory_space<vmem>>) attributes {dimension_semantics = [#tpu.dimension_semantics<parallel>, #tpu.dimension_semantics<parallel>, #tpu.dimension_semantics<parallel>, #tpu.dimension_semantics<arbitrary>], iteration_bounds = array<i64: 2, 16, 1, 3>, scalar_prefetch = 0 : i64, scratch_operands = 1 : i64, tpu.core_type = #tpu.core_type<tc>, window_params = [{transform_indices = @transform_0, window_bounds = array<i64: 1, 1, 18, 4>}, {transform_indices = @transform_1, window_bounds = array<i64: 1, 3, 4, 128>}, {transform_indices = @transform_2, window_bounds = array<i64: 1, 128>}, {transform_indices = @transform_3, window_bounds = array<i64: 1, 128>}, {transform_indices = @transform_4, window_bounds = array<i64: 1, 1, 16, 128>}]} {
    %c0_i32 = arith.constant 0 : i32
    %0 = arith.cmpi eq, %arg3, %c0_i32 : i32
    %1 = arith.extui %0 : i1 to i32
    %c0_i32_0 = arith.constant 0 : i32
    %2 = arith.cmpi ne, %1, %c0_i32_0 : i32
    scf.if %2 {
      %cst_21 = arith.constant 0.000000e+00 : f32
      %25 = vector.broadcast %cst_21 : f32 to vector<16x128xf32>
      %c0_22 = arith.constant 0 : index
      %c0_23 = arith.constant 0 : index
      %26 = vector.load %arg9[%c0_22, %c0_23] : memref<16x128xf32, #tpu.memory_space<vmem>>, vector<16x128xf32>
      tpu.vector_store %arg9[%c0_22, %c0_23], %25 {strides = array<i32>} : memref<16x128xf32, #tpu.memory_space<vmem>>, vector<16x128xf32>,
    } else {
    }
    %c0 = arith.constant 0 : index
    %c0_1 = arith.constant 0 : index
    %c0_2 = arith.constant 0 : index
    %c0_3 = arith.constant 0 : index
    %3 = vector.load %arg4[%c0, %c0_1, %c0_2, %c0_3] : memref<1x1x18x4xbf16, #tpu.memory_space<vmem>>, vector<1x1x18x4xbf16>
    %4 = vector.shape_cast %3 : vector<1x1x18x4xbf16> to vector<18x4xbf16>
    %c0_4 = arith.constant 0 : index
    %c0_5 = arith.constant 0 : index
    %5 = vector.load %arg9[%c0_4, %c0_5] : memref<16x128xf32, #tpu.memory_space<vmem>>, vector<16x128xf32>
    %6 = vector.extract_strided_slice %4 {offsets = [0, 0], sizes = [16, 4], strides = [1, 1]} : vector<18x4xbf16> to vector<16x4xbf16>
    %c0_6 = arith.constant 0 : index
    %c0_7 = arith.constant 0 : index
    %c0_8 = arith.constant 0 : index
    %c0_9 = arith.constant 0 : index
    %7 = vector.load %arg5[%c0_6, %c0_7, %c0_8, %c0_9] : memref<1x3x4x128xbf16, #tpu.memory_space<vmem>>, vector<1x1x4x128xbf16>
    %8 = vector.shape_cast %7 : vector<1x1x4x128xbf16> to vector<4x128xbf16>
    %cst = arith.constant dense<0.000000e+00> : vector<16x128xf32>
    %9 = tpu.matmul %6, %8, %cst {dimension_numbers = #tpu.dot_dimension_numbers<[1], [0], [0], [1], [0, 0, 1, 1], [], []>} : vector<16x4xbf16>, vector<4x128xbf16>, vector<16x128xf32> -> vector<16x128xf32>
    %10 = arith.addf %5, %9 : vector<16x128xf32>
    %11 = vector.extract_strided_slice %4 {offsets = [1, 0], sizes = [16, 4], strides = [1, 1]} : vector<18x4xbf16> to vector<16x4xbf16>
    %c0_10 = arith.constant 0 : index
    %c1 = arith.constant 1 : index
    %c0_11 = arith.constant 0 : index
    %c0_12 = arith.constant 0 : index
    %12 = vector.load %arg5[%c0_10, %c1, %c0_11, %c0_12] : memref<1x3x4x128xbf16, #tpu.memory_space<vmem>>, vector<1x1x4x128xbf16>
    %13 = vector.shape_cast %12 : vector<1x1x4x128xbf16> to vector<4x128xbf16>
    %cst_13 = arith.constant dense<0.000000e+00> : vector<16x128xf32>
    %14 = tpu.matmul %11, %13, %cst_13 {dimension_numbers = #tpu.dot_dimension_numbers<[1], [0], [0], [1], [0, 0, 1, 1], [], []>} : vector<16x4xbf16>, vector<4x128xbf16>, vector<16x128xf32> -> vector<16x128xf32>
    %15 = arith.addf %10, %14 : vector<16x128xf32>
    %16 = vector.extract_strided_slice %4 {offsets = [2, 0], sizes = [16, 4], strides = [1, 1]} : vector<18x4xbf16> to vector<16x4xbf16>
    %c0_14 = arith.constant 0 : index
    %c2 = arith.constant 2 : index
    %c0_15 = arith.constant 0 : index
    %c0_16 = arith.constant 0 : index
    %17 = vector.load %arg5[%c0_14, %c2, %c0_15, %c0_16] : memref<1x3x4x128xbf16, #tpu.memory_space<vmem>>, vector<1x1x4x128xbf16>
    %18 = vector.shape_cast %17 : vector<1x1x4x128xbf16> to vector<4x128xbf16>
    %cst_17 = arith.constant dense<0.000000e+00> : vector<16x128xf32>
    %19 = tpu.matmul %16, %18, %cst_17 {dimension_numbers = #tpu.dot_dimension_numbers<[1], [0], [0], [1], [0, 0, 1, 1], [], []>} : vector<16x4xbf16>, vector<4x128xbf16>, vector<16x128xf32> -> vector<16x128xf32>
    %20 = arith.addf %15, %19 : vector<16x128xf32>
    %c0_18 = arith.constant 0 : index
    %c0_19 = arith.constant 0 : index
    %21 = vector.load %arg9[%c0_18, %c0_19] : memref<16x128xf32, #tpu.memory_space<vmem>>, vector<16x128xf32>
    tpu.vector_store %arg9[%c0_18, %c0_19], %20 {strides = array<i32>} : memref<16x128xf32, #tpu.memory_space<vmem>>, vector<16x128xf32>,
    %c2_i32 = arith.constant 2 : i32
    %22 = arith.cmpi eq, %arg3, %c2_i32 : i32
    %23 = arith.extui %22 : i1 to i32
    %c0_i32_20 = arith.constant 0 : i32
    %24 = arith.cmpi ne, %23, %c0_i32_20 : i32
    scf.if %24 {
      %c0_21 = arith.constant 0 : index
      %c0_22 = arith.constant 0 : index
      %25 = vector.load %arg9[%c0_21, %c0_22] : memref<16x128xf32, #tpu.memory_space<vmem>>, vector<16x128xf32>
      %c0_23 = arith.constant 0 : index
      %c0_24 = arith.constant 0 : index
      %26 = vector.load %arg6[%c0_23, %c0_24] : memref<1x128xf32, #tpu.memory_space<vmem>>, vector<1x128xf32>
      %27 = vector.broadcast %26 : vector<1x128xf32> to vector<16x128xf32>
      %28 = arith.mulf %25, %27 : vector<16x128xf32>
      %c0_25 = arith.constant 0 : index
      %c0_26 = arith.constant 0 : index
      %29 = vector.load %arg7[%c0_25, %c0_26] : memref<1x128xf32, #tpu.memory_space<vmem>>, vector<1x128xf32>
      %30 = vector.broadcast %29 : vector<1x128xf32> to vector<16x128xf32>
      %31 = arith.addf %28, %30 : vector<16x128xf32>
      %cst_27 = arith.constant 0.000000e+00 : f32
      %32 = vector.broadcast %cst_27 : f32 to vector<16x128xf32>
      %33 = arith.maximumf %31, %32 : vector<16x128xf32>
      %c0_28 = arith.constant 0 : index
      %c0_29 = arith.constant 0 : index
      %c0_30 = arith.constant 0 : index
      %c0_31 = arith.constant 0 : index
      %34 = vector.load %arg8[%c0_28, %c0_29, %c0_30, %c0_31] : memref<1x1x16x128xf32, #tpu.memory_space<vmem>>, vector<1x1x16x128xf32>
      %35 = vector.shape_cast %34 : vector<1x1x16x128xf32> to vector<16x128xf32>
      %36 = vector.shape_cast %33 : vector<16x128xf32> to vector<1x1x16x128xf32>
      tpu.vector_store %arg8[%c0_28, %c0_29, %c0_30, %c0_31], %36 {strides = array<i32>} : memref<1x1x16x128xf32, #tpu.memory_space<vmem>>, vector<1x1x16x128xf32>,
    } else {
    }
    return
  }
  func.func @transform_0(%arg0: i32, %arg1: i32, %arg2: i32, %arg3: i32) -> (i32, i32, i32, i32) {
    %0 = arith.addi %arg1, %arg3 : i32
    %c0_i32 = arith.constant 0 : i32
    %c0_i32_0 = arith.constant 0 : i32
    %c0_i32_1 = arith.constant 0 : i32
    return %arg0, %0, %c0_i32, %c0_i32_0 : i32, i32, i32, i32
  }
  func.func @transform_1(%arg0: i32, %arg1: i32, %arg2: i32, %arg3: i32) -> (i32, i32, i32, i32) {
    %c0_i32 = arith.constant 0 : i32
    %c0_i32_0 = arith.constant 0 : i32
    %c0_i32_1 = arith.constant 0 : i32
    return %arg3, %c0_i32, %c0_i32_0, %arg2 : i32, i32, i32, i32
  }
  func.func @transform_2(%arg0: i32, %arg1: i32, %arg2: i32, %arg3: i32) -> (i32, i32) {
    %c0_i32 = arith.constant 0 : i32
    %c0_i32_0 = arith.constant 0 : i32
    return %c0_i32, %arg2 : i32, i32
  }
  func.func @transform_3(%arg0: i32, %arg1: i32, %arg2: i32, %arg3: i32) -> (i32, i32) {
    %c0_i32 = arith.constant 0 : i32
    %c0_i32_0 = arith.constant 0 : i32
    return %c0_i32, %arg2 : i32, i32
  }
  func.func @transform_4(%arg0: i32, %arg1: i32, %arg2: i32, %arg3: i32) -> (i32, i32, i32, i32) {
    %c0_i32 = arith.constant 0 : i32
    %c0_i32_0 = arith.constant 0 : i32
    return %arg0, %arg1, %c0_i32, %arg2 : i32, i32, i32, i32
  }
}

</mosaic_0001>

<llo_original>
// kernel: inception_a_forward.10
$region0: #{inception_a_forward.10}
  #allocation0 [shape = 'u32[]', space=smem, size = 0x4, offset = 0x4, fixed_abs, tag = 'smem constant byte address 0x4 - core index']
  #allocation1 [shape = 'u32[144,128]{1,0:T(1,128)}', space=vmem, size = 0x12000, scoped, tag = 'internal scratch']
  %s0 = inlined_call_operand.vmem [shape: bf16[512,4], index: 0, kind: input, shape index: {}]
  %s1 = inlined_call_operand.vmem [shape: bf16[4,128], index: 1, kind: input, shape index: {}]
  %s2 = inlined_call_operand.vmem [shape: f32[1,128], index: 2, kind: input, shape index: {}]
  %s3 = inlined_call_operand.vmem [shape: f32[1,128], index: 3, kind: input, shape index: {}]
  %s4 = inlined_call_operand.vmem [shape: f32[512,128], index: 4, kind: output, shape index: {}]
  %s5 = sld [smem:[#allocation0]]
  $region49: #{inception_a_forward.10} parent=0
    _
  %s7 = ssub.s32 1, %s5
  %s8 = scalar_select 0, %s7, %s5
  loop: start=0, step=1, limit=4
  $region2: #{inception_a_forward.10} parent=0 // loop_pre_header
    _
  $region3: #{inception_a_forward.10} parent=0 // loop_header
    %s10 = sphi 0, %s14
    %p11 = scmp.ge.s32.totalorder %s10, 4
    %s17 = sphi 0, %s29
    %s18 = sphi 0, %s25
    %s19 = sphi 0, %s17
    %s20 = sphi 0, %s18
    %s21 = sphi 0, %s19
    %s22 = sphi 0, %s20
    %s32 = sphi 0, %s34
    %s35 = sphi 0, %s32
    %s36 = sphi 0, %s35
    %s52 = sphi 0, %s36
    %s58 = sphi 0, %s60
    %s61 = sphi 0, %s58
    %s62 = sphi 0, %s61
    %s78 = sphi 0, %s62
    %s84 = sphi 0, %s86
    %s87 = sphi 0, %s84
    %s88 = sphi 0, %s87
    %s104 = sphi 0, %s88
    %s110 = sphi 0, %s112
    %s113 = sphi 0, %s110
    %s114 = sphi 0, %s113
    %s130 = sphi 0, %s114
    %s138 = sphi 0, %s140
    %s141 = sphi 0, %s138
    %s142 = sphi 0, %s141
    %s158 = sphi 0, %s142
  $region4: #{inception_a_forward.10} parent=0 // loop_header_branch
    %13 = sbr.rel (%p11) target = $region8
  $region5: #{inception_a_forward.10} parent=0 // loop_body
    %s15 = ssub.s32 %s10, 1
    %s16 = ssub.s32 %s10, 2
    %s23 = sadd.s32 1, %s18
    %p24 = scmp.ge.s32.totalorder %s23, 1
    %s25 = scalar_select %p24, 0, %s23
    %s26 = sadd.s32 1, %s17
    %s27 = scalar_select %p24, %s26, %s17
    %p28 = scmp.ge.s32.totalorder %s27, 2
    %s29 = scalar_select %p28, 0, %s27
    %s30 = ssub.s32 %s17, %s29
    %p31 = scmp.eq.s32.totalorder %s30, 0
    %s33 = sadd.s32 %s32, 1
    %s34 = scalar_select %p31, %s32, %s33
    %p37 = pneg %p31
    %p38 = scmp.eq.s32.totalorder %s10, 1
    %p39 = por %p37, %p38
    %p40 = scmp.ne.s32.totalorder %s32, %s35
    %p41 = scmp.eq.s32.totalorder %s10, 0
    %p42 = por %p40, %p41
    %p43 = scmp.ne.s32.totalorder %s32, %s35
    %p44 = scmp.eq.s32.totalorder %s15, 1
    %p45 = por %p43, %p44
    %p46 = scmp.ne.s32.totalorder %s35, %s36
    %p47 = scmp.eq.s32.totalorder %s15, 0
    %p48 = por %p46, %p47
    %p49 = scmp.ne.s32.totalorder %s35, %s36
    %p50 = scmp.eq.s32.totalorder %s16, 1
    %p51 = por %p49, %p50
    %p53 = scmp.ne.s32.totalorder %s36, %s52
    %p54 = scmp.eq.s32.totalorder %s16, 0
    %p55 = por %p53, %p54
    %s56 = ssub.s32 %s18, %s25
    %p57 = scmp.eq.s32.totalorder %s56, 0
    %s59 = sadd.s32 %s58, 1
    %s60 = scalar_select %p57, %s58, %s59
    %p63 = pneg %p57
    %p64 = scmp.eq.s32.totalorder %s10, 1
    %p65 = por %p63, %p64
    %p66 = scmp.ne.s32.totalorder %s58, %s61
    %p67 = scmp.eq.s32.totalorder %s10, 0
    %p68 = por %p66, %p67
    %p69 = scmp.ne.s32.totalorder %s58, %s61
    %p70 = scmp.eq.s32.totalorder %s15, 1
    %p71 = por %p69, %p70
    %p72 = scmp.ne.s32.totalorder %s61, %s62
    %p73 = scmp.eq.s32.totalorder %s15, 0
    %p74 = por %p72, %p73
    %p75 = scmp.ne.s32.totalorder %s61, %s62
    %p76 = scmp.eq.s32.totalorder %s16, 1
    %p77 = por %p75, %p76
    %p79 = scmp.ne.s32.totalorder %s62, %s78
    %p80 = scmp.eq.s32.totalorder %s16, 0
    %p81 = por %p79, %p80
    %s82 = ssub.s32 %s18, %s25
    %p83 = scmp.eq.s32.totalorder %s82, 0
    %s85 = sadd.s32 %s84, 1
    %s86 = scalar_select %p83, %s84, %s85
    %p89 = pneg %p83
    %p90 = scmp.eq.s32.totalorder %s10, 1
    %p91 = por %p89, %p90
    %p92 = scmp.ne.s32.totalorder %s84, %s87
    %p93 = scmp.eq.s32.totalorder %s10, 0
    %p94 = por %p92, %p93
    %p95 = scmp.ne.s32.totalorder %s84, %s87
    %p96 = scmp.eq.s32.totalorder %s15, 1
    %p97 = por %p95, %p96
    %p98 = scmp.ne.s32.totalorder %s87, %s88
    %p99 = scmp.eq.s32.totalorder %s15, 0
    %p100 = por %p98, %p99
    %p101 = scmp.ne.s32.totalorder %s87, %s88
    %p102 = scmp.eq.s32.totalorder %s16, 1
    %p103 = por %p101, %p102
    %p105 = scmp.ne.s32.totalorder %s88, %s104
    %p106 = scmp.eq.s32.totalorder %s16, 0
    %p107 = por %p105, %p106
    %s108 = ssub.s32 %s18, %s25
    %p109 = scmp.eq.s32.totalorder %s108, 0
    %s111 = sadd.s32 %s110, 1
    %s112 = scalar_select %p109, %s110, %s111
    %p115 = pneg %p109
    %p116 = scmp.eq.s32.totalorder %s10, 1
    %p117 = por %p115, %p116
    %p118 = scmp.ne.s32.totalorder %s110, %s113
    %p119 = scmp.eq.s32.totalorder %s10, 0
    %p120 = por %p118, %p119
    %p121 = scmp.ne.s32.totalorder %s110, %s113
    %p122 = scmp.eq.s32.totalorder %s15, 1
    %p123 = por %p121, %p122
    %p124 = scmp.ne.s32.totalorder %s113, %s114
    %p125 = scmp.eq.s32.totalorder %s15, 0
    %p126 = por %p124, %p125
    %p127 = scmp.ne.s32.totalorder %s113, %s114
    %p128 = scmp.eq.s32.totalorder %s16, 1
    %p129 = por %p127, %p128
    %p131 = scmp.ne.s32.totalorder %s114, %s130
    %p132 = scmp.eq.s32.totalorder %s16, 0
    %p133 = por %p131, %p132
    %s134 = ssub.s32 %s17, %s29
    %s135 = ssub.s32 %s18, %s25
    %s136 = sor.u32 %s134, %s135
    %p137 = scmp.eq.s32.totalorder %s136, 0
    %s139 = sadd.s32 %s138, 1
    %s140 = scalar_select %p137, %s138, %s139
    %p143 = pneg %p137
    %p144 = scmp.eq.s32.totalorder %s10, 1
    %p145 = por %p143, %p144
    %p146 = scmp.ne.s32.totalorder %s138, %s141
    %p147 = scmp.eq.s32.totalorder %s10, 0
    %p148 = por %p146, %p147
    %p149 = scmp.ne.s32.totalorder %s138, %s141
    %p150 = scmp.eq.s32.totalorder %s15, 1
    %p151 = por %p149, %p150
    %p152 = scmp.ne.s32.totalorder %s141, %s142
    %p153 = scmp.eq.s32.totalorder %s15, 0
    %p154 = por %p152, %p153
    %p155 = scmp.ne.s32.totalorder %s141, %s142
    %p156 = scmp.eq.s32.totalorder %s16, 1
    %p157 = por %p155, %p156
    %p159 = scmp.ne.s32.totalorder %s142, %s158
    %p160 = scmp.eq.s32.totalorder %s16, 0
    %p161 = por %p159, %p160
    %p162 = scmp.le.s32.totalorder 1, %s10
    %p163 = scmp.lt.s32.totalorder %s10, 3
    %p164 = pnand %p162, %p163
    %p165 = pneg %p164
    // Predicated region
    $region9: #{inception_a_forward.10} parent=5 // pred_check
      _
    $region10: #{inception_a_forward.10} parent=5 // pred_check_branch
      %167 = sbr.rel (%p164) target = $region12
    $region11: #{inception_a_forward.10} parent=5 // pred_region
      %s168 = ssub.s32 %s10, 1
      // Predicated region
      $region13: #{inception_a_forward.10} parent=11 // pred_check
        %p169 = pneg %p74
      $region14: #{inception_a_forward.10} parent=11 // pred_check_branch
        %171 = sbr.rel (%p169) target = $region16
      $region15: #{inception_a_forward.10} parent=11 // pred_region
        %p172 = scmp.lt.s32.totalorder %s20, 0
        %s173 = scalar_select %p172, %s20, 0
        %s174 = smul.addr %s173, 2
        %s175 = scalar_lea.vmem %s1, %s174
      $region16: #{inception_a_forward.10} parent=11 // pred_fallthru
        _
      // Predicated region
      $region17: #{inception_a_forward.10} parent=11 // pred_check
        %p176 = pneg %p100
      $region18: #{inception_a_forward.10} parent=11 // pred_check_branch
        %178 = sbr.rel (%p176) target = $region20
      $region19: #{inception_a_forward.10} parent=11 // pred_region
        %p179 = scmp.lt.s32.totalorder %s20, 0
        %s180 = scalar_select %p179, %s20, 0
        %s181 = scalar_lea.vmem %s2, %s180
      $region20: #{inception_a_forward.10} parent=11 // pred_fallthru
        _
      // Predicated region
      $region21: #{inception_a_forward.10} parent=11 // pred_check
        %p182 = pneg %p126
      $region22: #{inception_a_forward.10} parent=11 // pred_check_branch
        %184 = sbr.rel (%p182) target = $region24
      $region23: #{inception_a_forward.10} parent=11 // pred_region
        %p185 = scmp.lt.s32.totalorder %s20, 0
        %s186 = scalar_select %p185, %s20, 0
        %s187 = scalar_lea.vmem %s3, %s186
      $region24: #{inception_a_forward.10} parent=11 // pred_fallthru
        _
    $region12: #{inception_a_forward.10} parent=5 // pred_fallthru
      _
    %p188 = scmp.lt.s32.totalorder %s10, 2
    // Predicated region
    $region25: #{inception_a_forward.10} parent=5 // pred_check
      %p189 = pneg %p188
    $region26: #{inception_a_forward.10} parent=5 // pred_check_branch
      %191 = sbr.rel (%p189) target = $region28
    $region27: #{inception_a_forward.10} parent=5 // pred_region
      // Predicated region
      $region29: #{inception_a_forward.10} parent=27 // pred_check
        %p192 = pneg %p42
      $region30: #{inception_a_forward.10} parent=27 // pred_check_branch
        %194 = sbr.rel (%p192) target = $region32
      $region31: #{inception_a_forward.10} parent=27 // pred_region
        %s195 = smul.u32 32, %s17
        %p196 = scmp.lt.s32.totalorder %s195, 63
        %s197 = scalar_select %p196, %s195, 63
        %s198 = smul.addr %s197, 4
        %s199 = scalar_lea.vmem %s0, %s198
        %s200 = smul.u32 32, %s17
      $region32: #{inception_a_forward.10} parent=27 // pred_fallthru
        _
    $region28: #{inception_a_forward.10} parent=5 // pred_fallthru
      _
    %p201 = scmp.le.s32.totalorder 1, %s10
    %p202 = scmp.lt.s32.totalorder %s10, 3
    %p203 = pnand %p201, %p202
    %p204 = pneg %p203
    // Predicated region
    $region33: #{inception_a_forward.10} parent=5 // pred_check
      _
    $region34: #{inception_a_forward.10} parent=5 // pred_check_branch
      %206 = sbr.rel (%p203) target = $region36
    $region35: #{inception_a_forward.10} parent=5 // pred_region
      %s207 = ssub.s32 %s10, 1
      %s208 = smul.u32 32, %s19
      %p209 = scmp.lt.s32.totalorder %s208, 63
      %s210 = scalar_select %p209, %s208, 63
      %s211 = smul.addr %s210, 4
      %s212 = scalar_lea.vmem %s0, %s211
      %p213 = pneg %p48
      %p214 = pneg %p45
      %p215 = scmp.lt.s32.totalorder %s20, 0
      %s216 = scalar_select %p215, %s20, 0
      %s217 = smul.addr %s216, 2
      %s218 = scalar_lea.vmem %s1, %s217
      %p219 = pneg %p74
      %p220 = pneg %p71
      %p221 = scmp.lt.s32.totalorder %s20, 0
      %s222 = scalar_select %p221, %s20, 0
      %s223 = scalar_lea.vmem %s2, %s222
      %p224 = pneg %p100
      %p225 = pneg %p97
      %p226 = scmp.lt.s32.totalorder %s20, 0
      %s227 = scalar_select %p226, %s20, 0
      %s228 = scalar_lea.vmem %s3, %s227
      %p229 = pneg %p126
      %p230 = pneg %p123
      %p231 = pneg %p154
      %p232 = pneg %p151
      %s233 = smul.u32 32, %s19
      %p234 = scmp.lt.s32.totalorder %s233, 63
      %s235 = scalar_select %p234, %s233, 63
      %p236 = scmp.lt.s32.totalorder %s20, 0
      %s237 = scalar_select %p236, %s20, 0
      %s238 = sadd.s32 %s237, %s235
      %s239 = smul.addr %s238, 8
      %s240 = scalar_lea.vmem %s4, %s239
      %s241 = smul.u32 32, %s19
      %p242 = scmp.lt.s32.totalorder %s241, 63
      %s243 = scalar_select %p242, %s241, 63
      %s244 = smul.addr %s243, 4
      %s245 = scalar_lea.vmem %s0, %s244
      %s246 = smul.u32 32, %s19
      %p247 = scmp.lt.s32.totalorder %s20, 0
      %s248 = scalar_select %p247, %s20, 0
      %s249 = smul.addr %s248, 2
      %s250 = scalar_lea.vmem %s1, %s249
      %p251 = scmp.lt.s32.totalorder %s20, 0
      %s252 = scalar_select %p251, %s20, 0
      %s253 = scalar_lea.vmem %s2, %s252
      %p254 = scmp.lt.s32.totalorder %s20, 0
      %s255 = scalar_select %p254, %s20, 0
      %s256 = scalar_lea.vmem %s3, %s255
      %s257 = smul.u32 32, %s19
      %p258 = scmp.lt.s32.totalorder %s257, 63
      %s259 = scalar_select %p258, %s257, 63
      %p260 = scmp.lt.s32.totalorder %s20, 0
      %s261 = scalar_select %p260, %s20, 0
      %s262 = sadd.s32 %s261, %s259
      %s263 = smul.addr %s262, 8
      %s264 = scalar_lea.vmem %s4, %s263
      %s265 = smul.u32 32, %s19
      %v267 = vld [vmem:[%s245] sm:$0xf]
      %v268 = vld [vmem:[%s245 + $0x4] sm:$0xf]
      %v269 = vld [vmem:[%s245 + $0x8] sm:$0xf]
      %v270 = vld [vmem:[%s245 + $0xc] sm:$0xf]
      %v271 = vld [vmem:[%s245 + $0x10] sm:$0xf]
      %v272 = vld [vmem:[%s245 + $0x14] sm:$0xf]
      %v273 = vld [vmem:[%s245 + $0x18] sm:$0xf]
      %v274 = vld [vmem:[%s245 + $0x1c] sm:$0xf]
      %v275 = vld [vmem:[%s245 + $0x20] sm:$0xf]
      %v276 = vld [vmem:[%s245 + $0x24] sm:$0xf]
      %v277 = vld [vmem:[%s245 + $0x28] sm:$0xf]
      %v278 = vld [vmem:[%s245 + $0x2c] sm:$0xf]
      %v279 = vld [vmem:[%s245 + $0x30] sm:$0xf]
      %v280 = vld [vmem:[%s245 + $0x34] sm:$0xf]
      %v281 = vld [vmem:[%s245 + $0x38] sm:$0xf]
      %v282 = vld [vmem:[%s245 + $0x3c] sm:$0xf]
      %v283 = vld [vmem:[%s245 + $0x40] sm:$0xf]
      %v284 = vld [vmem:[%s245 + $0x44] sm:$0xf]
      %v285 = vld [vmem:[%s245 + $0x48] sm:$0xf]
      %v286 = vld [vmem:[%s245 + $0x4c] sm:$0xf]
      %v287 = vld [vmem:[%s245 + $0x50] sm:$0xf]
      %v288 = vld [vmem:[%s245 + $0x54] sm:$0xf]
      %v289 = vld [vmem:[%s245 + $0x58] sm:$0xf]
      %v290 = vld [vmem:[%s245 + $0x5c] sm:$0xf]
      %v291 = vld [vmem:[%s245 + $0x60] sm:$0xf]
      %v292 = vld [vmem:[%s245 + $0x64] sm:$0xf]
      %v293 = vld [vmem:[%s245 + $0x68] sm:$0xf]
      %v294 = vld [vmem:[%s245 + $0x6c] sm:$0xf]
      %v295 = vld [vmem:[%s245 + $0x70] sm:$0xf]
      %v296 = vld [vmem:[%s245 + $0x74] sm:$0xf]
      %v297 = vld [vmem:[%s245 + $0x78] sm:$0xf]
      %v298 = vld [vmem:[%s245 + $0x7c] sm:$0xf]
      %v299 = vld [vmem:[%s250] sm:$0x3]
      %v332 = vunpack.c.l.b16 %v267
      %v333 = vunpack.c.l.b16 %v268
      %v334 = vunpack.c.l.b16 %v269
      %v335 = vunpack.c.l.b16 %v270
      %v336 = vunpack.c.l.b16 %v271
      %v337 = vunpack.c.l.b16 %v272
      %v338 = vunpack.c.l.b16 %v273
      %v339 = vunpack.c.l.b16 %v274
      %v340 = vunpack.c.l.b16 %v275
      %v341 = vunpack.c.l.b16 %v276
      %v342 = vunpack.c.l.b16 %v277
      %v343 = vunpack.c.l.b16 %v278
      %v344 = vunpack.c.l.b16 %v279
      %v345 = vunpack.c.l.b16 %v280
      %v346 = vunpack.c.l.b16 %v281
      %v347 = vunpack.c.l.b16 %v282
      %v348 = vunpack.c.l.b16 %v283
      %v349 = vunpack.c.l.b16 %v284
      %v350 = vunpack.c.l.b16 %v285
      %v351 = vunpack.c.l.b16 %v286
      %v352 = vunpack.c.l.b16 %v287
      %v353 = vunpack.c.l.b16 %v288
      %v354 = vunpack.c.l.b16 %v289
      %v355 = vunpack.c.l.b16 %v290
      %v356 = vunpack.c.l.b16 %v291
      %v357 = vunpack.c.l.b16 %v292
      %v358 = vunpack.c.l.b16 %v293
      %v359 = vunpack.c.l.b16 %v294
      %v360 = vunpack.c.l.b16 %v295
      %v361 = vunpack.c.l.b16 %v296
      %v362 = vunpack.c.l.b16 %v297
      %v363 = vunpack.c.l.b16 %v298
      %v364 = vpack.c.b16 %v333, %v332
      %v365 = vpack.c.b16 %v335, %v334
      %v366 = vpack.c.b16 %v337, %v336
      %v367 = vpack.c.b16 %v339, %v338
      %v368 = vpack.c.b16 %v341, %v340
      %v369 = vpack.c.b16 %v343, %v342
      %v370 = vpack.c.b16 %v345, %v344
      %v371 = vpack.c.b16 %v347, %v346
      %v372 = vpack.c.b16 %v349, %v348
      %v373 = vpack.c.b16 %v351, %v350
      %v374 = vpack.c.b16 %v353, %v352
      %v375 = vpack.c.b16 %v355, %v354
      %v376 = vpack.c.b16 %v357, %v356
      %v377 = vpack.c.b16 %v359, %v358
      %v378 = vpack.c.b16 %v361, %v360
      %v379 = vpack.c.b16 %v363, %v362
      %vm380 = vcmask 31744
      %v382 = vsel %vm380, %v364, 0
      %v385 = vsel %vm380, %v365, 0
      %v388 = vsel %vm380, %v366, 0
      %v391 = vsel %vm380, %v367, 0
      %v394 = vsel %vm380, %v368, 0
      %v397 = vsel %vm380, %v369, 0
      %v400 = vsel %vm380, %v370, 0
      %v403 = vsel %vm380, %v371, 0
      %v406 = vsel %vm380, %v372, 0
      %v409 = vsel %vm380, %v373, 0
      %v412 = vsel %vm380, %v374, 0
      %v415 = vsel %vm380, %v375, 0
      %v418 = vsel %vm380, %v376, 0
      %v421 = vsel %vm380, %v377, 0
      %v424 = vsel %vm380, %v378, 0
      %v427 = vsel %vm380, %v379, 0
      %vm429 = vcmask 1041408
      %v431 = vsel %vm429, %v299, 0
      %433 = vmatprep.subr.bf16.mxu0 0
      %434 = vmatpush1.bf16.msra.mxu0 0
      %435 = vmatprep.subr.bf16.mxu0 0
      %436 = vmatpush1.bf16.msra.mxu0 0
      %437 = vmatprep.subr.bf16.mxu0 0
      %438 = vmatpush1.bf16.msra.mxu0 0
      %439 = vmatprep.subr.bf16.mxu0 0
      %440 = vmatpush1.bf16.msra.mxu0 0
      %441 = vmatprep.subr.bf16.mxu0 0
      %442 = vmatpush1.bf16.msra.mxu0 0
      %443 = vmatprep.subr.bf16.mxu0 0
      %444 = vmatpush1.bf16.msra.mxu0 0
      %445 = vmatprep.subr.bf16.mxu0 0
      %446 = vmatpush1.bf16.msra.mxu0 0
      %447 = vmatprep.subr.bf16.mxu0 0
      %448 = vmatpush1.bf16.msra.mxu0 %v431
      %449 = vmatprep.subr.bf16.mxu0 0
      %450 = vmatpush2.bf16.msra.mxu0 0
      %451 = vmatprep.subr.bf16.mxu0 0
      %452 = vmatpush2.bf16.msra.mxu0 0
      %453 = vmatprep.subr.bf16.mxu0 0
      %454 = vmatpush2.bf16.msra.mxu0 0
      %455 = vmatprep.subr.bf16.mxu0 0
      %456 = vmatpush2.bf16.msra.mxu0 0
      %457 = vmatprep.subr.bf16.mxu0 0
      %458 = vmatpush2.bf16.msra.mxu0 0
      %459 = vmatprep.subr.bf16.mxu0 0
      %460 = vmatpush2.bf16.msra.mxu0 0
      %461 = vmatprep.subr.bf16.mxu0 0
      %462 = vmatpush2.bf16.msra.mxu0 0
      %463 = vmatprep.subr.bf16.mxu0 0
      %464 = vmatpush2.bf16.msra.mxu0 0
      %465 = vmatprep.mubr.bf16.mxu0 0
      %466 = vmatmul.mubr.bf16.gmra.mxu0 %v382
      %v467 = vpop.f32.mrf.mxu0
      %v468 = vadd.f32 0.0, %v467
      %v469 = vpop.f32.mrf.mxu0
      %v470 = vpop.f32.mrf.mxu0
      %v471 = vadd.f32 0.0, %v470
      %v472 = vpop.f32.mrf.mxu0
      %473 = vmatprep.mubr.bf16.mxu0 0
      %474 = vmatmul.mubr.bf16.gmra.mxu0 %v385
      %v475 = vpop.f32.mrf.mxu0
      %v476 = vadd.f32 0.0, %v475
      %v477 = vpop.f32.mrf.mxu0
      %v478 = vpop.f32.mrf.mxu0
      %v479 = vadd.f32 0.0, %v478
      %v480 = vpop.f32.mrf.mxu0
      %481 = vmatprep.mubr.bf16.mxu0 0
      %482 = vmatmul.mubr.bf16.gmra.mxu0 %v388
      %v483 = vpop.f32.mrf.mxu0
      %v484 = vadd.f32 0.0, %v483
      %v485 = vpop.f32.mrf.mxu0
      %v486 = vpop.f32.mrf.mxu0
      %v487 = vadd.f32 0.0, %v486
      %v488 = vpop.f32.mrf.mxu0
      %489 = vmatprep.mubr.bf16.mxu0 0
      %490 = vmatmul.mubr.bf16.gmra.mxu0 %v391
      %v491 = vpop.f32.mrf.mxu0
      %v492 = vadd.f32 0.0, %v491
      %v493 = vpop.f32.mrf.mxu0
      %v494 = vpop.f32.mrf.mxu0
      %v495 = vadd.f32 0.0, %v494
      %v496 = vpop.f32.mrf.mxu0
      %497 = vmatprep.mubr.bf16.mxu0 0
      %498 = vmatmul.mubr.bf16.gmra.mxu0 %v394
      %v499 = vpop.f32.mrf.mxu0
      %v500 = vadd.f32 0.0, %v499
      %v501 = vpop.f32.mrf.mxu0
      %v502 = vpop.f32.mrf.mxu0
      %v503 = vadd.f32 0.0, %v502
      %v504 = vpop.f32.mrf.mxu0
      %505 = vmatprep.mubr.bf16.mxu0 0
      %506 = vmatmul.mubr.bf16.gmra.mxu0 %v397
      %v507 = vpop.f32.mrf.mxu0
      %v508 = vadd.f32 0.0, %v507
      %v509 = vpop.f32.mrf.mxu0
      %v510 = vpop.f32.mrf.mxu0
      %v511 = vadd.f32 0.0, %v510
      %v512 = vpop.f32.mrf.mxu0
      %513 = vmatprep.mubr.bf16.mxu0 0
      %514 = vmatmul.mubr.bf16.gmra.mxu0 %v400
      %v515 = vpop.f32.mrf.mxu0
      %v516 = vadd.f32 0.0, %v515
      %v517 = vpop.f32.mrf.mxu0
      %v518 = vpop.f32.mrf.mxu0
      %v519 = vadd.f32 0.0, %v518
      %v520 = vpop.f32.mrf.mxu0
      %521 = vmatprep.mubr.bf16.mxu0 0
      %522 = vmatmul.mubr.bf16.gmra.mxu0 %v403
      %v523 = vpop.f32.mrf.mxu0
      %v524 = vadd.f32 0.0, %v523
      %v525 = vpop.f32.mrf.mxu0
      %v526 = vpop.f32.mrf.mxu0
      %v527 = vadd.f32 0.0, %v526
      %v528 = vpop.f32.mrf.mxu0
      %529 = vmatprep.mubr.bf16.mxu0 0
      %530 = vmatmul.mubr.bf16.gmra.mxu0 %v406
      %v531 = vpop.f32.mrf.mxu0
      %v532 = vadd.f32 0.0, %v531
      %v533 = vpop.f32.mrf.mxu0
      %v534 = vpop.f32.mrf.mxu0
      %v535 = vadd.f32 0.0, %v534
      %v536 = vpop.f32.mrf.mxu0
      %537 = vmatprep.mubr.bf16.mxu0 0
      %538 = vmatmul.mubr.bf16.gmra.mxu0 %v409
      %v539 = vpop.f32.mrf.mxu0
      %v540 = vadd.f32 0.0, %v539
      %v541 = vpop.f32.mrf.mxu0
      %v542 = vpop.f32.mrf.mxu0
      %v543 = vadd.f32 0.0, %v542
      %v544 = vpop.f32.mrf.mxu0
      %545 = vmatprep.mubr.bf16.mxu0 0
      %546 = vmatmul.mubr.bf16.gmra.mxu0 %v412
      %v547 = vpop.f32.mrf.mxu0
      %v548 = vadd.f32 0.0, %v547
      %v549 = vpop.f32.mrf.mxu0
      %v550 = vpop.f32.mrf.mxu0
      %v551 = vadd.f32 0.0, %v550
      %v552 = vpop.f32.mrf.mxu0
      %553 = vmatprep.mubr.bf16.mxu0 0
      %554 = vmatmul.mubr.bf16.gmra.mxu0 %v415
      %v555 = vpop.f32.mrf.mxu0
      %v556 = vadd.f32 0.0, %v555
      %v557 = vpop.f32.mrf.mxu0
      %v558 = vpop.f32.mrf.mxu0
      %v559 = vadd.f32 0.0, %v558
      %v560 = vpop.f32.mrf.mxu0
      %561 = vmatprep.mubr.bf16.mxu0 0
      %562 = vmatmul.mubr.bf16.gmra.mxu0 %v418
      %v563 = vpop.f32.mrf.mxu0
      %v564 = vadd.f32 0.0, %v563
      %v565 = vpop.f32.mrf.mxu0
      %v566 = vpop.f32.mrf.mxu0
      %v567 = vadd.f32 0.0, %v566
      %v568 = vpop.f32.mrf.mxu0
      %569 = vmatprep.mubr.bf16.mxu0 0
      %570 = vmatmul.mubr.bf16.gmra.mxu0 %v421
      %v571 = vpop.f32.mrf.mxu0
      %v572 = vadd.f32 0.0, %v571
      %v573 = vpop.f32.mrf.mxu0
      %v574 = vpop.f32.mrf.mxu0
      %v575 = vadd.f32 0.0, %v574
      %v576 = vpop.f32.mrf.mxu0
      %577 = vmatprep.mubr.bf16.mxu0 0
      %578 = vmatmul.mubr.bf16.gmra.mxu0 %v424
      %v579 = vpop.f32.mrf.mxu0
      %v580 = vadd.f32 0.0, %v579
      %v581 = vpop.f32.mrf.mxu0
      %v582 = vpop.f32.mrf.mxu0
      %v583 = vadd.f32 0.0, %v582
      %v584 = vpop.f32.mrf.mxu0
      %585 = vmatprep.mubr.bf16.mxu0 0
      %586 = vmatmul.mubr.bf16.gmra.mxu0 %v427
      %v587 = vpop.f32.mrf.mxu0
      %v588 = vadd.f32 0.0, %v587
      %v589 = vpop.f32.mrf.mxu0
      %v590 = vpop.f32.mrf.mxu0
      %v591 = vadd.f32 0.0, %v590
      %v592 = vpop.f32.mrf.mxu0
      %593 = vdwg.mxu0
      %v594 = vld [vmem:[%s253] sm:$0x1]
      %v596 = vlaneseq
      %v597 = vshrl.u32 %v596, 7
      %v598 = vsub.s32 0, %v597
      %v599 = vrot.slane %v594, %v598
      %v601 = vmul.f32 %v468, %v599
      %v602 = vmul.f32 %v471, %v599
      %v603 = vmul.f32 %v476, %v599
      %v604 = vmul.f32 %v479, %v599
      %v605 = vmul.f32 %v484, %v599
      %v606 = vmul.f32 %v487, %v599
      %v607 = vmul.f32 %v492, %v599
      %v608 = vmul.f32 %v495, %v599
      %v609 = vmul.f32 %v500, %v599
      %v610 = vmul.f32 %v503, %v599
      %v611 = vmul.f32 %v508, %v599
      %v612 = vmul.f32 %v511, %v599
      %v613 = vmul.f32 %v516, %v599
      %v614 = vmul.f32 %v519, %v599
      %v615 = vmul.f32 %v524, %v599
      %v616 = vmul.f32 %v527, %v599
      %v617 = vmul.f32 %v532, %v599
      %v618 = vmul.f32 %v535, %v599
      %v619 = vmul.f32 %v540, %v599
      %v620 = vmul.f32 %v543, %v599
      %v621 = vmul.f32 %v548, %v599
      %v622 = vmul.f32 %v551, %v599
      %v623 = vmul.f32 %v556, %v599
      %v624 = vmul.f32 %v559, %v599
      %v625 = vmul.f32 %v564, %v599
      %v626 = vmul.f32 %v567, %v599
      %v627 = vmul.f32 %v572, %v599
      %v628 = vmul.f32 %v575, %v599
      %v629 = vmul.f32 %v580, %v599
      %v630 = vmul.f32 %v583, %v599
      %v631 = vmul.f32 %v588, %v599
      %v632 = vmul.f32 %v591, %v599
      %v633 = vld [vmem:[%s256] sm:$0x1]
      %v635 = vlaneseq
      %v636 = vshrl.u32 %v635, 7
      %v637 = vsub.s32 0, %v636
      %v638 = vrot.slane %v633, %v637
      %v640 = vadd.f32 %v601, %v638
      %v641 = vadd.f32 %v602, %v638
      %v642 = vadd.f32 %v603, %v638
      %v643 = vadd.f32 %v604, %v638
      %v644 = vadd.f32 %v605, %v638
      %v645 = vadd.f32 %v606, %v638
      %v646 = vadd.f32 %v607, %v638
      %v647 = vadd.f32 %v608, %v638
      %v648 = vadd.f32 %v609, %v638
      %v649 = vadd.f32 %v610, %v638
      %v650 = vadd.f32 %v611, %v638
      %v651 = vadd.f32 %v612, %v638
      %v652 = vadd.f32 %v613, %v638
      %v653 = vadd.f32 %v614, %v638
      %v654 = vadd.f32 %v615, %v638
      %v655 = vadd.f32 %v616, %v638
      %v656 = vadd.f32 %v617, %v638
      %v657 = vadd.f32 %v618, %v638
      %v658 = vadd.f32 %v619, %v638
      %v659 = vadd.f32 %v620, %v638
      %v660 = vadd.f32 %v621, %v638
      %v661 = vadd.f32 %v622, %v638
      %v662 = vadd.f32 %v623, %v638
      %v663 = vadd.f32 %v624, %v638
      %v664 = vadd.f32 %v625, %v638
      %v665 = vadd.f32 %v626, %v638
      %v666 = vadd.f32 %v627, %v638
      %v667 = vadd.f32 %v628, %v638
      %v668 = vadd.f32 %v629, %v638
      %v669 = vadd.f32 %v630, %v638
      %v670 = vadd.f32 %v631, %v638
      %v671 = vadd.f32 %v632, %v638
      %v672 = vmax.f32 %v640, 0.0
      %v673 = vmax.f32 %v641, 0.0
      %v674 = vmax.f32 %v642, 0.0
      %v675 = vmax.f32 %v643, 0.0
      %v676 = vmax.f32 %v644, 0.0
      %v677 = vmax.f32 %v645, 0.0
      %v678 = vmax.f32 %v646, 0.0
      %v679 = vmax.f32 %v647, 0.0
      %v680 = vmax.f32 %v648, 0.0
      %v681 = vmax.f32 %v649, 0.0
      %v682 = vmax.f32 %v650, 0.0
      %v683 = vmax.f32 %v651, 0.0
      %v684 = vmax.f32 %v652, 0.0
      %v685 = vmax.f32 %v653, 0.0
      %v686 = vmax.f32 %v654, 0.0
      %v687 = vmax.f32 %v655, 0.0
      %v688 = vmax.f32 %v656, 0.0
      %v689 = vmax.f32 %v657, 0.0
      %v690 = vmax.f32 %v658, 0.0
      %v691 = vmax.f32 %v659, 0.0
      %v692 = vmax.f32 %v660, 0.0
      %v693 = vmax.f32 %v661, 0.0
      %v694 = vmax.f32 %v662, 0.0
      %v695 = vmax.f32 %v663, 0.0
      %v696 = vmax.f32 %v664, 0.0
      %v697 = vmax.f32 %v665, 0.0
      %v698 = vmax.f32 %v666, 0.0
      %v699 = vmax.f32 %v667, 0.0
      %v700 = vmax.f32 %v668, 0.0
      %v701 = vmax.f32 %v669, 0.0
      %v702 = vmax.f32 %v670, 0.0
      %v703 = vmax.f32 %v671, 0.0
      %704 = vst [vmem:[%s264] sm:$0xff] %v672
      %705 = vst [vmem:[%s264 + $0x8] sm:$0xff] %v673
      %706 = vst [vmem:[%s264 + $0x10] sm:$0xff] %v674
      %707 = vst [vmem:[%s264 + $0x18] sm:$0xff] %v675
      %708 = vst [vmem:[%s264 + $0x20] sm:$0xff] %v676
      %709 = vst [vmem:[%s264 + $0x28] sm:$0xff] %v677
      %710 = vst [vmem:[%s264 + $0x30] sm:$0xff] %v678
      %711 = vst [vmem:[%s264 + $0x38] sm:$0xff] %v679
      %712 = vst [vmem:[%s264 + $0x40] sm:$0xff] %v680
      %713 = vst [vmem:[%s264 + $0x48] sm:$0xff] %v681
      %714 = vst [vmem:[%s264 + $0x50] sm:$0xff] %v682
      %715 = vst [vmem:[%s264 + $0x58] sm:$0xff] %v683
      %716 = vst [vmem:[%s264 + $0x60] sm:$0xff] %v684
      %717 = vst [vmem:[%s264 + $0x68] sm:$0xff] %v685
      %718 = vst [vmem:[%s264 + $0x70] sm:$0xff] %v686
      %719 = vst [vmem:[%s264 + $0x78] sm:$0xff] %v687
      %720 = vst [vmem:[%s264 + $0x80] sm:$0xff] %v688
      %721 = vst [vmem:[%s264 + $0x88] sm:$0xff] %v689
      %722 = vst [vmem:[%s264 + $0x90] sm:$0xff] %v690
      %723 = vst [vmem:[%s264 + $0x98] sm:$0xff] %v691
      %724 = vst [vmem:[%s264 + $0xa0] sm:$0xff] %v692
      %725 = vst [vmem:[%s264 + $0xa8] sm:$0xff] %v693
      %726 = vst [vmem:[%s264 + $0xb0] sm:$0xff] %v694
      %727 = vst [vmem:[%s264 + $0xb8] sm:$0xff] %v695
      %728 = vst [vmem:[%s264 + $0xc0] sm:$0xff] %v696
      %729 = vst [vmem:[%s264 + $0xc8] sm:$0xff] %v697
      %730 = vst [vmem:[%s264 + $0xd0] sm:$0xff] %v698
      %731 = vst [vmem:[%s264 + $0xd8] sm:$0xff] %v699
      %732 = vst [vmem:[%s264 + $0xe0] sm:$0xff] %v700
      %733 = vst [vmem:[%s264 + $0xe8] sm:$0xff] %v701
      %734 = vst [vmem:[%s264 + $0xf0] sm:$0xff] %v702
      %735 = vst [vmem:[%s264 + $0xf8] sm:$0xff] %v703
      %s736 = smul.u32 32, %s19
      %p737 = scmp.lt.s32.totalorder %s736, 63
      %s738 = scalar_select %p737, %s736, 63
      %p739 = scmp.lt.s32.totalorder %s20, 0
      %s740 = scalar_select %p739, %s20, 0
      %s741 = sadd.s32 %s740, %s738
      %s742 = smul.addr %s741, 8
      %s743 = scalar_lea.vmem %s4, %s742
      // Predicated region
      $region37: #{inception_a_forward.10} parent=35 // pred_check
        %p744 = pneg %p151
      $region38: #{inception_a_forward.10} parent=35 // pred_check_branch
        %746 = sbr.rel (%p744) target = $region40
      $region39: #{inception_a_forward.10} parent=35 // pred_region
        %s747 = smul.u32 32, %s19
      $region40: #{inception_a_forward.10} parent=35 // pred_fallthru
        _
    $region36: #{inception_a_forward.10} parent=5 // pred_fallthru
      _
    %p748 = scmp.le.s32.totalorder 2, %s10
    // Predicated region
    $region41: #{inception_a_forward.10} parent=5 // pred_check
      %p749 = pneg %p748
    $region42: #{inception_a_forward.10} parent=5 // pred_check_branch
      %751 = sbr.rel (%p749) target = $region44
    $region43: #{inception_a_forward.10} parent=5 // pred_region
      %s752 = ssub.s32 %s10, 2
      // Predicated region
      $region45: #{inception_a_forward.10} parent=43 // pred_check
        %p753 = pneg %p157
      $region46: #{inception_a_forward.10} parent=43 // pred_check_branch
        %755 = sbr.rel (%p753) target = $region48
      $region47: #{inception_a_forward.10} parent=43 // pred_region
        %s756 = smul.u32 32, %s21
        %p757 = scmp.lt.s32.totalorder %s756, 63
        %s758 = scalar_select %p757, %s756, 63
        %p759 = scmp.lt.s32.totalorder %s22, 0
        %s760 = scalar_select %p759, %s22, 0
        %s761 = sadd.s32 %s760, %s758
        %s762 = smul.addr %s761, 8
        %s763 = scalar_lea.vmem %s4, %s762
      $region48: #{inception_a_forward.10} parent=43 // pred_fallthru
        _
    $region44: #{inception_a_forward.10} parent=5 // pred_fallthru
      _
  $region6: #{inception_a_forward.10} parent=0 // loop_footer
    %s14 = sadd.s32 1, %s10
  $region7: #{inception_a_forward.10} parent=0 // loop_footer_branch
    %9 = sbr.rel target = $region3
  $region8: #{inception_a_forward.10} parent=0 // loop_exit
    _

// kernel: inception_a_forward.11
$region0: #{inception_a_forward.11}
  #allocation0 [shape = 'u32[]', space=smem, size = 0x4, offset = 0x4, fixed_abs, tag = 'smem constant byte address 0x4 - core index']
  #allocation1 [shape = 'u32[144,128]{1,0:T(1,128)}', space=vmem, size = 0x12000, scoped, tag = 'internal scratch']
  #allocation2 [shape = 'f32[16,128]{1,0:T(8,128)}', space=vmem, size = 0x2000, scoped, tag = 'scratch operand']
  %s0 = inlined_call_operand.vmem [shape: bf16[2,18,18,64], index: 0, kind: input, shape index: {}]
  %s1 = inlined_call_operand.vmem [shape: bf16[3,3,64,128], index: 1, kind: input, shape index: {}]
  %s2 = inlined_call_operand.vmem [shape: f32[1,128], index: 2, kind: input, shape index: {}]
  %s3 = inlined_call_operand.vmem [shape: f32[1,128], index: 3, kind: input, shape index: {}]
  %s4 = inlined_call_operand.vmem [shape: f32[2,16,16,128], index: 4, kind: output, shape index: {}]
  %s5 = sld [smem:[#allocation0]]
  $region57: #{inception_a_forward.11} parent=0
    _
  %s7 = ssub.s32 1, %s5
  %s8 = scalar_select 0, %s7, %s5
  loop: start=0, step=1, limit=98
  $region2: #{inception_a_forward.11} parent=0 // loop_pre_header
    _
  $region3: #{inception_a_forward.11} parent=0 // loop_header
    %s10 = sphi 0, %s14
    %p11 = scmp.ge.s32.totalorder %s10, 98
    %s17 = sphi 0, %s43
    %s18 = sphi 0, %s39
    %s19 = sphi 0, %s35
    %s20 = sphi 0, %s31
    %s21 = sphi 0, %s17
    %s22 = sphi 0, %s18
    %s23 = sphi 0, %s19
    %s24 = sphi 0, %s20
    %s25 = sphi 0, %s21
    %s26 = sphi 0, %s22
    %s27 = sphi 0, %s23
    %s28 = sphi 0, %s24
    %s50 = sphi 0, %s52
    %s53 = sphi 0, %s50
    %s54 = sphi 0, %s53
    %s70 = sphi 0, %s54
    %s78 = sphi 0, %s80
    %s81 = sphi 0, %s78
    %s82 = sphi 0, %s81
    %s98 = sphi 0, %s82
    %s104 = sphi 0, %s106
    %s107 = sphi 0, %s104
    %s108 = sphi 0, %s107
    %s124 = sphi 0, %s108
    %s130 = sphi 0, %s132
    %s133 = sphi 0, %s130
    %s134 = sphi 0, %s133
    %s150 = sphi 0, %s134
    %s160 = sphi 0, %s162
    %s163 = sphi 0, %s160
    %s164 = sphi 0, %s163
    %s180 = sphi 0, %s164
  $region4: #{inception_a_forward.11} parent=0 // loop_header_branch
    %13 = sbr.rel (%p11) target = $region8
  $region5: #{inception_a_forward.11} parent=0 // loop_body
    %s15 = ssub.s32 %s10, 1
    %s16 = ssub.s32 %s10, 2
    %s29 = sadd.s32 1, %s20
    %p30 = scmp.ge.s32.totalorder %s29, 3
    %s31 = scalar_select %p30, 0, %s29
    %s32 = sadd.s32 1, %s19
    %s33 = scalar_select %p30, %s32, %s19
    %p34 = scmp.ge.s32.totalorder %s33, 1
    %s35 = scalar_select %p34, 0, %s33
    %s36 = sadd.s32 1, %s18
    %s37 = scalar_select %p34, %s36, %s18
    %p38 = scmp.ge.s32.totalorder %s37, 16
    %s39 = scalar_select %p38, 0, %s37
    %s40 = sadd.s32 1, %s17
    %s41 = scalar_select %p38, %s40, %s17
    %p42 = scmp.ge.s32.totalorder %s41, 2
    %s43 = scalar_select %p42, 0, %s41
    %s44 = sadd.s32 %s18, %s20
    %s45 = sadd.s32 %s39, %s31
    %s46 = ssub.s32 %s17, %s43
    %s47 = ssub.s32 %s44, %s45
    %s48 = sor.u32 %s46, %s47
    %p49 = scmp.eq.s32.totalorder %s48, 0
    %s51 = sadd.s32 %s50, 1
    %s52 = scalar_select %p49, %s50, %s51
    %p55 = pneg %p49
    %p56 = scmp.eq.s32.totalorder %s10, 95
    %p57 = por %p55, %p56
    %p58 = scmp.ne.s32.totalorder %s50, %s53
    %p59 = scmp.eq.s32.totalorder %s10, 0
    %p60 = por %p58, %p59
    %p61 = scmp.ne.s32.totalorder %s50, %s53
    %p62 = scmp.eq.s32.totalorder %s15, 95
    %p63 = por %p61, %p62
    %p64 = scmp.ne.s32.totalorder %s53, %s54
    %p65 = scmp.eq.s32.totalorder %s15, 0
    %p66 = por %p64, %p65
    %p67 = scmp.ne.s32.totalorder %s53, %s54
    %p68 = scmp.eq.s32.totalorder %s16, 95
    %p69 = por %p67, %p68
    %p71 = scmp.ne.s32.totalorder %s54, %s70
    %p72 = scmp.eq.s32.totalorder %s16, 0
    %p73 = por %p71, %p72
    %s74 = ssub.s32 %s20, %s31
    %s75 = ssub.s32 %s19, %s35
    %s76 = sor.u32 %s74, %s75
    %p77 = scmp.eq.s32.totalorder %s76, 0
    %s79 = sadd.s32 %s78, 1
    %s80 = scalar_select %p77, %s78, %s79
    %p83 = pneg %p77
    %p84 = scmp.eq.s32.totalorder %s10, 95
    %p85 = por %p83, %p84
    %p86 = scmp.ne.s32.totalorder %s78, %s81
    %p87 = scmp.eq.s32.totalorder %s10, 0
    %p88 = por %p86, %p87
    %p89 = scmp.ne.s32.totalorder %s78, %s81
    %p90 = scmp.eq.s32.totalorder %s15, 95
    %p91 = por %p89, %p90
    %p92 = scmp.ne.s32.totalorder %s81, %s82
    %p93 = scmp.eq.s32.totalorder %s15, 0
    %p94 = por %p92, %p93
    %p95 = scmp.ne.s32.totalorder %s81, %s82
    %p96 = scmp.eq.s32.totalorder %s16, 95
    %p97 = por %p95, %p96
    %p99 = scmp.ne.s32.totalorder %s82, %s98
    %p100 = scmp.eq.s32.totalorder %s16, 0
    %p101 = por %p99, %p100
    %s102 = ssub.s32 %s19, %s35
    %p103 = scmp.eq.s32.totalorder %s102, 0
    %s105 = sadd.s32 %s104, 1
    %s106 = scalar_select %p103, %s104, %s105
    %p109 = pneg %p103
    %p110 = scmp.eq.s32.totalorder %s10, 95
    %p111 = por %p109, %p110
    %p112 = scmp.ne.s32.totalorder %s104, %s107
    %p113 = scmp.eq.s32.totalorder %s10, 0
    %p114 = por %p112, %p113
    %p115 = scmp.ne.s32.totalorder %s104, %s107
    %p116 = scmp.eq.s32.totalorder %s15, 95
    %p117 = por %p115, %p116
    %p118 = scmp.ne.s32.totalorder %s107, %s108
    %p119 = scmp.eq.s32.totalorder %s15, 0
    %p120 = por %p118, %p119
    %p121 = scmp.ne.s32.totalorder %s107, %s108
    %p122 = scmp.eq.s32.totalorder %s16, 95
    %p123 = por %p121, %p122
    %p125 = scmp.ne.s32.totalorder %s108, %s124
    %p126 = scmp.eq.s32.totalorder %s16, 0
    %p127 = por %p125, %p126
    %s128 = ssub.s32 %s19, %s35
    %p129 = scmp.eq.s32.totalorder %s128, 0
    %s131 = sadd.s32 %s130, 1
    %s132 = scalar_select %p129, %s130, %s131
    %p135 = pneg %p129
    %p136 = scmp.eq.s32.totalorder %s10, 95
    %p137 = por %p135, %p136
    %p138 = scmp.ne.s32.totalorder %s130, %s133
    %p139 = scmp.eq.s32.totalorder %s10, 0
    %p140 = por %p138, %p139
    %p141 = scmp.ne.s32.totalorder %s130, %s133
    %p142 = scmp.eq.s32.totalorder %s15, 95
    %p143 = por %p141, %p142
    %p144 = scmp.ne.s32.totalorder %s133, %s134
    %p145 = scmp.eq.s32.totalorder %s15, 0
    %p146 = por %p144, %p145
    %p147 = scmp.ne.s32.totalorder %s133, %s134
    %p148 = scmp.eq.s32.totalorder %s16, 95
    %p149 = por %p147, %p148
    %p151 = scmp.ne.s32.totalorder %s134, %s150
    %p152 = scmp.eq.s32.totalorder %s16, 0
    %p153 = por %p151, %p152
    %s154 = ssub.s32 %s17, %s43
    %s155 = ssub.s32 %s18, %s39
    %s156 = sor.u32 %s154, %s155
    %s157 = ssub.s32 %s19, %s35
    %s158 = sor.u32 %s156, %s157
    %p159 = scmp.eq.s32.totalorder %s158, 0
    %s161 = sadd.s32 %s160, 1
    %s162 = scalar_select %p159, %s160, %s161
    %p165 = pneg %p159
    %p166 = scmp.eq.s32.totalorder %s10, 95
    %p167 = por %p165, %p166
    %p168 = scmp.ne.s32.totalorder %s160, %s163
    %p169 = scmp.eq.s32.totalorder %s10, 0
    %p170 = por %p168, %p169
    %p171 = scmp.ne.s32.totalorder %s160, %s163
    %p172 = scmp.eq.s32.totalorder %s15, 95
    %p173 = por %p171, %p172
    %p174 = scmp.ne.s32.totalorder %s163, %s164
    %p175 = scmp.eq.s32.totalorder %s15, 0
    %p176 = por %p174, %p175
    %p177 = scmp.ne.s32.totalorder %s163, %s164
    %p178 = scmp.eq.s32.totalorder %s16, 95
    %p179 = por %p177, %p178
    %p181 = scmp.ne.s32.totalorder %s164, %s180
    %p182 = scmp.eq.s32.totalorder %s16, 0
    %p183 = por %p181, %p182
    %p184 = scmp.le.s32.totalorder 1, %s10
    %p185 = scmp.lt.s32.totalorder %s10, 97
    %p186 = pnand %p184, %p185
    %p187 = pneg %p186
    // Predicated region
    $region9: #{inception_a_forward.11} parent=5 // pred_check
      _
    $region10: #{inception_a_forward.11} parent=5 // pred_check_branch
      %189 = sbr.rel (%p186) target = $region12
    $region11: #{inception_a_forward.11} parent=5 // pred_region
      %s190 = ssub.s32 %s10, 1
      // Predicated region
      $region13: #{inception_a_forward.11} parent=11 // pred_check
        %p191 = pneg %p120
      $region14: #{inception_a_forward.11} parent=11 // pred_check_branch
        %193 = sbr.rel (%p191) target = $region16
      $region15: #{inception_a_forward.11} parent=11 // pred_region
        %p194 = scmp.lt.s32.totalorder %s23, 0
        %s195 = scalar_select %p194, %s23, 0
        %s196 = scalar_lea.vmem %s2, %s195
      $region16: #{inception_a_forward.11} parent=11 // pred_fallthru
        _
      // Predicated region
      $region17: #{inception_a_forward.11} parent=11 // pred_check
        %p197 = pneg %p146
      $region18: #{inception_a_forward.11} parent=11 // pred_check_branch
        %199 = sbr.rel (%p197) target = $region20
      $region19: #{inception_a_forward.11} parent=11 // pred_region
        %p200 = scmp.lt.s32.totalorder %s23, 0
        %s201 = scalar_select %p200, %s23, 0
        %s202 = scalar_lea.vmem %s3, %s201
      $region20: #{inception_a_forward.11} parent=11 // pred_fallthru
        _
    $region12: #{inception_a_forward.11} parent=5 // pred_fallthru
      _
    %p203 = scmp.lt.s32.totalorder %s10, 96
    // Predicated region
    $region21: #{inception_a_forward.11} parent=5 // pred_check
      %p204 = pneg %p203
    $region22: #{inception_a_forward.11} parent=5 // pred_check_branch
      %206 = sbr.rel (%p204) target = $region24
    $region23: #{inception_a_forward.11} parent=5 // pred_region
      // Predicated region
      $region25: #{inception_a_forward.11} parent=23 // pred_check
        %p207 = pneg %p60
      $region26: #{inception_a_forward.11} parent=23 // pred_check_branch
        %209 = sbr.rel (%p207) target = $region28
      $region27: #{inception_a_forward.11} parent=23 // pred_region
        %s210 = sadd.s32 %s18, %s20
        %p211 = scmp.lt.s32.totalorder %s17, 1
        %s212 = scalar_select %p211, %s17, 1
        %p213 = scmp.lt.s32.totalorder %s210, 17
        %s214 = scalar_select %p213, %s210, 17
        %s215 = smul.addr %s214, 3
        %s216 = smul.addr %s212, 54
        %s217 = sadd.s32 %s215, %s216
        %s218 = smul.addr %s217, 4
        %s219 = scalar_lea.vmem %s0, %s218
        %s220 = sadd.s32 %s18, %s20
      $region28: #{inception_a_forward.11} parent=23 // pred_fallthru
        _
      // Predicated region
      $region29: #{inception_a_forward.11} parent=23 // pred_check
        %p221 = pneg %p88
      $region30: #{inception_a_forward.11} parent=23 // pred_check_branch
        %223 = sbr.rel (%p221) target = $region32
      $region31: #{inception_a_forward.11} parent=23 // pred_region
        %p224 = scmp.lt.s32.totalorder %s20, 2
        %s225 = scalar_select %p224, %s20, 2
        %p226 = scmp.lt.s32.totalorder %s19, 0
        %s227 = scalar_select %p226, %s19, 0
        %s228 = smul.addr %s225, 24
        %s229 = sadd.s32 %s227, %s228
        %s230 = smul.addr %s229, 4
        %s231 = scalar_lea.vmem %s1, %s230
      $region32: #{inception_a_forward.11} parent=23 // pred_fallthru
        _
    $region24: #{inception_a_forward.11} parent=5 // pred_fallthru
      _
    %p232 = scmp.le.s32.totalorder 1, %s10
    %p233 = scmp.lt.s32.totalorder %s10, 97
    %p234 = pnand %p232, %p233
    %p235 = pneg %p234
    // Predicated region
    $region33: #{inception_a_forward.11} parent=5 // pred_check
      _
    $region34: #{inception_a_forward.11} parent=5 // pred_check_branch
      %237 = sbr.rel (%p234) target = $region36
    $region35: #{inception_a_forward.11} parent=5 // pred_region
      %s238 = ssub.s32 %s10, 1
      %s239 = sadd.s32 %s22, %s24
      %p240 = scmp.lt.s32.totalorder %s21, 1
      %s241 = scalar_select %p240, %s21, 1
      %p242 = scmp.lt.s32.totalorder %s239, 17
      %s243 = scalar_select %p242, %s239, 17
      %s244 = smul.addr %s243, 3
      %s245 = smul.addr %s241, 54
      %s246 = sadd.s32 %s244, %s245
      %s247 = smul.addr %s246, 4
      %s248 = scalar_lea.vmem %s0, %s247
      %p249 = pneg %p66
      %p250 = pneg %p63
      %p251 = scmp.lt.s32.totalorder %s24, 2
      %s252 = scalar_select %p251, %s24, 2
      %p253 = scmp.lt.s32.totalorder %s23, 0
      %s254 = scalar_select %p253, %s23, 0
      %s255 = smul.addr %s252, 24
      %s256 = sadd.s32 %s254, %s255
      %s257 = smul.addr %s256, 4
      %s258 = scalar_lea.vmem %s1, %s257
      %p259 = pneg %p94
      %p260 = pneg %p91
      %p261 = scmp.lt.s32.totalorder %s23, 0
      %s262 = scalar_select %p261, %s23, 0
      %s263 = scalar_lea.vmem %s2, %s262
      %p264 = pneg %p120
      %p265 = pneg %p117
      %p266 = scmp.lt.s32.totalorder %s23, 0
      %s267 = scalar_select %p266, %s23, 0
      %s268 = scalar_lea.vmem %s3, %s267
      %p269 = pneg %p146
      %p270 = pneg %p143
      %p271 = pneg %p176
      %p272 = pneg %p173
      %p273 = scmp.lt.s32.totalorder %s21, 1
      %s274 = scalar_select %p273, %s21, 1
      %p275 = scmp.lt.s32.totalorder %s22, 15
      %s276 = scalar_select %p275, %s22, 15
      %p277 = scmp.lt.s32.totalorder %s23, 0
      %s278 = scalar_select %p277, %s23, 0
      %s279 = smul.addr %s276, 2
      %s280 = sadd.s32 %s278, %s279
      %s281 = smul.addr %s274, 32
      %s282 = sadd.s32 %s280, %s281
      %s283 = smul.addr %s282, 8
      %s284 = scalar_lea.vmem %s4, %s283
      %s285 = sadd.s32 %s22, %s24
      %p286 = scmp.lt.s32.totalorder %s21, 1
      %s287 = scalar_select %p286, %s21, 1
      %p288 = scmp.lt.s32.totalorder %s285, 17
      %s289 = scalar_select %p288, %s285, 17
      %s290 = smul.addr %s289, 3
      %s291 = smul.addr %s287, 54
      %s292 = sadd.s32 %s290, %s291
      %s293 = smul.addr %s292, 4
      %s294 = scalar_lea.vmem %s0, %s293
      %s295 = sadd.s32 %s22, %s24
      %p296 = scmp.lt.s32.totalorder %s24, 2
      %s297 = scalar_select %p296, %s24, 2
      %p298 = scmp.lt.s32.totalorder %s23, 0
      %s299 = scalar_select %p298, %s23, 0
      %s300 = smul.addr %s297, 24
      %s301 = sadd.s32 %s299, %s300
      %s302 = smul.addr %s301, 4
      %s303 = scalar_lea.vmem %s1, %s302
      %p304 = scmp.lt.s32.totalorder %s23, 0
      %s305 = scalar_select %p304, %s23, 0
      %s306 = scalar_lea.vmem %s2, %s305
      %p307 = scmp.lt.s32.totalorder %s23, 0
      %s308 = scalar_select %p307, %s23, 0
      %s309 = scalar_lea.vmem %s3, %s308
      %p310 = scmp.lt.s32.totalorder %s21, 1
      %s311 = scalar_select %p310, %s21, 1
      %p312 = scmp.lt.s32.totalorder %s22, 15
      %s313 = scalar_select %p312, %s22, 15
      %p314 = scmp.lt.s32.totalorder %s23, 0
      %s315 = scalar_select %p314, %s23, 0
      %s316 = smul.addr %s313, 2
      %s317 = sadd.s32 %s315, %s316
      %s318 = smul.addr %s311, 32
      %s319 = sadd.s32 %s317, %s318
      %s320 = smul.addr %s319, 8
      %s321 = scalar_lea.vmem %s4, %s320
      %p323 = scmp.eq.s32.totalorder %s24, 0
      // Predicated region
      $region37: #{inception_a_forward.11} parent=35 // pred_check
        %p324 = pneg %p323
      $region38: #{inception_a_forward.11} parent=35 // pred_check_branch
        %326 = sbr.rel (%p324) target = $region40
      $region39: #{inception_a_forward.11} parent=35 // pred_region
        %327 = vst [vmem:[#allocation2] sm:$0xff] 0.0
        %328 = vst [vmem:[#allocation2 + $0x8] sm:$0xff] 0.0
      $region40: #{inception_a_forward.11} parent=35 // pred_fallthru
        _
      %v329 = vld [vmem:[%s294] sm:$0xf]
      %v330 = vld [vmem:[%s294 + $0x4] sm:$0xf]
      %v331 = vld [vmem:[%s294 + $0x8] sm:$0x1]
      %v332 = vld [vmem:[#allocation2] sm:$0xff]
      %v333 = vld [vmem:[#allocation2 + $0x8] sm:$0xff]
      %v334 = vld [vmem:[%s303] sm:$0xf]
      %v335 = vld [vmem:[%s303 + $0x4] sm:$0xf]
      %v336 = vld [vmem:[%s303 + $0x8] sm:$0xf]
      %v337 = vld [vmem:[%s303 + $0xc] sm:$0xf]
      %v338 = vld [vmem:[%s303 + $0x10] sm:$0xf]
      %v339 = vld [vmem:[%s303 + $0x14] sm:$0xf]
      %v340 = vld [vmem:[%s303 + $0x18] sm:$0xf]
      %v341 = vld [vmem:[%s303 + $0x1c] sm:$0xf]
      %v344 = vunpack.c.l.b16 %v329
      %v345 = vunpack.c.l.b16 %v330
      %v346 = vpack.c.b16 %v345, %v344
      %v355 = vunpack.c.l.b16 %v334
      %v356 = vunpack.c.l.b16 %v335
      %v357 = vunpack.c.l.b16 %v336
      %v358 = vunpack.c.l.b16 %v337
      %v359 = vunpack.c.l.b16 %v338
      %v360 = vunpack.c.l.b16 %v339
      %v361 = vunpack.c.l.b16 %v340
      %v362 = vunpack.c.l.b16 %v341
      %v363 = vpack.c.b16 %v356, %v355
      %v364 = vpack.c.b16 %v358, %v357
      %v365 = vpack.c.b16 %v360, %v359
      %v366 = vpack.c.b16 %v362, %v361
      %vm371 = vcmask 523264
      %v373 = vsel %vm371, %v346, 0
      %375 = vmatprep.subr.bf16.mxu0 0
      %376 = vmatpush1.bf16.msra.mxu0 0
      %377 = vmatprep.subr.bf16.mxu0 0
      %378 = vmatpush1.bf16.msra.mxu0 0
      %379 = vmatprep.subr.bf16.mxu0 0
      %380 = vmatpush1.bf16.msra.mxu0 0
      %381 = vmatprep.subr.bf16.mxu0 0
      %382 = vmatpush1.bf16.msra.mxu0 0
      %383 = vmatprep.subr.bf16.mxu0 0
      %384 = vmatpush1.bf16.msra.mxu0 %v366
      %385 = vmatprep.subr.bf16.mxu0 0
      %386 = vmatpush1.bf16.msra.mxu0 %v365
      %387 = vmatprep.subr.bf16.mxu0 0
      %388 = vmatpush1.bf16.msra.mxu0 %v364
      %389 = vmatprep.subr.bf16.mxu0 0
      %390 = vmatpush1.bf16.msra.mxu0 %v363
      %391 = vmatprep.subr.bf16.mxu0 0
      %392 = vmatpush2.bf16.msra.mxu0 0
      %393 = vmatprep.subr.bf16.mxu0 0
      %394 = vmatpush2.bf16.msra.mxu0 0
      %395 = vmatprep.subr.bf16.mxu0 0
      %396 = vmatpush2.bf16.msra.mxu0 0
      %397 = vmatprep.subr.bf16.mxu0 0
      %398 = vmatpush2.bf16.msra.mxu0 0
      %399 = vmatprep.subr.bf16.mxu0 0
      %400 = vmatpush2.bf16.msra.mxu0 0
      %401 = vmatprep.subr.bf16.mxu0 0
      %402 = vmatpush2.bf16.msra.mxu0 0
      %403 = vmatprep.subr.bf16.mxu0 0
      %404 = vmatpush2.bf16.msra.mxu0 0
      %405 = vmatprep.subr.bf16.mxu0 0
      %406 = vmatpush2.bf16.msra.mxu0 0
      %407 = vmatprep.mubr.bf16.mxu0 0
      %408 = vmatmul.mubr.bf16.gmra.mxu0 %v373
      %v409 = vpop.f32.mrf.mxu0
      %v410 = vadd.f32 0.0, %v409
      %v411 = vpop.f32.mrf.mxu0
      %v412 = vpop.f32.mrf.mxu0
      %v413 = vadd.f32 0.0, %v412
      %v414 = vpop.f32.mrf.mxu0
      %415 = vdwg.mxu0
      %v416 = vadd.f32 %v332, %v410
      %v417 = vadd.f32 %v333, %v413
      %s418 = scalar_lea.vmem %s303, 32
      %v419 = vld [vmem:[%s418] sm:$0xf]
      %v420 = vld [vmem:[%s418 + $0x4] sm:$0xf]
      %v421 = vld [vmem:[%s418 + $0x8] sm:$0xf]
      %v422 = vld [vmem:[%s418 + $0xc] sm:$0xf]
      %v423 = vld [vmem:[%s418 + $0x10] sm:$0xf]
      %v424 = vld [vmem:[%s418 + $0x14] sm:$0xf]
      %v425 = vld [vmem:[%s418 + $0x18] sm:$0xf]
      %v426 = vld [vmem:[%s418 + $0x1c] sm:$0xf]
      %v428 = vunpack.c.l.b16 %v331
      %v429 = vpack.c.b16 %v428, %v428
      %vm430 = vsmask.f32 7424
      %v431 = vshrl.u32 %v346, 16
      %v433 = vshll.u32 %v346, 16
      %v435 = vrot.slane %v433, 1
      %v436 = vor.u32 %v431, %v435
      %v438 = vshll.u32 %v429, 16
      %v440 = vrot.slane %v438, 1
      %v441 = vsel %vm430, %v436, %v440
      %v450 = vunpack.c.l.b16 %v419
      %v451 = vunpack.c.l.b16 %v420
      %v452 = vunpack.c.l.b16 %v421
      %v453 = vunpack.c.l.b16 %v422
      %v454 = vunpack.c.l.b16 %v423
      %v455 = vunpack.c.l.b16 %v424
      %v456 = vunpack.c.l.b16 %v425
      %v457 = vunpack.c.l.b16 %v426
      %v458 = vpack.c.b16 %v451, %v450
      %v459 = vpack.c.b16 %v453, %v452
      %v460 = vpack.c.b16 %v455, %v454
      %v461 = vpack.c.b16 %v457, %v456
      %v467 = vsel %vm371, %v441, 0
      %469 = vmatprep.subr.bf16.mxu0 0
      %470 = vmatpush1.bf16.msra.mxu0 0
      %471 = vmatprep.subr.bf16.mxu0 0
      %472 = vmatpush1.bf16.msra.mxu0 0
      %473 = vmatprep.subr.bf16.mxu0 0
      %474 = vmatpush1.bf16.msra.mxu0 0
      %475 = vmatprep.subr.bf16.mxu0 0
      %476 = vmatpush1.bf16.msra.mxu0 0
      %477 = vmatprep.subr.bf16.mxu0 0
      %478 = vmatpush1.bf16.msra.mxu0 %v461
      %479 = vmatprep.subr.bf16.mxu0 0
      %480 = vmatpush1.bf16.msra.mxu0 %v460
      %481 = vmatprep.subr.bf16.mxu0 0
      %482 = vmatpush1.bf16.msra.mxu0 %v459
      %483 = vmatprep.subr.bf16.mxu0 0
      %484 = vmatpush1.bf16.msra.mxu0 %v458
      %485 = vmatprep.subr.bf16.mxu0 0
      %486 = vmatpush2.bf16.msra.mxu0 0
      %487 = vmatprep.subr.bf16.mxu0 0
      %488 = vmatpush2.bf16.msra.mxu0 0
      %489 = vmatprep.subr.bf16.mxu0 0
      %490 = vmatpush2.bf16.msra.mxu0 0
      %491 = vmatprep.subr.bf16.mxu0 0
      %492 = vmatpush2.bf16.msra.mxu0 0
      %493 = vmatprep.subr.bf16.mxu0 0
      %494 = vmatpush2.bf16.msra.mxu0 0
      %495 = vmatprep.subr.bf16.mxu0 0
      %496 = vmatpush2.bf16.msra.mxu0 0
      %497 = vmatprep.subr.bf16.mxu0 0
      %498 = vmatpush2.bf16.msra.mxu0 0
      %499 = vmatprep.subr.bf16.mxu0 0
      %500 = vmatpush2.bf16.msra.mxu0 0
      %501 = vmatprep.mubr.bf16.mxu0 0
      %502 = vmatmul.mubr.bf16.gmra.mxu0 %v467
      %v503 = vpop.f32.mrf.mxu0
      %v504 = vadd.f32 0.0, %v503
      %v505 = vpop.f32.mrf.mxu0
      %v506 = vpop.f32.mrf.mxu0
      %v507 = vadd.f32 0.0, %v506
      %v508 = vpop.f32.mrf.mxu0
      %509 = vdwg.mxu0
      %v510 = vadd.f32 %v416, %v504
      %v511 = vadd.f32 %v417, %v507
      %s512 = scalar_lea.vmem %s303, 64
      %v513 = vld [vmem:[%s512] sm:$0xf]
      %v514 = vld [vmem:[%s512 + $0x4] sm:$0xf]
      %v515 = vld [vmem:[%s512 + $0x8] sm:$0xf]
      %v516 = vld [vmem:[%s512 + $0xc] sm:$0xf]
      %v517 = vld [vmem:[%s512 + $0x10] sm:$0xf]
      %v518 = vld [vmem:[%s512 + $0x14] sm:$0xf]
      %v519 = vld [vmem:[%s512 + $0x18] sm:$0xf]
      %v520 = vld [vmem:[%s512 + $0x1c] sm:$0xf]
      %vm521 = vcmask 1046528
      %v522 = vrot.slane %v346, 1
      %v523 = vrot.slane %v429, 1
      %v524 = vsel %vm521, %v522, %v523
      %v533 = vunpack.c.l.b16 %v513
      %v534 = vunpack.c.l.b16 %v514
      %v535 = vunpack.c.l.b16 %v515
      %v536 = vunpack.c.l.b16 %v516
      %v537 = vunpack.c.l.b16 %v517
      %v538 = vunpack.c.l.b16 %v518
      %v539 = vunpack.c.l.b16 %v519
      %v540 = vunpack.c.l.b16 %v520
      %v541 = vpack.c.b16 %v534, %v533
      %v542 = vpack.c.b16 %v536, %v535
      %v543 = vpack.c.b16 %v538, %v537
      %v544 = vpack.c.b16 %v540, %v539
      %v550 = vsel %vm371, %v524, 0
      %552 = vmatprep.subr.bf16.mxu0 0
      %553 = vmatpush1.bf16.msra.mxu0 0
      %554 = vmatprep.subr.bf16.mxu0 0
      %555 = vmatpush1.bf16.msra.mxu0 0
      %556 = vmatprep.subr.bf16.mxu0 0
      %557 = vmatpush1.bf16.msra.mxu0 0
      %558 = vmatprep.subr.bf16.mxu0 0
      %559 = vmatpush1.bf16.msra.mxu0 0
      %560 = vmatprep.subr.bf16.mxu0 0
      %561 = vmatpush1.bf16.msra.mxu0 %v544
      %562 = vmatprep.subr.bf16.mxu0 0
      %563 = vmatpush1.bf16.msra.mxu0 %v543
      %564 = vmatprep.subr.bf16.mxu0 0
      %565 = vmatpush1.bf16.msra.mxu0 %v542
      %566 = vmatprep.subr.bf16.mxu0 0
      %567 = vmatpush1.bf16.msra.mxu0 %v541
      %568 = vmatprep.subr.bf16.mxu0 0
      %569 = vmatpush2.bf16.msra.mxu0 0
      %570 = vmatprep.subr.bf16.mxu0 0
      %571 = vmatpush2.bf16.msra.mxu0 0
      %572 = vmatprep.subr.bf16.mxu0 0
      %573 = vmatpush2.bf16.msra.mxu0 0
      %574 = vmatprep.subr.bf16.mxu0 0
      %575 = vmatpush2.bf16.msra.mxu0 0
      %576 = vmatprep.subr.bf16.mxu0 0
      %577 = vmatpush2.bf16.msra.mxu0 0
      %578 = vmatprep.subr.bf16.mxu0 0
      %579 = vmatpush2.bf16.msra.mxu0 0
      %580 = vmatprep.subr.bf16.mxu0 0
      %581 = vmatpush2.bf16.msra.mxu0 0
      %582 = vmatprep.subr.bf16.mxu0 0
      %583 = vmatpush2.bf16.msra.mxu0 0
      %584 = vmatprep.mubr.bf16.mxu0 0
      %585 = vmatmul.mubr.bf16.gmra.mxu0 %v550
      %v586 = vpop.f32.mrf.mxu0
      %v587 = vadd.f32 0.0, %v586
      %v588 = vpop.f32.mrf.mxu0
      %v589 = vpop.f32.mrf.mxu0
      %v590 = vadd.f32 0.0, %v589
      %v591 = vpop.f32.mrf.mxu0
      %592 = vdwg.mxu0
      %v593 = vadd.f32 %v510, %v587
      %v594 = vadd.f32 %v511, %v590
      %595 = vst [vmem:[#allocation2] sm:$0xff] %v593
      %596 = vst [vmem:[#allocation2 + $0x8] sm:$0xff] %v594
      %p597 = scmp.eq.s32.totalorder %s24, 2
      // Predicated region
      $region41: #{inception_a_forward.11} parent=35 // pred_check
        %p598 = pneg %p597
      $region42: #{inception_a_forward.11} parent=35 // pred_check_branch
        %600 = sbr.rel (%p598) target = $region44
      $region43: #{inception_a_forward.11} parent=35 // pred_region
        %v601 = vld [vmem:[#allocation2] sm:$0xff]
        %v602 = vld [vmem:[#allocation2 + $0x8] sm:$0xff]
        %v603 = vld [vmem:[%s306] sm:$0x1]
        %v605 = vlaneseq
        %v606 = vshrl.u32 %v605, 7
        %v607 = vsub.s32 0, %v606
        %v608 = vrot.slane %v603, %v607
        %v610 = vmul.f32 %v601, %v608
        %v611 = vmul.f32 %v602, %v608
        %v612 = vld [vmem:[%s309] sm:$0x1]
        %v614 = vlaneseq
        %v615 = vshrl.u32 %v614, 7
        %v616 = vsub.s32 0, %v615
        %v617 = vrot.slane %v612, %v616
        %v619 = vadd.f32 %v610, %v617
        %v620 = vadd.f32 %v611, %v617
        %v621 = vmax.f32 %v619, 0.0
        %v622 = vmax.f32 %v620, 0.0
        %623 = vst [vmem:[%s321] sm:$0xff] %v621
        %624 = vst [vmem:[%s321 + $0x8] sm:$0xff] %v622
      $region44: #{inception_a_forward.11} parent=35 // pred_fallthru
        _
      %p625 = scmp.lt.s32.totalorder %s21, 1
      %s626 = scalar_select %p625, %s21, 1
      %p627 = scmp.lt.s32.totalorder %s22, 15
      %s628 = scalar_select %p627, %s22, 15
      %p629 = scmp.lt.s32.totalorder %s23, 0
      %s630 = scalar_select %p629, %s23, 0
      %s631 = smul.addr %s628, 2
      %s632 = sadd.s32 %s630, %s631
      %s633 = smul.addr %s626, 32
      %s634 = sadd.s32 %s632, %s633
      %s635 = smul.addr %s634, 8
      %s636 = scalar_lea.vmem %s4, %s635
      // Predicated region
      $region45: #{inception_a_forward.11} parent=35 // pred_check
        %p637 = pneg %p173
      $region46: #{inception_a_forward.11} parent=35 // pred_check_branch
        %639 = sbr.rel (%p637) target = $region48
      $region47: #{inception_a_forward.11} parent=35 // pred_region
        _
      $region48: #{inception_a_forward.11} parent=35 // pred_fallthru
        _
    $region36: #{inception_a_forward.11} parent=5 // pred_fallthru
      _
    %p640 = scmp.le.s32.totalorder 2, %s10
    // Predicated region
    $region49: #{inception_a_forward.11} parent=5 // pred_check
      %p641 = pneg %p640
    $region50: #{inception_a_forward.11} parent=5 // pred_check_branch
      %643 = sbr.rel (%p641) target = $region52
    $region51: #{inception_a_forward.11} parent=5 // pred_region
      %s644 = ssub.s32 %s10, 2
      // Predicated region
      $region53: #{inception_a_forward.11} parent=51 // pred_check
        %p645 = pneg %p179
      $region54: #{inception_a_forward.11} parent=51 // pred_check_branch
        %647 = sbr.rel (%p645) target = $region56
      $region55: #{inception_a_forward.11} parent=51 // pred_region
        %p648 = scmp.lt.s32.totalorder %s25, 1
        %s649 = scalar_select %p648, %s25, 1
        %p650 = scmp.lt.s32.totalorder %s26, 15
        %s651 = scalar_select %p650, %s26, 15
        %p652 = scmp.lt.s32.totalorder %s27, 0
        %s653 = scalar_select %p652, %s27, 0
        %s654 = smul.addr %s651, 2
        %s655 = sadd.s32 %s653, %s654
        %s656 = smul.addr %s649, 32
        %s657 = sadd.s32 %s655, %s656
        %s658 = smul.addr %s657, 8
        %s659 = scalar_lea.vmem %s4, %s658
      $region56: #{inception_a_forward.11} parent=51 // pred_fallthru
        _
    $region52: #{inception_a_forward.11} parent=5 // pred_fallthru
      _
  $region6: #{inception_a_forward.11} parent=0 // loop_footer
    %s14 = sadd.s32 1, %s10
  $region7: #{inception_a_forward.11} parent=0 // loop_footer_branch
    %9 = sbr.rel target = $region3
  $region8: #{inception_a_forward.11} parent=0 // loop_exit
    _

// kernel: inception_a_forward.12
$region0: #{inception_a_forward.12}
  #allocation0 [shape = 'u32[]', space=smem, size = 0x4, offset = 0x4, fixed_abs, tag = 'smem constant byte address 0x4 - core index']
  #allocation1 [shape = 'u32[144,128]{1,0:T(1,128)}', space=vmem, size = 0x12000, scoped, tag = 'internal scratch']
  #allocation2 [shape = 'f32[16,128]{1,0:T(8,128)}', space=vmem, size = 0x2000, scoped, tag = 'scratch operand']
  %s0 = inlined_call_operand.vmem [shape: bf16[2,18,18,96], index: 0, kind: input, shape index: {}]
  %s1 = inlined_call_operand.vmem [shape: bf16[3,3,96,128], index: 1, kind: input, shape index: {}]
  %s2 = inlined_call_operand.vmem [shape: f32[1,128], index: 2, kind: input, shape index: {}]
  %s3 = inlined_call_operand.vmem [shape: f32[1,128], index: 3, kind: input, shape index: {}]
  %s4 = inlined_call_operand.vmem [shape: f32[2,16,16,128], index: 4, kind: output, shape index: {}]
  %s5 = sld [smem:[#allocation0]]
  $region57: #{inception_a_forward.12} parent=0
    _
  %s7 = ssub.s32 1, %s5
  %s8 = scalar_select 0, %s7, %s5
  loop: start=0, step=1, limit=98
  $region2: #{inception_a_forward.12} parent=0 // loop_pre_header
    _
  $region3: #{inception_a_forward.12} parent=0 // loop_header
    %s10 = sphi 0, %s14
    %p11 = scmp.ge.s32.totalorder %s10, 98
    %s17 = sphi 0, %s43
    %s18 = sphi 0, %s39
    %s19 = sphi 0, %s35
    %s20 = sphi 0, %s31
    %s21 = sphi 0, %s17
    %s22 = sphi 0, %s18
    %s23 = sphi 0, %s19
    %s24 = sphi 0, %s20
    %s25 = sphi 0, %s21
    %s26 = sphi 0, %s22
    %s27 = sphi 0, %s23
    %s28 = sphi 0, %s24
    %s50 = sphi 0, %s52
    %s53 = sphi 0, %s50
    %s54 = sphi 0, %s53
    %s70 = sphi 0, %s54
    %s78 = sphi 0, %s80
    %s81 = sphi 0, %s78
    %s82 = sphi 0, %s81
    %s98 = sphi 0, %s82
    %s104 = sphi 0, %s106
    %s107 = sphi 0, %s104
    %s108 = sphi 0, %s107
    %s124 = sphi 0, %s108
    %s130 = sphi 0, %s132
    %s133 = sphi 0, %s130
    %s134 = sphi 0, %s133
    %s150 = sphi 0, %s134
    %s160 = sphi 0, %s162
    %s163 = sphi 0, %s160
    %s164 = sphi 0, %s163
    %s180 = sphi 0, %s164
  $region4: #{inception_a_forward.12} parent=0 // loop_header_branch
    %13 = sbr.rel (%p11) target = $region8
  $region5: #{inception_a_forward.12} parent=0 // loop_body
    %s15 = ssub.s32 %s10, 1
    %s16 = ssub.s32 %s10, 2
    %s29 = sadd.s32 1, %s20
    %p30 = scmp.ge.s32.totalorder %s29, 3
    %s31 = scalar_select %p30, 0, %s29
    %s32 = sadd.s32 1, %s19
    %s33 = scalar_select %p30, %s32, %s19
    %p34 = scmp.ge.s32.totalorder %s33, 1
    %s35 = scalar_select %p34, 0, %s33
    %s36 = sadd.s32 1, %s18
    %s37 = scalar_select %p34, %s36, %s18
    %p38 = scmp.ge.s32.totalorder %s37, 16
    %s39 = scalar_select %p38, 0, %s37
    %s40 = sadd.s32 1, %s17
    %s41 = scalar_select %p38, %s40, %s17
    %p42 = scmp.ge.s32.totalorder %s41, 2
    %s43 = scalar_select %p42, 0, %s41
    %s44 = sadd.s32 %s18, %s20
    %s45 = sadd.s32 %s39, %s31
    %s46 = ssub.s32 %s17, %s43
    %s47 = ssub.s32 %s44, %s45
    %s48 = sor.u32 %s46, %s47
    %p49 = scmp.eq.s32.totalorder %s48, 0
    %s51 = sadd.s32 %s50, 1
    %s52 = scalar_select %p49, %s50, %s51
    %p55 = pneg %p49
    %p56 = scmp.eq.s32.totalorder %s10, 95
    %p57 = por %p55, %p56
    %p58 = scmp.ne.s32.totalorder %s50, %s53
    %p59 = scmp.eq.s32.totalorder %s10, 0
    %p60 = por %p58, %p59
    %p61 = scmp.ne.s32.totalorder %s50, %s53
    %p62 = scmp.eq.s32.totalorder %s15, 95
    %p63 = por %p61, %p62
    %p64 = scmp.ne.s32.totalorder %s53, %s54
    %p65 = scmp.eq.s32.totalorder %s15, 0
    %p66 = por %p64, %p65
    %p67 = scmp.ne.s32.totalorder %s53, %s54
    %p68 = scmp.eq.s32.totalorder %s16, 95
    %p69 = por %p67, %p68
    %p71 = scmp.ne.s32.totalorder %s54, %s70
    %p72 = scmp.eq.s32.totalorder %s16, 0
    %p73 = por %p71, %p72
    %s74 = ssub.s32 %s20, %s31
    %s75 = ssub.s32 %s19, %s35
    %s76 = sor.u32 %s74, %s75
    %p77 = scmp.eq.s32.totalorder %s76, 0
    %s79 = sadd.s32 %s78, 1
    %s80 = scalar_select %p77, %s78, %s79
    %p83 = pneg %p77
    %p84 = scmp.eq.s32.totalorder %s10, 95
    %p85 = por %p83, %p84
    %p86 = scmp.ne.s32.totalorder %s78, %s81
    %p87 = scmp.eq.s32.totalorder %s10, 0
    %p88 = por %p86, %p87
    %p89 = scmp.ne.s32.totalorder %s78, %s81
    %p90 = scmp.eq.s32.totalorder %s15, 95
    %p91 = por %p89, %p90
    %p92 = scmp.ne.s32.totalorder %s81, %s82
    %p93 = scmp.eq.s32.totalorder %s15, 0
    %p94 = por %p92, %p93
    %p95 = scmp.ne.s32.totalorder %s81, %s82
    %p96 = scmp.eq.s32.totalorder %s16, 95
    %p97 = por %p95, %p96
    %p99 = scmp.ne.s32.totalorder %s82, %s98
    %p100 = scmp.eq.s32.totalorder %s16, 0
    %p101 = por %p99, %p100
    %s102 = ssub.s32 %s19, %s35
    %p103 = scmp.eq.s32.totalorder %s102, 0
    %s105 = sadd.s32 %s104, 1
    %s106 = scalar_select %p103, %s104, %s105
    %p109 = pneg %p103
    %p110 = scmp.eq.s32.totalorder %s10, 95
    %p111 = por %p109, %p110
    %p112 = scmp.ne.s32.totalorder %s104, %s107
    %p113 = scmp.eq.s32.totalorder %s10, 0
    %p114 = por %p112, %p113
    %p115 = scmp.ne.s32.totalorder %s104, %s107
    %p116 = scmp.eq.s32.totalorder %s15, 95
    %p117 = por %p115, %p116
    %p118 = scmp.ne.s32.totalorder %s107, %s108
    %p119 = scmp.eq.s32.totalorder %s15, 0
    %p120 = por %p118, %p119
    %p121 = scmp.ne.s32.totalorder %s107, %s108
    %p122 = scmp.eq.s32.totalorder %s16, 95
    %p123 = por %p121, %p122
    %p125 = scmp.ne.s32.totalorder %s108, %s124
    %p126 = scmp.eq.s32.totalorder %s16, 0
    %p127 = por %p125, %p126
    %s128 = ssub.s32 %s19, %s35
    %p129 = scmp.eq.s32.totalorder %s128, 0
    %s131 = sadd.s32 %s130, 1
    %s132 = scalar_select %p129, %s130, %s131
    %p135 = pneg %p129
    %p136 = scmp.eq.s32.totalorder %s10, 95
    %p137 = por %p135, %p136
    %p138 = scmp.ne.s32.totalorder %s130, %s133
    %p139 = scmp.eq.s32.totalorder %s10, 0
    %p140 = por %p138, %p139
    %p141 = scmp.ne.s32.totalorder %s130, %s133
    %p142 = scmp.eq.s32.totalorder %s15, 95
    %p143 = por %p141, %p142
    %p144 = scmp.ne.s32.totalorder %s133, %s134
    %p145 = scmp.eq.s32.totalorder %s15, 0
    %p146 = por %p144, %p145
    %p147 = scmp.ne.s32.totalorder %s133, %s134
    %p148 = scmp.eq.s32.totalorder %s16, 95
    %p149 = por %p147, %p148
    %p151 = scmp.ne.s32.totalorder %s134, %s150
    %p152 = scmp.eq.s32.totalorder %s16, 0
    %p153 = por %p151, %p152
    %s154 = ssub.s32 %s17, %s43
    %s155 = ssub.s32 %s18, %s39
    %s156 = sor.u32 %s154, %s155
    %s157 = ssub.s32 %s19, %s35
    %s158 = sor.u32 %s156, %s157
    %p159 = scmp.eq.s32.totalorder %s158, 0
    %s161 = sadd.s32 %s160, 1
    %s162 = scalar_select %p159, %s160, %s161
    %p165 = pneg %p159
    %p166 = scmp.eq.s32.totalorder %s10, 95
    %p167 = por %p165, %p166
    %p168 = scmp.ne.s32.totalorder %s160, %s163
    %p169 = scmp.eq.s32.totalorder %s10, 0
    %p170 = por %p168, %p169
    %p171 = scmp.ne.s32.totalorder %s160, %s163
    %p172 = scmp.eq.s32.totalorder %s15, 95
    %p173 = por %p171, %p172
    %p174 = scmp.ne.s32.totalorder %s163, %s164
    %p175 = scmp.eq.s32.totalorder %s15, 0
    %p176 = por %p174, %p175
    %p177 = scmp.ne.s32.totalorder %s163, %s164
    %p178 = scmp.eq.s32.totalorder %s16, 95
    %p179 = por %p177, %p178
    %p181 = scmp.ne.s32.totalorder %s164, %s180
    %p182 = scmp.eq.s32.totalorder %s16, 0
    %p183 = por %p181, %p182
    %p184 = scmp.le.s32.totalorder 1, %s10
    %p185 = scmp.lt.s32.totalorder %s10, 97
    %p186 = pnand %p184, %p185
    %p187 = pneg %p186
    // Predicated region
    $region9: #{inception_a_forward.12} parent=5 // pred_check
      _
    $region10: #{inception_a_forward.12} parent=5 // pred_check_branch
      %189 = sbr.rel (%p186) target = $region12
    $region11: #{inception_a_forward.12} parent=5 // pred_region
      %s190 = ssub.s32 %s10, 1
      // Predicated region
      $region13: #{inception_a_forward.12} parent=11 // pred_check
        %p191 = pneg %p120
      $region14: #{inception_a_forward.12} parent=11 // pred_check_branch
        %193 = sbr.rel (%p191) target = $region16
      $region15: #{inception_a_forward.12} parent=11 // pred_region
        %p194 = scmp.lt.s32.totalorder %s23, 0
        %s195 = scalar_select %p194, %s23, 0
        %s196 = scalar_lea.vmem %s2, %s195
      $region16: #{inception_a_forward.12} parent=11 // pred_fallthru
        _
      // Predicated region
      $region17: #{inception_a_forward.12} parent=11 // pred_check
        %p197 = pneg %p146
      $region18: #{inception_a_forward.12} parent=11 // pred_check_branch
        %199 = sbr.rel (%p197) target = $region20
      $region19: #{inception_a_forward.12} parent=11 // pred_region
        %p200 = scmp.lt.s32.totalorder %s23, 0
        %s201 = scalar_select %p200, %s23, 0
        %s202 = scalar_lea.vmem %s3, %s201
      $region20: #{inception_a_forward.12} parent=11 // pred_fallthru
        _
    $region12: #{inception_a_forward.12} parent=5 // pred_fallthru
      _
    %p203 = scmp.lt.s32.totalorder %s10, 96
    // Predicated region
    $region21: #{inception_a_forward.12} parent=5 // pred_check
      %p204 = pneg %p203
    $region22: #{inception_a_forward.12} parent=5 // pred_check_branch
      %206 = sbr.rel (%p204) target = $region24
    $region23: #{inception_a_forward.12} parent=5 // pred_region
      // Predicated region
      $region25: #{inception_a_forward.12} parent=23 // pred_check
        %p207 = pneg %p60
      $region26: #{inception_a_forward.12} parent=23 // pred_check_branch
        %209 = sbr.rel (%p207) target = $region28
      $region27: #{inception_a_forward.12} parent=23 // pred_region
        %s210 = sadd.s32 %s18, %s20
        %p211 = scmp.lt.s32.totalorder %s17, 1
        %s212 = scalar_select %p211, %s17, 1
        %p213 = scmp.lt.s32.totalorder %s210, 17
        %s214 = scalar_select %p213, %s210, 17
        %s215 = smul.addr %s214, 3
        %s216 = smul.addr %s212, 54
        %s217 = sadd.s32 %s215, %s216
        %s218 = smul.addr %s217, 4
        %s219 = scalar_lea.vmem %s0, %s218
        %s220 = sadd.s32 %s18, %s20
      $region28: #{inception_a_forward.12} parent=23 // pred_fallthru
        _
      // Predicated region
      $region29: #{inception_a_forward.12} parent=23 // pred_check
        %p221 = pneg %p88
      $region30: #{inception_a_forward.12} parent=23 // pred_check_branch
        %223 = sbr.rel (%p221) target = $region32
      $region31: #{inception_a_forward.12} parent=23 // pred_region
        %p224 = scmp.lt.s32.totalorder %s20, 2
        %s225 = scalar_select %p224, %s20, 2
        %p226 = scmp.lt.s32.totalorder %s19, 0
        %s227 = scalar_select %p226, %s19, 0
        %s228 = smul.addr %s225, 36
        %s229 = sadd.s32 %s227, %s228
        %s230 = smul.addr %s229, 4
        %s231 = scalar_lea.vmem %s1, %s230
      $region32: #{inception_a_forward.12} parent=23 // pred_fallthru
        _
    $region24: #{inception_a_forward.12} parent=5 // pred_fallthru
      _
    %p232 = scmp.le.s32.totalorder 1, %s10
    %p233 = scmp.lt.s32.totalorder %s10, 97
    %p234 = pnand %p232, %p233
    %p235 = pneg %p234
    // Predicated region
    $region33: #{inception_a_forward.12} parent=5 // pred_check
      _
    $region34: #{inception_a_forward.12} parent=5 // pred_check_branch
      %237 = sbr.rel (%p234) target = $region36
    $region35: #{inception_a_forward.12} parent=5 // pred_region
      %s238 = ssub.s32 %s10, 1
      %s239 = sadd.s32 %s22, %s24
      %p240 = scmp.lt.s32.totalorder %s21, 1
      %s241 = scalar_select %p240, %s21, 1
      %p242 = scmp.lt.s32.totalorder %s239, 17
      %s243 = scalar_select %p242, %s239, 17
      %s244 = smul.addr %s243, 3
      %s245 = smul.addr %s241, 54
      %s246 = sadd.s32 %s244, %s245
      %s247 = smul.addr %s246, 4
      %s248 = scalar_lea.vmem %s0, %s247
      %p249 = pneg %p66
      %p250 = pneg %p63
      %p251 = scmp.lt.s32.totalorder %s24, 2
      %s252 = scalar_select %p251, %s24, 2
      %p253 = scmp.lt.s32.totalorder %s23, 0
      %s254 = scalar_select %p253, %s23, 0
      %s255 = smul.addr %s252, 36
      %s256 = sadd.s32 %s254, %s255
      %s257 = smul.addr %s256, 4
      %s258 = scalar_lea.vmem %s1, %s257
      %p259 = pneg %p94
      %p260 = pneg %p91
      %p261 = scmp.lt.s32.totalorder %s23, 0
      %s262 = scalar_select %p261, %s23, 0
      %s263 = scalar_lea.vmem %s2, %s262
      %p264 = pneg %p120
      %p265 = pneg %p117
      %p266 = scmp.lt.s32.totalorder %s23, 0
      %s267 = scalar_select %p266, %s23, 0
      %s268 = scalar_lea.vmem %s3, %s267
      %p269 = pneg %p146
      %p270 = pneg %p143
      %p271 = pneg %p176
      %p272 = pneg %p173
      %p273 = scmp.lt.s32.totalorder %s21, 1
      %s274 = scalar_select %p273, %s21, 1
      %p275 = scmp.lt.s32.totalorder %s22, 15
      %s276 = scalar_select %p275, %s22, 15
      %p277 = scmp.lt.s32.totalorder %s23, 0
      %s278 = scalar_select %p277, %s23, 0
      %s279 = smul.addr %s276, 2
      %s280 = sadd.s32 %s278, %s279
      %s281 = smul.addr %s274, 32
      %s282 = sadd.s32 %s280, %s281
      %s283 = smul.addr %s282, 8
      %s284 = scalar_lea.vmem %s4, %s283
      %s285 = sadd.s32 %s22, %s24
      %p286 = scmp.lt.s32.totalorder %s21, 1
      %s287 = scalar_select %p286, %s21, 1
      %p288 = scmp.lt.s32.totalorder %s285, 17
      %s289 = scalar_select %p288, %s285, 17
      %s290 = smul.addr %s289, 3
      %s291 = smul.addr %s287, 54
      %s292 = sadd.s32 %s290, %s291
      %s293 = smul.addr %s292, 4
      %s294 = scalar_lea.vmem %s0, %s293
      %s295 = sadd.s32 %s22, %s24
      %p296 = scmp.lt.s32.totalorder %s24, 2
      %s297 = scalar_select %p296, %s24, 2
      %p298 = scmp.lt.s32.totalorder %s23, 0
      %s299 = scalar_select %p298, %s23, 0
      %s300 = smul.addr %s297, 36
      %s301 = sadd.s32 %s299, %s300
      %s302 = smul.addr %s301, 4
      %s303 = scalar_lea.vmem %s1, %s302
      %p304 = scmp.lt.s32.totalorder %s23, 0
      %s305 = scalar_select %p304, %s23, 0
      %s306 = scalar_lea.vmem %s2, %s305
      %p307 = scmp.lt.s32.totalorder %s23, 0
      %s308 = scalar_select %p307, %s23, 0
      %s309 = scalar_lea.vmem %s3, %s308
      %p310 = scmp.lt.s32.totalorder %s21, 1
      %s311 = scalar_select %p310, %s21, 1
      %p312 = scmp.lt.s32.totalorder %s22, 15
      %s313 = scalar_select %p312, %s22, 15
      %p314 = scmp.lt.s32.totalorder %s23, 0
      %s315 = scalar_select %p314, %s23, 0
      %s316 = smul.addr %s313, 2
      %s317 = sadd.s32 %s315, %s316
      %s318 = smul.addr %s311, 32
      %s319 = sadd.s32 %s317, %s318
      %s320 = smul.addr %s319, 8
      %s321 = scalar_lea.vmem %s4, %s320
      %p323 = scmp.eq.s32.totalorder %s24, 0
      // Predicated region
      $region37: #{inception_a_forward.12} parent=35 // pred_check
        %p324 = pneg %p323
      $region38: #{inception_a_forward.12} parent=35 // pred_check_branch
        %326 = sbr.rel (%p324) target = $region40
      $region39: #{inception_a_forward.12} parent=35 // pred_region
        %327 = vst [vmem:[#allocation2] sm:$0xff] 0.0
        %328 = vst [vmem:[#allocation2 + $0x8] sm:$0xff] 0.0
      $region40: #{inception_a_forward.12} parent=35 // pred_fallthru
        _
      %v329 = vld [vmem:[%s294] sm:$0xf]
      %v330 = vld [vmem:[%s294 + $0x4] sm:$0xf]
      %v331 = vld [vmem:[%s294 + $0x8] sm:$0x1]
      %v332 = vld [vmem:[#allocation2] sm:$0xff]
      %v333 = vld [vmem:[#allocation2 + $0x8] sm:$0xff]
      %v334 = vld [vmem:[%s303] sm:$0xf]
      %v335 = vld [vmem:[%s303 + $0x4] sm:$0xf]
      %v336 = vld [vmem:[%s303 + $0x8] sm:$0xf]
      %v337 = vld [vmem:[%s303 + $0xc] sm:$0xf]
      %v338 = vld [vmem:[%s303 + $0x10] sm:$0xf]
      %v339 = vld [vmem:[%s303 + $0x14] sm:$0xf]
      %v340 = vld [vmem:[%s303 + $0x18] sm:$0xf]
      %v341 = vld [vmem:[%s303 + $0x1c] sm:$0xf]
      %v342 = vld [vmem:[%s303 + $0x20] sm:$0xf]
      %v343 = vld [vmem:[%s303 + $0x24] sm:$0xf]
      %v344 = vld [vmem:[%s303 + $0x28] sm:$0xf]
      %v345 = vld [vmem:[%s303 + $0x2c] sm:$0xf]
      %v348 = vunpack.c.l.b16 %v329
      %v349 = vunpack.c.l.b16 %v330
      %v350 = vpack.c.b16 %v349, %v348
      %v363 = vunpack.c.l.b16 %v334
      %v364 = vunpack.c.l.b16 %v335
      %v365 = vunpack.c.l.b16 %v336
      %v366 = vunpack.c.l.b16 %v337
      %v367 = vunpack.c.l.b16 %v338
      %v368 = vunpack.c.l.b16 %v339
      %v369 = vunpack.c.l.b16 %v340
      %v370 = vunpack.c.l.b16 %v341
      %v371 = vunpack.c.l.b16 %v342
      %v372 = vunpack.c.l.b16 %v343
      %v373 = vunpack.c.l.b16 %v344
      %v374 = vunpack.c.l.b16 %v345
      %v375 = vpack.c.b16 %v364, %v363
      %v376 = vpack.c.b16 %v366, %v365
      %v377 = vpack.c.b16 %v368, %v367
      %v378 = vpack.c.b16 %v370, %v369
      %v379 = vpack.c.b16 %v372, %v371
      %v380 = vpack.c.b16 %v374, %v373
      %vm387 = vcmask 785408
      %v389 = vsel %vm387, %v350, 0
      %391 = vmatprep.subr.bf16.mxu0 0
      %392 = vmatpush1.bf16.msra.mxu0 0
      %393 = vmatprep.subr.bf16.mxu0 0
      %394 = vmatpush1.bf16.msra.mxu0 0
      %395 = vmatprep.subr.bf16.mxu0 0
      %396 = vmatpush1.bf16.msra.mxu0 %v380
      %397 = vmatprep.subr.bf16.mxu0 0
      %398 = vmatpush1.bf16.msra.mxu0 %v379
      %399 = vmatprep.subr.bf16.mxu0 0
      %400 = vmatpush1.bf16.msra.mxu0 %v378
      %401 = vmatprep.subr.bf16.mxu0 0
      %402 = vmatpush1.bf16.msra.mxu0 %v377
      %403 = vmatprep.subr.bf16.mxu0 0
      %404 = vmatpush1.bf16.msra.mxu0 %v376
      %405 = vmatprep.subr.bf16.mxu0 0
      %406 = vmatpush1.bf16.msra.mxu0 %v375
      %407 = vmatprep.subr.bf16.mxu0 0
      %408 = vmatpush2.bf16.msra.mxu0 0
      %409 = vmatprep.subr.bf16.mxu0 0
      %410 = vmatpush2.bf16.msra.mxu0 0
      %411 = vmatprep.subr.bf16.mxu0 0
      %412 = vmatpush2.bf16.msra.mxu0 0
      %413 = vmatprep.subr.bf16.mxu0 0
      %414 = vmatpush2.bf16.msra.mxu0 0
      %415 = vmatprep.subr.bf16.mxu0 0
      %416 = vmatpush2.bf16.msra.mxu0 0
      %417 = vmatprep.subr.bf16.mxu0 0
      %418 = vmatpush2.bf16.msra.mxu0 0
      %419 = vmatprep.subr.bf16.mxu0 0
      %420 = vmatpush2.bf16.msra.mxu0 0
      %421 = vmatprep.subr.bf16.mxu0 0
      %422 = vmatpush2.bf16.msra.mxu0 0
      %423 = vmatprep.mubr.bf16.mxu0 0
      %424 = vmatmul.mubr.bf16.gmra.mxu0 %v389
      %v425 = vpop.f32.mrf.mxu0
      %v426 = vadd.f32 0.0, %v425
      %v427 = vpop.f32.mrf.mxu0
      %v428 = vpop.f32.mrf.mxu0
      %v429 = vadd.f32 0.0, %v428
      %v430 = vpop.f32.mrf.mxu0
      %431 = vdwg.mxu0
      %v432 = vadd.f32 %v332, %v426
      %v433 = vadd.f32 %v333, %v429
      %s434 = scalar_lea.vmem %s303, 48
      %v435 = vld [vmem:[%s434] sm:$0xf]
      %v436 = vld [vmem:[%s434 + $0x4] sm:$0xf]
      %v437 = vld [vmem:[%s434 + $0x8] sm:$0xf]
      %v438 = vld [vmem:[%s434 + $0xc] sm:$0xf]
      %v439 = vld [vmem:[%s434 + $0x10] sm:$0xf]
      %v440 = vld [vmem:[%s434 + $0x14] sm:$0xf]
      %v441 = vld [vmem:[%s434 + $0x18] sm:$0xf]
      %v442 = vld [vmem:[%s434 + $0x1c] sm:$0xf]
      %v443 = vld [vmem:[%s434 + $0x20] sm:$0xf]
      %v444 = vld [vmem:[%s434 + $0x24] sm:$0xf]
      %v445 = vld [vmem:[%s434 + $0x28] sm:$0xf]
      %v446 = vld [vmem:[%s434 + $0x2c] sm:$0xf]
      %v448 = vunpack.c.l.b16 %v331
      %v449 = vpack.c.b16 %v448, %v448
      %vm450 = vsmask.f32 7424
      %v451 = vshrl.u32 %v350, 16
      %v453 = vshll.u32 %v350, 16
      %v455 = vrot.slane %v453, 1
      %v456 = vor.u32 %v451, %v455
      %v458 = vshll.u32 %v449, 16
      %v460 = vrot.slane %v458, 1
      %v461 = vsel %vm450, %v456, %v460
      %v474 = vunpack.c.l.b16 %v435
      %v475 = vunpack.c.l.b16 %v436
      %v476 = vunpack.c.l.b16 %v437
      %v477 = vunpack.c.l.b16 %v438
      %v478 = vunpack.c.l.b16 %v439
      %v479 = vunpack.c.l.b16 %v440
      %v480 = vunpack.c.l.b16 %v441
      %v481 = vunpack.c.l.b16 %v442
      %v482 = vunpack.c.l.b16 %v443
      %v483 = vunpack.c.l.b16 %v444
      %v484 = vunpack.c.l.b16 %v445
      %v485 = vunpack.c.l.b16 %v446
      %v486 = vpack.c.b16 %v475, %v474
      %v487 = vpack.c.b16 %v477, %v476
      %v488 = vpack.c.b16 %v479, %v478
      %v489 = vpack.c.b16 %v481, %v480
      %v490 = vpack.c.b16 %v483, %v482
      %v491 = vpack.c.b16 %v485, %v484
      %v499 = vsel %vm387, %v461, 0
      %501 = vmatprep.subr.bf16.mxu0 0
      %502 = vmatpush1.bf16.msra.mxu0 0
      %503 = vmatprep.subr.bf16.mxu0 0
      %504 = vmatpush1.bf16.msra.mxu0 0
      %505 = vmatprep.subr.bf16.mxu0 0
      %506 = vmatpush1.bf16.msra.mxu0 %v491
      %507 = vmatprep.subr.bf16.mxu0 0
      %508 = vmatpush1.bf16.msra.mxu0 %v490
      %509 = vmatprep.subr.bf16.mxu0 0
      %510 = vmatpush1.bf16.msra.mxu0 %v489
      %511 = vmatprep.subr.bf16.mxu0 0
      %512 = vmatpush1.bf16.msra.mxu0 %v488
      %513 = vmatprep.subr.bf16.mxu0 0
      %514 = vmatpush1.bf16.msra.mxu0 %v487
      %515 = vmatprep.subr.bf16.mxu0 0
      %516 = vmatpush1.bf16.msra.mxu0 %v486
      %517 = vmatprep.subr.bf16.mxu0 0
      %518 = vmatpush2.bf16.msra.mxu0 0
      %519 = vmatprep.subr.bf16.mxu0 0
      %520 = vmatpush2.bf16.msra.mxu0 0
      %521 = vmatprep.subr.bf16.mxu0 0
      %522 = vmatpush2.bf16.msra.mxu0 0
      %523 = vmatprep.subr.bf16.mxu0 0
      %524 = vmatpush2.bf16.msra.mxu0 0
      %525 = vmatprep.subr.bf16.mxu0 0
      %526 = vmatpush2.bf16.msra.mxu0 0
      %527 = vmatprep.subr.bf16.mxu0 0
      %528 = vmatpush2.bf16.msra.mxu0 0
      %529 = vmatprep.subr.bf16.mxu0 0
      %530 = vmatpush2.bf16.msra.mxu0 0
      %531 = vmatprep.subr.bf16.mxu0 0
      %532 = vmatpush2.bf16.msra.mxu0 0
      %533 = vmatprep.mubr.bf16.mxu0 0
      %534 = vmatmul.mubr.bf16.gmra.mxu0 %v499
      %v535 = vpop.f32.mrf.mxu0
      %v536 = vadd.f32 0.0, %v535
      %v537 = vpop.f32.mrf.mxu0
      %v538 = vpop.f32.mrf.mxu0
      %v539 = vadd.f32 0.0, %v538
      %v540 = vpop.f32.mrf.mxu0
      %541 = vdwg.mxu0
      %v542 = vadd.f32 %v432, %v536
      %v543 = vadd.f32 %v433, %v539
      %s544 = scalar_lea.vmem %s303, 96
      %v545 = vld [vmem:[%s544] sm:$0xf]
      %v546 = vld [vmem:[%s544 + $0x4] sm:$0xf]
      %v547 = vld [vmem:[%s544 + $0x8] sm:$0xf]
      %v548 = vld [vmem:[%s544 + $0xc] sm:$0xf]
      %v549 = vld [vmem:[%s544 + $0x10] sm:$0xf]
      %v550 = vld [vmem:[%s544 + $0x14] sm:$0xf]
      %v551 = vld [vmem:[%s544 + $0x18] sm:$0xf]
      %v552 = vld [vmem:[%s544 + $0x1c] sm:$0xf]
      %v553 = vld [vmem:[%s544 + $0x20] sm:$0xf]
      %v554 = vld [vmem:[%s544 + $0x24] sm:$0xf]
      %v555 = vld [vmem:[%s544 + $0x28] sm:$0xf]
      %v556 = vld [vmem:[%s544 + $0x2c] sm:$0xf]
      %vm557 = vcmask 1046528
      %v558 = vrot.slane %v350, 1
      %v559 = vrot.slane %v449, 1
      %v560 = vsel %vm557, %v558, %v559
      %v573 = vunpack.c.l.b16 %v545
      %v574 = vunpack.c.l.b16 %v546
      %v575 = vunpack.c.l.b16 %v547
      %v576 = vunpack.c.l.b16 %v548
      %v577 = vunpack.c.l.b16 %v549
      %v578 = vunpack.c.l.b16 %v550
      %v579 = vunpack.c.l.b16 %v551
      %v580 = vunpack.c.l.b16 %v552
      %v581 = vunpack.c.l.b16 %v553
      %v582 = vunpack.c.l.b16 %v554
      %v583 = vunpack.c.l.b16 %v555
      %v584 = vunpack.c.l.b16 %v556
      %v585 = vpack.c.b16 %v574, %v573
      %v586 = vpack.c.b16 %v576, %v575
      %v587 = vpack.c.b16 %v578, %v577
      %v588 = vpack.c.b16 %v580, %v579
      %v589 = vpack.c.b16 %v582, %v581
      %v590 = vpack.c.b16 %v584, %v583
      %v598 = vsel %vm387, %v560, 0
      %600 = vmatprep.subr.bf16.mxu0 0
      %601 = vmatpush1.bf16.msra.mxu0 0
      %602 = vmatprep.subr.bf16.mxu0 0
      %603 = vmatpush1.bf16.msra.mxu0 0
      %604 = vmatprep.subr.bf16.mxu0 0
      %605 = vmatpush1.bf16.msra.mxu0 %v590
      %606 = vmatprep.subr.bf16.mxu0 0
      %607 = vmatpush1.bf16.msra.mxu0 %v589
      %608 = vmatprep.subr.bf16.mxu0 0
      %609 = vmatpush1.bf16.msra.mxu0 %v588
      %610 = vmatprep.subr.bf16.mxu0 0
      %611 = vmatpush1.bf16.msra.mxu0 %v587
      %612 = vmatprep.subr.bf16.mxu0 0
      %613 = vmatpush1.bf16.msra.mxu0 %v586
      %614 = vmatprep.subr.bf16.mxu0 0
      %615 = vmatpush1.bf16.msra.mxu0 %v585
      %616 = vmatprep.subr.bf16.mxu0 0
      %617 = vmatpush2.bf16.msra.mxu0 0
      %618 = vmatprep.subr.bf16.mxu0 0
      %619 = vmatpush2.bf16.msra.mxu0 0
      %620 = vmatprep.subr.bf16.mxu0 0
      %621 = vmatpush2.bf16.msra.mxu0 0
      %622 = vmatprep.subr.bf16.mxu0 0
      %623 = vmatpush2.bf16.msra.mxu0 0
      %624 = vmatprep.subr.bf16.mxu0 0
      %625 = vmatpush2.bf16.msra.mxu0 0
      %626 = vmatprep.subr.bf16.mxu0 0
      %627 = vmatpush2.bf16.msra.mxu0 0
      %628 = vmatprep.subr.bf16.mxu0 0
      %629 = vmatpush2.bf16.msra.mxu0 0
      %630 = vmatprep.subr.bf16.mxu0 0
      %631 = vmatpush2.bf16.msra.mxu0 0
      %632 = vmatprep.mubr.bf16.mxu0 0
      %633 = vmatmul.mubr.bf16.gmra.mxu0 %v598
      %v634 = vpop.f32.mrf.mxu0
      %v635 = vadd.f32 0.0, %v634
      %v636 = vpop.f32.mrf.mxu0
      %v637 = vpop.f32.mrf.mxu0
      %v638 = vadd.f32 0.0, %v637
      %v639 = vpop.f32.mrf.mxu0
      %640 = vdwg.mxu0
      %v641 = vadd.f32 %v542, %v635
      %v642 = vadd.f32 %v543, %v638
      %643 = vst [vmem:[#allocation2] sm:$0xff] %v641
      %644 = vst [vmem:[#allocation2 + $0x8] sm:$0xff] %v642
      %p645 = scmp.eq.s32.totalorder %s24, 2
      // Predicated region
      $region41: #{inception_a_forward.12} parent=35 // pred_check
        %p646 = pneg %p645
      $region42: #{inception_a_forward.12} parent=35 // pred_check_branch
        %648 = sbr.rel (%p646) target = $region44
      $region43: #{inception_a_forward.12} parent=35 // pred_region
        %v649 = vld [vmem:[#allocation2] sm:$0xff]
        %v650 = vld [vmem:[#allocation2 + $0x8] sm:$0xff]
        %v651 = vld [vmem:[%s306] sm:$0x1]
        %v653 = vlaneseq
        %v654 = vshrl.u32 %v653, 7
        %v655 = vsub.s32 0, %v654
        %v656 = vrot.slane %v651, %v655
        %v658 = vmul.f32 %v649, %v656
        %v659 = vmul.f32 %v650, %v656
        %v660 = vld [vmem:[%s309] sm:$0x1]
        %v662 = vlaneseq
        %v663 = vshrl.u32 %v662, 7
        %v664 = vsub.s32 0, %v663
        %v665 = vrot.slane %v660, %v664
        %v667 = vadd.f32 %v658, %v665
        %v668 = vadd.f32 %v659, %v665
        %v669 = vmax.f32 %v667, 0.0
        %v670 = vmax.f32 %v668, 0.0
        %671 = vst [vmem:[%s321] sm:$0xff] %v669
        %672 = vst [vmem:[%s321 + $0x8] sm:$0xff] %v670
      $region44: #{inception_a_forward.12} parent=35 // pred_fallthru
        _
      %p673 = scmp.lt.s32.totalorder %s21, 1
      %s674 = scalar_select %p673, %s21, 1
      %p675 = scmp.lt.s32.totalorder %s22, 15
      %s676 = scalar_select %p675, %s22, 15
      %p677 = scmp.lt.s32.totalorder %s23, 0
      %s678 = scalar_select %p677, %s23, 0
      %s679 = smul.addr %s676, 2
      %s680 = sadd.s32 %s678, %s679
      %s681 = smul.addr %s674, 32
      %s682 = sadd.s32 %s680, %s681
      %s683 = smul.addr %s682, 8
      %s684 = scalar_lea.vmem %s4, %s683
      // Predicated region
      $region45: #{inception_a_forward.12} parent=35 // pred_check
        %p685 = pneg %p173
      $region46: #{inception_a_forward.12} parent=35 // pred_check_branch
        %687 = sbr.rel (%p685) target = $region48
      $region47: #{inception_a_forward.12} parent=35 // pred_region
        _
      $region48: #{inception_a_forward.12} parent=35 // pred_fallthru
        _
    $region36: #{inception_a_forward.12} parent=5 // pred_fallthru
      _
    %p688 = scmp.le.s32.totalorder 2, %s10
    // Predicated region
    $region49: #{inception_a_forward.12} parent=5 // pred_check
      %p689 = pneg %p688
    $region50: #{inception_a_forward.12} parent=5 // pred_check_branch
      %691 = sbr.rel (%p689) target = $region52
    $region51: #{inception_a_forward.12} parent=5 // pred_region
      %s692 = ssub.s32 %s10, 2
      // Predicated region
      $region53: #{inception_a_forward.12} parent=51 // pred_check
        %p693 = pneg %p179
      $region54: #{inception_a_forward.12} parent=51 // pred_check_branch
        %695 = sbr.rel (%p693) target = $region56
      $region55: #{inception_a_forward.12} parent=51 // pred_region
        %p696 = scmp.lt.s32.totalorder %s25, 1
        %s697 = scalar_select %p696, %s25, 1
        %p698 = scmp.lt.s32.totalorder %s26, 15
        %s699 = scalar_select %p698, %s26, 15
        %p700 = scmp.lt.s32.totalorder %s27, 0
        %s701 = scalar_select %p700, %s27, 0
        %s702 = smul.addr %s699, 2
        %s703 = sadd.s32 %s701, %s702
        %s704 = smul.addr %s697, 32
        %s705 = sadd.s32 %s703, %s704
        %s706 = smul.addr %s705, 8
        %s707 = scalar_lea.vmem %s4, %s706
      $region56: #{inception_a_forward.12} parent=51 // pred_fallthru
        _
    $region52: #{inception_a_forward.12} parent=5 // pred_fallthru
      _
  $region6: #{inception_a_forward.12} parent=0 // loop_footer
    %s14 = sadd.s32 1, %s10
  $region7: #{inception_a_forward.12} parent=0 // loop_footer_branch
    %9 = sbr.rel target = $region3
  $region8: #{inception_a_forward.12} parent=0 // loop_exit
    _

// kernel: inception_a_forward.9
$region0: #{inception_a_forward.9}
  #allocation0 [shape = 'u32[]', space=smem, size = 0x4, offset = 0x4, fixed_abs, tag = 'smem constant byte address 0x4 - core index']
  #allocation1 [shape = 'u32[144,128]{1,0:T(1,128)}', space=vmem, size = 0x12000, scoped, tag = 'internal scratch']
  #allocation2 [shape = 'f32[16,128]{1,0:T(8,128)}', space=vmem, size = 0x2000, scoped, tag = 'scratch operand']
  %s0 = inlined_call_operand.vmem [shape: bf16[2,20,20,48], index: 0, kind: input, shape index: {}]
  %s1 = inlined_call_operand.vmem [shape: bf16[5,5,48,128], index: 1, kind: input, shape index: {}]
  %s2 = inlined_call_operand.vmem [shape: f32[1,128], index: 2, kind: input, shape index: {}]
  %s3 = inlined_call_operand.vmem [shape: f32[1,128], index: 3, kind: input, shape index: {}]
  %s4 = inlined_call_operand.vmem [shape: f32[2,16,16,128], index: 4, kind: output, shape index: {}]
  %s5 = sld [smem:[#allocation0]]
  $region57: #{inception_a_forward.9} parent=0
    _
  %s7 = ssub.s32 1, %s5
  %s8 = scalar_select 0, %s7, %s5
  loop: start=0, step=1, limit=162
  $region2: #{inception_a_forward.9} parent=0 // loop_pre_header
    _
  $region3: #{inception_a_forward.9} parent=0 // loop_header
    %s10 = sphi 0, %s14
    %p11 = scmp.ge.s32.totalorder %s10, 162
    %s17 = sphi 0, %s43
    %s18 = sphi 0, %s39
    %s19 = sphi 0, %s35
    %s20 = sphi 0, %s31
    %s21 = sphi 0, %s17
    %s22 = sphi 0, %s18
    %s23 = sphi 0, %s19
    %s24 = sphi 0, %s20
    %s25 = sphi 0, %s21
    %s26 = sphi 0, %s22
    %s27 = sphi 0, %s23
    %s28 = sphi 0, %s24
    %s50 = sphi 0, %s52
    %s53 = sphi 0, %s50
    %s54 = sphi 0, %s53
    %s70 = sphi 0, %s54
    %s78 = sphi 0, %s80
    %s81 = sphi 0, %s78
    %s82 = sphi 0, %s81
    %s98 = sphi 0, %s82
    %s104 = sphi 0, %s106
    %s107 = sphi 0, %s104
    %s108 = sphi 0, %s107
    %s124 = sphi 0, %s108
    %s130 = sphi 0, %s132
    %s133 = sphi 0, %s130
    %s134 = sphi 0, %s133
    %s150 = sphi 0, %s134
    %s160 = sphi 0, %s162
    %s163 = sphi 0, %s160
    %s164 = sphi 0, %s163
    %s180 = sphi 0, %s164
  $region4: #{inception_a_forward.9} parent=0 // loop_header_branch
    %13 = sbr.rel (%p11) target = $region8
  $region5: #{inception_a_forward.9} parent=0 // loop_body
    %s15 = ssub.s32 %s10, 1
    %s16 = ssub.s32 %s10, 2
    %s29 = sadd.s32 1, %s20
    %p30 = scmp.ge.s32.totalorder %s29, 5
    %s31 = scalar_select %p30, 0, %s29
    %s32 = sadd.s32 1, %s19
    %s33 = scalar_select %p30, %s32, %s19
    %p34 = scmp.ge.s32.totalorder %s33, 1
    %s35 = scalar_select %p34, 0, %s33
    %s36 = sadd.s32 1, %s18
    %s37 = scalar_select %p34, %s36, %s18
    %p38 = scmp.ge.s32.totalorder %s37, 16
    %s39 = scalar_select %p38, 0, %s37
    %s40 = sadd.s32 1, %s17
    %s41 = scalar_select %p38, %s40, %s17
    %p42 = scmp.ge.s32.totalorder %s41, 2
    %s43 = scalar_select %p42, 0, %s41
    %s44 = sadd.s32 %s18, %s20
    %s45 = sadd.s32 %s39, %s31
    %s46 = ssub.s32 %s17, %s43
    %s47 = ssub.s32 %s44, %s45
    %s48 = sor.u32 %s46, %s47
    %p49 = scmp.eq.s32.totalorder %s48, 0
    %s51 = sadd.s32 %s50, 1
    %s52 = scalar_select %p49, %s50, %s51
    %p55 = pneg %p49
    %p56 = scmp.eq.s32.totalorder %s10, 159
    %p57 = por %p55, %p56
    %p58 = scmp.ne.s32.totalorder %s50, %s53
    %p59 = scmp.eq.s32.totalorder %s10, 0
    %p60 = por %p58, %p59
    %p61 = scmp.ne.s32.totalorder %s50, %s53
    %p62 = scmp.eq.s32.totalorder %s15, 159
    %p63 = por %p61, %p62
    %p64 = scmp.ne.s32.totalorder %s53, %s54
    %p65 = scmp.eq.s32.totalorder %s15, 0
    %p66 = por %p64, %p65
    %p67 = scmp.ne.s32.totalorder %s53, %s54
    %p68 = scmp.eq.s32.totalorder %s16, 159
    %p69 = por %p67, %p68
    %p71 = scmp.ne.s32.totalorder %s54, %s70
    %p72 = scmp.eq.s32.totalorder %s16, 0
    %p73 = por %p71, %p72
    %s74 = ssub.s32 %s20, %s31
    %s75 = ssub.s32 %s19, %s35
    %s76 = sor.u32 %s74, %s75
    %p77 = scmp.eq.s32.totalorder %s76, 0
    %s79 = sadd.s32 %s78, 1
    %s80 = scalar_select %p77, %s78, %s79
    %p83 = pneg %p77
    %p84 = scmp.eq.s32.totalorder %s10, 159
    %p85 = por %p83, %p84
    %p86 = scmp.ne.s32.totalorder %s78, %s81
    %p87 = scmp.eq.s32.totalorder %s10, 0
    %p88 = por %p86, %p87
    %p89 = scmp.ne.s32.totalorder %s78, %s81
    %p90 = scmp.eq.s32.totalorder %s15, 159
    %p91 = por %p89, %p90
    %p92 = scmp.ne.s32.totalorder %s81, %s82
    %p93 = scmp.eq.s32.totalorder %s15, 0
    %p94 = por %p92, %p93
    %p95 = scmp.ne.s32.totalorder %s81, %s82
    %p96 = scmp.eq.s32.totalorder %s16, 159
    %p97 = por %p95, %p96
    %p99 = scmp.ne.s32.totalorder %s82, %s98
    %p100 = scmp.eq.s32.totalorder %s16, 0
    %p101 = por %p99, %p100
    %s102 = ssub.s32 %s19, %s35
    %p103 = scmp.eq.s32.totalorder %s102, 0
    %s105 = sadd.s32 %s104, 1
    %s106 = scalar_select %p103, %s104, %s105
    %p109 = pneg %p103
    %p110 = scmp.eq.s32.totalorder %s10, 159
    %p111 = por %p109, %p110
    %p112 = scmp.ne.s32.totalorder %s104, %s107
    %p113 = scmp.eq.s32.totalorder %s10, 0
    %p114 = por %p112, %p113
    %p115 = scmp.ne.s32.totalorder %s104, %s107
    %p116 = scmp.eq.s32.totalorder %s15, 159
    %p117 = por %p115, %p116
    %p118 = scmp.ne.s32.totalorder %s107, %s108
    %p119 = scmp.eq.s32.totalorder %s15, 0
    %p120 = por %p118, %p119
    %p121 = scmp.ne.s32.totalorder %s107, %s108
    %p122 = scmp.eq.s32.totalorder %s16, 159
    %p123 = por %p121, %p122
    %p125 = scmp.ne.s32.totalorder %s108, %s124
    %p126 = scmp.eq.s32.totalorder %s16, 0
    %p127 = por %p125, %p126
    %s128 = ssub.s32 %s19, %s35
    %p129 = scmp.eq.s32.totalorder %s128, 0
    %s131 = sadd.s32 %s130, 1
    %s132 = scalar_select %p129, %s130, %s131
    %p135 = pneg %p129
    %p136 = scmp.eq.s32.totalorder %s10, 159
    %p137 = por %p135, %p136
    %p138 = scmp.ne.s32.totalorder %s130, %s133
    %p139 = scmp.eq.s32.totalorder %s10, 0
    %p140 = por %p138, %p139
    %p141 = scmp.ne.s32.totalorder %s130, %s133
    %p142 = scmp.eq.s32.totalorder %s15, 159
    %p143 = por %p141, %p142
    %p144 = scmp.ne.s32.totalorder %s133, %s134
    %p145 = scmp.eq.s32.totalorder %s15, 0
    %p146 = por %p144, %p145
    %p147 = scmp.ne.s32.totalorder %s133, %s134
    %p148 = scmp.eq.s32.totalorder %s16, 159
    %p149 = por %p147, %p148
    %p151 = scmp.ne.s32.totalorder %s134, %s150
    %p152 = scmp.eq.s32.totalorder %s16, 0
    %p153 = por %p151, %p152
    %s154 = ssub.s32 %s17, %s43
    %s155 = ssub.s32 %s18, %s39
    %s156 = sor.u32 %s154, %s155
    %s157 = ssub.s32 %s19, %s35
    %s158 = sor.u32 %s156, %s157
    %p159 = scmp.eq.s32.totalorder %s158, 0
    %s161 = sadd.s32 %s160, 1
    %s162 = scalar_select %p159, %s160, %s161
    %p165 = pneg %p159
    %p166 = scmp.eq.s32.totalorder %s10, 159
    %p167 = por %p165, %p166
    %p168 = scmp.ne.s32.totalorder %s160, %s163
    %p169 = scmp.eq.s32.totalorder %s10, 0
    %p170 = por %p168, %p169
    %p171 = scmp.ne.s32.totalorder %s160, %s163
    %p172 = scmp.eq.s32.totalorder %s15, 159
    %p173 = por %p171, %p172
    %p174 = scmp.ne.s32.totalorder %s163, %s164
    %p175 = scmp.eq.s32.totalorder %s15, 0
    %p176 = por %p174, %p175
    %p177 = scmp.ne.s32.totalorder %s163, %s164
    %p178 = scmp.eq.s32.totalorder %s16, 159
    %p179 = por %p177, %p178
    %p181 = scmp.ne.s32.totalorder %s164, %s180
    %p182 = scmp.eq.s32.totalorder %s16, 0
    %p183 = por %p181, %p182
    %p184 = scmp.le.s32.totalorder 1, %s10
    %p185 = scmp.lt.s32.totalorder %s10, 161
    %p186 = pnand %p184, %p185
    %p187 = pneg %p186
    // Predicated region
    $region9: #{inception_a_forward.9} parent=5 // pred_check
      _
    $region10: #{inception_a_forward.9} parent=5 // pred_check_branch
      %189 = sbr.rel (%p186) target = $region12
    $region11: #{inception_a_forward.9} parent=5 // pred_region
      %s190 = ssub.s32 %s10, 1
      // Predicated region
      $region13: #{inception_a_forward.9} parent=11 // pred_check
        %p191 = pneg %p120
      $region14: #{inception_a_forward.9} parent=11 // pred_check_branch
        %193 = sbr.rel (%p191) target = $region16
      $region15: #{inception_a_forward.9} parent=11 // pred_region
        %p194 = scmp.lt.s32.totalorder %s23, 0
        %s195 = scalar_select %p194, %s23, 0
        %s196 = scalar_lea.vmem %s2, %s195
      $region16: #{inception_a_forward.9} parent=11 // pred_fallthru
        _
      // Predicated region
      $region17: #{inception_a_forward.9} parent=11 // pred_check
        %p197 = pneg %p146
      $region18: #{inception_a_forward.9} parent=11 // pred_check_branch
        %199 = sbr.rel (%p197) target = $region20
      $region19: #{inception_a_forward.9} parent=11 // pred_region
        %p200 = scmp.lt.s32.totalorder %s23, 0
        %s201 = scalar_select %p200, %s23, 0
        %s202 = scalar_lea.vmem %s3, %s201
      $region20: #{inception_a_forward.9} parent=11 // pred_fallthru
        _
    $region12: #{inception_a_forward.9} parent=5 // pred_fallthru
      _
    %p203 = scmp.lt.s32.totalorder %s10, 160
    // Predicated region
    $region21: #{inception_a_forward.9} parent=5 // pred_check
      %p204 = pneg %p203
    $region22: #{inception_a_forward.9} parent=5 // pred_check_branch
      %206 = sbr.rel (%p204) target = $region24
    $region23: #{inception_a_forward.9} parent=5 // pred_region
      // Predicated region
      $region25: #{inception_a_forward.9} parent=23 // pred_check
        %p207 = pneg %p60
      $region26: #{inception_a_forward.9} parent=23 // pred_check_branch
        %209 = sbr.rel (%p207) target = $region28
      $region27: #{inception_a_forward.9} parent=23 // pred_region
        %s210 = sadd.s32 %s18, %s20
        %p211 = scmp.lt.s32.totalorder %s17, 1
        %s212 = scalar_select %p211, %s17, 1
        %p213 = scmp.lt.s32.totalorder %s210, 19
        %s214 = scalar_select %p213, %s210, 19
        %s215 = smul.addr %s214, 3
        %s216 = smul.addr %s212, 60
        %s217 = sadd.s32 %s215, %s216
        %s218 = smul.addr %s217, 4
        %s219 = scalar_lea.vmem %s0, %s218
        %s220 = sadd.s32 %s18, %s20
      $region28: #{inception_a_forward.9} parent=23 // pred_fallthru
        _
      // Predicated region
      $region29: #{inception_a_forward.9} parent=23 // pred_check
        %p221 = pneg %p88
      $region30: #{inception_a_forward.9} parent=23 // pred_check_branch
        %223 = sbr.rel (%p221) target = $region32
      $region31: #{inception_a_forward.9} parent=23 // pred_region
        %p224 = scmp.lt.s32.totalorder %s20, 4
        %s225 = scalar_select %p224, %s20, 4
        %p226 = scmp.lt.s32.totalorder %s19, 0
        %s227 = scalar_select %p226, %s19, 0
        %s228 = smul.addr %s225, 30
        %s229 = sadd.s32 %s227, %s228
        %s230 = smul.addr %s229, 4
        %s231 = scalar_lea.vmem %s1, %s230
      $region32: #{inception_a_forward.9} parent=23 // pred_fallthru
        _
    $region24: #{inception_a_forward.9} parent=5 // pred_fallthru
      _
    %p232 = scmp.le.s32.totalorder 1, %s10
    %p233 = scmp.lt.s32.totalorder %s10, 161
    %p234 = pnand %p232, %p233
    %p235 = pneg %p234
    // Predicated region
    $region33: #{inception_a_forward.9} parent=5 // pred_check
      _
    $region34: #{inception_a_forward.9} parent=5 // pred_check_branch
      %237 = sbr.rel (%p234) target = $region36
    $region35: #{inception_a_forward.9} parent=5 // pred_region
      %s238 = ssub.s32 %s10, 1
      %s239 = sadd.s32 %s22, %s24
      %p240 = scmp.lt.s32.totalorder %s21, 1
      %s241 = scalar_select %p240, %s21, 1
      %p242 = scmp.lt.s32.totalorder %s239, 19
      %s243 = scalar_select %p242, %s239, 19
      %s244 = smul.addr %s243, 3
      %s245 = smul.addr %s241, 60
      %s246 = sadd.s32 %s244, %s245
      %s247 = smul.addr %s246, 4
      %s248 = scalar_lea.vmem %s0, %s247
      %p249 = pneg %p66
      %p250 = pneg %p63
      %p251 = scmp.lt.s32.totalorder %s24, 4
      %s252 = scalar_select %p251, %s24, 4
      %p253 = scmp.lt.s32.totalorder %s23, 0
      %s254 = scalar_select %p253, %s23, 0
      %s255 = smul.addr %s252, 30
      %s256 = sadd.s32 %s254, %s255
      %s257 = smul.addr %s256, 4
      %s258 = scalar_lea.vmem %s1, %s257
      %p259 = pneg %p94
      %p260 = pneg %p91
      %p261 = scmp.lt.s32.totalorder %s23, 0
      %s262 = scalar_select %p261, %s23, 0
      %s263 = scalar_lea.vmem %s2, %s262
      %p264 = pneg %p120
      %p265 = pneg %p117
      %p266 = scmp.lt.s32.totalorder %s23, 0
      %s267 = scalar_select %p266, %s23, 0
      %s268 = scalar_lea.vmem %s3, %s267
      %p269 = pneg %p146
      %p270 = pneg %p143
      %p271 = pneg %p176
      %p272 = pneg %p173
      %p273 = scmp.lt.s32.totalorder %s21, 1
      %s274 = scalar_select %p273, %s21, 1
      %p275 = scmp.lt.s32.totalorder %s22, 15
      %s276 = scalar_select %p275, %s22, 15
      %p277 = scmp.lt.s32.totalorder %s23, 0
      %s278 = scalar_select %p277, %s23, 0
      %s279 = smul.addr %s276, 2
      %s280 = sadd.s32 %s278, %s279
      %s281 = smul.addr %s274, 32
      %s282 = sadd.s32 %s280, %s281
      %s283 = smul.addr %s282, 8
      %s284 = scalar_lea.vmem %s4, %s283
      %s285 = sadd.s32 %s22, %s24
      %p286 = scmp.lt.s32.totalorder %s21, 1
      %s287 = scalar_select %p286, %s21, 1
      %p288 = scmp.lt.s32.totalorder %s285, 19
      %s289 = scalar_select %p288, %s285, 19
      %s290 = smul.addr %s289, 3
      %s291 = smul.addr %s287, 60
      %s292 = sadd.s32 %s290, %s291
      %s293 = smul.addr %s292, 4
      %s294 = scalar_lea.vmem %s0, %s293
      %s295 = sadd.s32 %s22, %s24
      %p296 = scmp.lt.s32.totalorder %s24, 4
      %s297 = scalar_select %p296, %s24, 4
      %p298 = scmp.lt.s32.totalorder %s23, 0
      %s299 = scalar_select %p298, %s23, 0
      %s300 = smul.addr %s297, 30
      %s301 = sadd.s32 %s299, %s300
      %s302 = smul.addr %s301, 4
      %s303 = scalar_lea.vmem %s1, %s302
      %p304 = scmp.lt.s32.totalorder %s23, 0
      %s305 = scalar_select %p304, %s23, 0
      %s306 = scalar_lea.vmem %s2, %s305
      %p307 = scmp.lt.s32.totalorder %s23, 0
      %s308 = scalar_select %p307, %s23, 0
      %s309 = scalar_lea.vmem %s3, %s308
      %p310 = scmp.lt.s32.totalorder %s21, 1
      %s311 = scalar_select %p310, %s21, 1
      %p312 = scmp.lt.s32.totalorder %s22, 15
      %s313 = scalar_select %p312, %s22, 15
      %p314 = scmp.lt.s32.totalorder %s23, 0
      %s315 = scalar_select %p314, %s23, 0
      %s316 = smul.addr %s313, 2
      %s317 = sadd.s32 %s315, %s316
      %s318 = smul.addr %s311, 32
      %s319 = sadd.s32 %s317, %s318
      %s320 = smul.addr %s319, 8
      %s321 = scalar_lea.vmem %s4, %s320
      %p323 = scmp.eq.s32.totalorder %s24, 0
      // Predicated region
      $region37: #{inception_a_forward.9} parent=35 // pred_check
        %p324 = pneg %p323
      $region38: #{inception_a_forward.9} parent=35 // pred_check_branch
        %326 = sbr.rel (%p324) target = $region40
      $region39: #{inception_a_forward.9} parent=35 // pred_region
        %327 = vst [vmem:[#allocation2] sm:$0xff] 0.0
        %328 = vst [vmem:[#allocation2 + $0x8] sm:$0xff] 0.0
      $region40: #{inception_a_forward.9} parent=35 // pred_fallthru
        _
      %v329 = vld [vmem:[%s294] sm:$0xf]
      %v330 = vld [vmem:[%s294 + $0x4] sm:$0xf]
      %v331 = vld [vmem:[%s294 + $0x8] sm:$0x3]
      %v332 = vld [vmem:[#allocation2] sm:$0xff]
      %v333 = vld [vmem:[#allocation2 + $0x8] sm:$0xff]
      %v334 = vld [vmem:[%s303] sm:$0xf]
      %v335 = vld [vmem:[%s303 + $0x4] sm:$0xf]
      %v336 = vld [vmem:[%s303 + $0x8] sm:$0xf]
      %v337 = vld [vmem:[%s303 + $0xc] sm:$0xf]
      %v338 = vld [vmem:[%s303 + $0x10] sm:$0xf]
      %v339 = vld [vmem:[%s303 + $0x14] sm:$0xf]
      %v342 = vunpack.c.l.b16 %v329
      %v343 = vunpack.c.l.b16 %v330
      %v344 = vpack.c.b16 %v343, %v342
      %v351 = vunpack.c.l.b16 %v334
      %v352 = vunpack.c.l.b16 %v335
      %v353 = vunpack.c.l.b16 %v336
      %v354 = vunpack.c.l.b16 %v337
      %v355 = vunpack.c.l.b16 %v338
      %v356 = vunpack.c.l.b16 %v339
      %v357 = vpack.c.b16 %v352, %v351
      %v358 = vpack.c.b16 %v354, %v353
      %v359 = vpack.c.b16 %v356, %v355
      %vm363 = vcmask 392192
      %v365 = vsel %vm363, %v344, 0
      %367 = vmatprep.subr.bf16.mxu0 0
      %368 = vmatpush1.bf16.msra.mxu0 0
      %369 = vmatprep.subr.bf16.mxu0 0
      %370 = vmatpush1.bf16.msra.mxu0 0
      %371 = vmatprep.subr.bf16.mxu0 0
      %372 = vmatpush1.bf16.msra.mxu0 0
      %373 = vmatprep.subr.bf16.mxu0 0
      %374 = vmatpush1.bf16.msra.mxu0 0
      %375 = vmatprep.subr.bf16.mxu0 0
      %376 = vmatpush1.bf16.msra.mxu0 0
      %377 = vmatprep.subr.bf16.mxu0 0
      %378 = vmatpush1.bf16.msra.mxu0 %v359
      %379 = vmatprep.subr.bf16.mxu0 0
      %380 = vmatpush1.bf16.msra.mxu0 %v358
      %381 = vmatprep.subr.bf16.mxu0 0
      %382 = vmatpush1.bf16.msra.mxu0 %v357
      %383 = vmatprep.subr.bf16.mxu0 0
      %384 = vmatpush2.bf16.msra.mxu0 0
      %385 = vmatprep.subr.bf16.mxu0 0
      %386 = vmatpush2.bf16.msra.mxu0 0
      %387 = vmatprep.subr.bf16.mxu0 0
      %388 = vmatpush2.bf16.msra.mxu0 0
      %389 = vmatprep.subr.bf16.mxu0 0
      %390 = vmatpush2.bf16.msra.mxu0 0
      %391 = vmatprep.subr.bf16.mxu0 0
      %392 = vmatpush2.bf16.msra.mxu0 0
      %393 = vmatprep.subr.bf16.mxu0 0
      %394 = vmatpush2.bf16.msra.mxu0 0
      %395 = vmatprep.subr.bf16.mxu0 0
      %396 = vmatpush2.bf16.msra.mxu0 0
      %397 = vmatprep.subr.bf16.mxu0 0
      %398 = vmatpush2.bf16.msra.mxu0 0
      %399 = vmatprep.mubr.bf16.mxu0 0
      %400 = vmatmul.mubr.bf16.gmra.mxu0 %v365
      %v401 = vpop.f32.mrf.mxu0
      %v402 = vadd.f32 0.0, %v401
      %v403 = vpop.f32.mrf.mxu0
      %v404 = vpop.f32.mrf.mxu0
      %v405 = vadd.f32 0.0, %v404
      %v406 = vpop.f32.mrf.mxu0
      %407 = vdwg.mxu0
      %v408 = vadd.f32 %v332, %v402
      %v409 = vadd.f32 %v333, %v405
      %s410 = scalar_lea.vmem %s303, 24
      %v411 = vld [vmem:[%s410] sm:$0xf]
      %v412 = vld [vmem:[%s410 + $0x4] sm:$0xf]
      %v413 = vld [vmem:[%s410 + $0x8] sm:$0xf]
      %v414 = vld [vmem:[%s410 + $0xc] sm:$0xf]
      %v415 = vld [vmem:[%s410 + $0x10] sm:$0xf]
      %v416 = vld [vmem:[%s410 + $0x14] sm:$0xf]
      %v418 = vunpack.c.l.b16 %v331
      %v419 = vpack.c.b16 %v418, %v418
      %vm420 = vsmask.f32 7424
      %v421 = vshrl.u32 %v344, 16
      %v423 = vshll.u32 %v344, 16
      %v425 = vrot.slane %v423, 1
      %v426 = vor.u32 %v421, %v425
      %v428 = vshll.u32 %v419, 16
      %v430 = vrot.slane %v428, 1
      %v431 = vsel %vm420, %v426, %v430
      %v438 = vunpack.c.l.b16 %v411
      %v439 = vunpack.c.l.b16 %v412
      %v440 = vunpack.c.l.b16 %v413
      %v441 = vunpack.c.l.b16 %v414
      %v442 = vunpack.c.l.b16 %v415
      %v443 = vunpack.c.l.b16 %v416
      %v444 = vpack.c.b16 %v439, %v438
      %v445 = vpack.c.b16 %v441, %v440
      %v446 = vpack.c.b16 %v443, %v442
      %v451 = vsel %vm363, %v431, 0
      %453 = vmatprep.subr.bf16.mxu0 0
      %454 = vmatpush1.bf16.msra.mxu0 0
      %455 = vmatprep.subr.bf16.mxu0 0
      %456 = vmatpush1.bf16.msra.mxu0 0
      %457 = vmatprep.subr.bf16.mxu0 0
      %458 = vmatpush1.bf16.msra.mxu0 0
      %459 = vmatprep.subr.bf16.mxu0 0
      %460 = vmatpush1.bf16.msra.mxu0 0
      %461 = vmatprep.subr.bf16.mxu0 0
      %462 = vmatpush1.bf16.msra.mxu0 0
      %463 = vmatprep.subr.bf16.mxu0 0
      %464 = vmatpush1.bf16.msra.mxu0 %v446
      %465 = vmatprep.subr.bf16.mxu0 0
      %466 = vmatpush1.bf16.msra.mxu0 %v445
      %467 = vmatprep.subr.bf16.mxu0 0
      %468 = vmatpush1.bf16.msra.mxu0 %v444
      %469 = vmatprep.subr.bf16.mxu0 0
      %470 = vmatpush2.bf16.msra.mxu0 0
      %471 = vmatprep.subr.bf16.mxu0 0
      %472 = vmatpush2.bf16.msra.mxu0 0
      %473 = vmatprep.subr.bf16.mxu0 0
      %474 = vmatpush2.bf16.msra.mxu0 0
      %475 = vmatprep.subr.bf16.mxu0 0
      %476 = vmatpush2.bf16.msra.mxu0 0
      %477 = vmatprep.subr.bf16.mxu0 0
      %478 = vmatpush2.bf16.msra.mxu0 0
      %479 = vmatprep.subr.bf16.mxu0 0
      %480 = vmatpush2.bf16.msra.mxu0 0
      %481 = vmatprep.subr.bf16.mxu0 0
      %482 = vmatpush2.bf16.msra.mxu0 0
      %483 = vmatprep.subr.bf16.mxu0 0
      %484 = vmatpush2.bf16.msra.mxu0 0
      %485 = vmatprep.mubr.bf16.mxu0 0
      %486 = vmatmul.mubr.bf16.gmra.mxu0 %v451
      %v487 = vpop.f32.mrf.mxu0
      %v488 = vadd.f32 0.0, %v487
      %v489 = vpop.f32.mrf.mxu0
      %v490 = vpop.f32.mrf.mxu0
      %v491 = vadd.f32 0.0, %v490
      %v492 = vpop.f32.mrf.mxu0
      %493 = vdwg.mxu0
      %v494 = vadd.f32 %v408, %v488
      %v495 = vadd.f32 %v409, %v491
      %s496 = scalar_lea.vmem %s303, 48
      %v497 = vld [vmem:[%s496] sm:$0xf]
      %v498 = vld [vmem:[%s496 + $0x4] sm:$0xf]
      %v499 = vld [vmem:[%s496 + $0x8] sm:$0xf]
      %v500 = vld [vmem:[%s496 + $0xc] sm:$0xf]
      %v501 = vld [vmem:[%s496 + $0x10] sm:$0xf]
      %v502 = vld [vmem:[%s496 + $0x14] sm:$0xf]
      %vm503 = vcmask 1046528
      %v504 = vrot.slane %v344, 1
      %v505 = vrot.slane %v419, 1
      %v506 = vsel %vm503, %v504, %v505
      %v513 = vunpack.c.l.b16 %v497
      %v514 = vunpack.c.l.b16 %v498
      %v515 = vunpack.c.l.b16 %v499
      %v516 = vunpack.c.l.b16 %v500
      %v517 = vunpack.c.l.b16 %v501
      %v518 = vunpack.c.l.b16 %v502
      %v519 = vpack.c.b16 %v514, %v513
      %v520 = vpack.c.b16 %v516, %v515
      %v521 = vpack.c.b16 %v518, %v517
      %v526 = vsel %vm363, %v506, 0
      %528 = vmatprep.subr.bf16.mxu0 0
      %529 = vmatpush1.bf16.msra.mxu0 0
      %530 = vmatprep.subr.bf16.mxu0 0
      %531 = vmatpush1.bf16.msra.mxu0 0
      %532 = vmatprep.subr.bf16.mxu0 0
      %533 = vmatpush1.bf16.msra.mxu0 0
      %534 = vmatprep.subr.bf16.mxu0 0
      %535 = vmatpush1.bf16.msra.mxu0 0
      %536 = vmatprep.subr.bf16.mxu0 0
      %537 = vmatpush1.bf16.msra.mxu0 0
      %538 = vmatprep.subr.bf16.mxu0 0
      %539 = vmatpush1.bf16.msra.mxu0 %v521
      %540 = vmatprep.subr.bf16.mxu0 0
      %541 = vmatpush1.bf16.msra.mxu0 %v520
      %542 = vmatprep.subr.bf16.mxu0 0
      %543 = vmatpush1.bf16.msra.mxu0 %v519
      %544 = vmatprep.subr.bf16.mxu0 0
      %545 = vmatpush2.bf16.msra.mxu0 0
      %546 = vmatprep.subr.bf16.mxu0 0
      %547 = vmatpush2.bf16.msra.mxu0 0
      %548 = vmatprep.subr.bf16.mxu0 0
      %549 = vmatpush2.bf16.msra.mxu0 0
      %550 = vmatprep.subr.bf16.mxu0 0
      %551 = vmatpush2.bf16.msra.mxu0 0
      %552 = vmatprep.subr.bf16.mxu0 0
      %553 = vmatpush2.bf16.msra.mxu0 0
      %554 = vmatprep.subr.bf16.mxu0 0
      %555 = vmatpush2.bf16.msra.mxu0 0
      %556 = vmatprep.subr.bf16.mxu0 0
      %557 = vmatpush2.bf16.msra.mxu0 0
      %558 = vmatprep.subr.bf16.mxu0 0
      %559 = vmatpush2.bf16.msra.mxu0 0
      %560 = vmatprep.mubr.bf16.mxu0 0
      %561 = vmatmul.mubr.bf16.gmra.mxu0 %v526
      %v562 = vpop.f32.mrf.mxu0
      %v563 = vadd.f32 0.0, %v562
      %v564 = vpop.f32.mrf.mxu0
      %v565 = vpop.f32.mrf.mxu0
      %v566 = vadd.f32 0.0, %v565
      %v567 = vpop.f32.mrf.mxu0
      %568 = vdwg.mxu0
      %v569 = vadd.f32 %v494, %v563
      %v570 = vadd.f32 %v495, %v566
      %s571 = scalar_lea.vmem %s303, 72
      %v572 = vld [vmem:[%s571] sm:$0xf]
      %v573 = vld [vmem:[%s571 + $0x4] sm:$0xf]
      %v574 = vld [vmem:[%s571 + $0x8] sm:$0xf]
      %v575 = vld [vmem:[%s571 + $0xc] sm:$0xf]
      %v576 = vld [vmem:[%s571 + $0x10] sm:$0xf]
      %v577 = vld [vmem:[%s571 + $0x14] sm:$0xf]
      %vm578 = vsmask.f32 6400
      %v579 = vrot.slane %v421, 1
      %v580 = vrot.slane %v423, 2
      %v581 = vor.u32 %v579, %v580
      %v582 = vshrl.u32 %v419, 16
      %v584 = vrot.slane %v582, 1
      %v585 = vrot.slane %v428, 2
      %v586 = vor.u32 %v584, %v585
      %v587 = vsel %vm578, %v581, %v586
      %v594 = vunpack.c.l.b16 %v572
      %v595 = vunpack.c.l.b16 %v573
      %v596 = vunpack.c.l.b16 %v574
      %v597 = vunpack.c.l.b16 %v575
      %v598 = vunpack.c.l.b16 %v576
      %v599 = vunpack.c.l.b16 %v577
      %v600 = vpack.c.b16 %v595, %v594
      %v601 = vpack.c.b16 %v597, %v596
      %v602 = vpack.c.b16 %v599, %v598
      %v607 = vsel %vm363, %v587, 0
      %609 = vmatprep.subr.bf16.mxu0 0
      %610 = vmatpush1.bf16.msra.mxu0 0
      %611 = vmatprep.subr.bf16.mxu0 0
      %612 = vmatpush1.bf16.msra.mxu0 0
      %613 = vmatprep.subr.bf16.mxu0 0
      %614 = vmatpush1.bf16.msra.mxu0 0
      %615 = vmatprep.subr.bf16.mxu0 0
      %616 = vmatpush1.bf16.msra.mxu0 0
      %617 = vmatprep.subr.bf16.mxu0 0
      %618 = vmatpush1.bf16.msra.mxu0 0
      %619 = vmatprep.subr.bf16.mxu0 0
      %620 = vmatpush1.bf16.msra.mxu0 %v602
      %621 = vmatprep.subr.bf16.mxu0 0
      %622 = vmatpush1.bf16.msra.mxu0 %v601
      %623 = vmatprep.subr.bf16.mxu0 0
      %624 = vmatpush1.bf16.msra.mxu0 %v600
      %625 = vmatprep.subr.bf16.mxu0 0
      %626 = vmatpush2.bf16.msra.mxu0 0
      %627 = vmatprep.subr.bf16.mxu0 0
      %628 = vmatpush2.bf16.msra.mxu0 0
      %629 = vmatprep.subr.bf16.mxu0 0
      %630 = vmatpush2.bf16.msra.mxu0 0
      %631 = vmatprep.subr.bf16.mxu0 0
      %632 = vmatpush2.bf16.msra.mxu0 0
      %633 = vmatprep.subr.bf16.mxu0 0
      %634 = vmatpush2.bf16.msra.mxu0 0
      %635 = vmatprep.subr.bf16.mxu0 0
      %636 = vmatpush2.bf16.msra.mxu0 0
      %637 = vmatprep.subr.bf16.mxu0 0
      %638 = vmatpush2.bf16.msra.mxu0 0
      %639 = vmatprep.subr.bf16.mxu0 0
      %640 = vmatpush2.bf16.msra.mxu0 0
      %641 = vmatprep.mubr.bf16.mxu0 0
      %642 = vmatmul.mubr.bf16.gmra.mxu0 %v607
      %v643 = vpop.f32.mrf.mxu0
      %v644 = vadd.f32 0.0, %v643
      %v645 = vpop.f32.mrf.mxu0
      %v646 = vpop.f32.mrf.mxu0
      %v647 = vadd.f32 0.0, %v646
      %v648 = vpop.f32.mrf.mxu0
      %649 = vdwg.mxu0
      %v650 = vadd.f32 %v569, %v644
      %v651 = vadd.f32 %v570, %v647
      %s652 = scalar_lea.vmem %s303, 96
      %v653 = vld [vmem:[%s652] sm:$0xf]
      %v654 = vld [vmem:[%s652 + $0x4] sm:$0xf]
      %v655 = vld [vmem:[%s652 + $0x8] sm:$0xf]
      %v656 = vld [vmem:[%s652 + $0xc] sm:$0xf]
      %v657 = vld [vmem:[%s652 + $0x10] sm:$0xf]
      %v658 = vld [vmem:[%s652 + $0x14] sm:$0xf]
      %vm659 = vcmask 1045504
      %v660 = vrot.slane %v344, 2
      %v661 = vrot.slane %v419, 2
      %v662 = vsel %vm659, %v660, %v661
      %v669 = vunpack.c.l.b16 %v653
      %v670 = vunpack.c.l.b16 %v654
      %v671 = vunpack.c.l.b16 %v655
      %v672 = vunpack.c.l.b16 %v656
      %v673 = vunpack.c.l.b16 %v657
      %v674 = vunpack.c.l.b16 %v658
      %v675 = vpack.c.b16 %v670, %v669
      %v676 = vpack.c.b16 %v672, %v671
      %v677 = vpack.c.b16 %v674, %v673
      %v682 = vsel %vm363, %v662, 0
      %684 = vmatprep.subr.bf16.mxu0 0
      %685 = vmatpush1.bf16.msra.mxu0 0
      %686 = vmatprep.subr.bf16.mxu0 0
      %687 = vmatpush1.bf16.msra.mxu0 0
      %688 = vmatprep.subr.bf16.mxu0 0
      %689 = vmatpush1.bf16.msra.mxu0 0
      %690 = vmatprep.subr.bf16.mxu0 0
      %691 = vmatpush1.bf16.msra.mxu0 0
      %692 = vmatprep.subr.bf16.mxu0 0
      %693 = vmatpush1.bf16.msra.mxu0 0
      %694 = vmatprep.subr.bf16.mxu0 0
      %695 = vmatpush1.bf16.msra.mxu0 %v677
      %696 = vmatprep.subr.bf16.mxu0 0
      %697 = vmatpush1.bf16.msra.mxu0 %v676
      %698 = vmatprep.subr.bf16.mxu0 0
      %699 = vmatpush1.bf16.msra.mxu0 %v675
      %700 = vmatprep.subr.bf16.mxu0 0
      %701 = vmatpush2.bf16.msra.mxu0 0
      %702 = vmatprep.subr.bf16.mxu0 0
      %703 = vmatpush2.bf16.msra.mxu0 0
      %704 = vmatprep.subr.bf16.mxu0 0
      %705 = vmatpush2.bf16.msra.mxu0 0
      %706 = vmatprep.subr.bf16.mxu0 0
      %707 = vmatpush2.bf16.msra.mxu0 0
      %708 = vmatprep.subr.bf16.mxu0 0
      %709 = vmatpush2.bf16.msra.mxu0 0
      %710 = vmatprep.subr.bf16.mxu0 0
      %711 = vmatpush2.bf16.msra.mxu0 0
      %712 = vmatprep.subr.bf16.mxu0 0
      %713 = vmatpush2.bf16.msra.mxu0 0
      %714 = vmatprep.subr.bf16.mxu0 0
      %715 = vmatpush2.bf16.msra.mxu0 0
      %716 = vmatprep.mubr.bf16.mxu0 0
      %717 = vmatmul.mubr.bf16.gmra.mxu0 %v682
      %v718 = vpop.f32.mrf.mxu0
      %v719 = vadd.f32 0.0, %v718
      %v720 = vpop.f32.mrf.mxu0
      %v721 = vpop.f32.mrf.mxu0
      %v722 = vadd.f32 0.0, %v721
      %v723 = vpop.f32.mrf.mxu0
      %724 = vdwg.mxu0
      %v725 = vadd.f32 %v650, %v719
      %v726 = vadd.f32 %v651, %v722
      %727 = vst [vmem:[#allocation2] sm:$0xff] %v725
      %728 = vst [vmem:[#allocation2 + $0x8] sm:$0xff] %v726
      %p729 = scmp.eq.s32.totalorder %s24, 4
      // Predicated region
      $region41: #{inception_a_forward.9} parent=35 // pred_check
        %p730 = pneg %p729
      $region42: #{inception_a_forward.9} parent=35 // pred_check_branch
        %732 = sbr.rel (%p730) target = $region44
      $region43: #{inception_a_forward.9} parent=35 // pred_region
        %v733 = vld [vmem:[#allocation2] sm:$0xff]
        %v734 = vld [vmem:[#allocation2 + $0x8] sm:$0xff]
        %v735 = vld [vmem:[%s306] sm:$0x1]
        %v737 = vlaneseq
        %v738 = vshrl.u32 %v737, 7
        %v739 = vsub.s32 0, %v738
        %v740 = vrot.slane %v735, %v739
        %v742 = vmul.f32 %v733, %v740
        %v743 = vmul.f32 %v734, %v740
        %v744 = vld [vmem:[%s309] sm:$0x1]
        %v746 = vlaneseq
        %v747 = vshrl.u32 %v746, 7
        %v748 = vsub.s32 0, %v747
        %v749 = vrot.slane %v744, %v748
        %v751 = vadd.f32 %v742, %v749
        %v752 = vadd.f32 %v743, %v749
        %v753 = vmax.f32 %v751, 0.0
        %v754 = vmax.f32 %v752, 0.0
        %755 = vst [vmem:[%s321] sm:$0xff] %v753
        %756 = vst [vmem:[%s321 + $0x8] sm:$0xff] %v754
      $region44: #{inception_a_forward.9} parent=35 // pred_fallthru
        _
      %p757 = scmp.lt.s32.totalorder %s21, 1
      %s758 = scalar_select %p757, %s21, 1
      %p759 = scmp.lt.s32.totalorder %s22, 15
      %s760 = scalar_select %p759, %s22, 15
      %p761 = scmp.lt.s32.totalorder %s23, 0
      %s762 = scalar_select %p761, %s23, 0
      %s763 = smul.addr %s760, 2
      %s764 = sadd.s32 %s762, %s763
      %s765 = smul.addr %s758, 32
      %s766 = sadd.s32 %s764, %s765
      %s767 = smul.addr %s766, 8
      %s768 = scalar_lea.vmem %s4, %s767
      // Predicated region
      $region45: #{inception_a_forward.9} parent=35 // pred_check
        %p769 = pneg %p173
      $region46: #{inception_a_forward.9} parent=35 // pred_check_branch
        %771 = sbr.rel (%p769) target = $region48
      $region47: #{inception_a_forward.9} parent=35 // pred_region
        _
      $region48: #{inception_a_forward.9} parent=35 // pred_fallthru
        _
    $region36: #{inception_a_forward.9} parent=5 // pred_fallthru
      _
    %p772 = scmp.le.s32.totalorder 2, %s10
    // Predicated region
    $region49: #{inception_a_forward.9} parent=5 // pred_check
      %p773 = pneg %p772
    $region50: #{inception_a_forward.9} parent=5 // pred_check_branch
      %775 = sbr.rel (%p773) target = $region52
    $region51: #{inception_a_forward.9} parent=5 // pred_region
      %s776 = ssub.s32 %s10, 2
      // Predicated region
      $region53: #{inception_a_forward.9} parent=51 // pred_check
        %p777 = pneg %p179
      $region54: #{inception_a_forward.9} parent=51 // pred_check_branch
        %779 = sbr.rel (%p777) target = $region56
      $region55: #{inception_a_forward.9} parent=51 // pred_region
        %p780 = scmp.lt.s32.totalorder %s25, 1
        %s781 = scalar_select %p780, %s25, 1
        %p782 = scmp.lt.s32.totalorder %s26, 15
        %s783 = scalar_select %p782, %s26, 15
        %p784 = scmp.lt.s32.totalorder %s27, 0
        %s785 = scalar_select %p784, %s27, 0
        %s786 = smul.addr %s783, 2
        %s787 = sadd.s32 %s785, %s786
        %s788 = smul.addr %s781, 32
        %s789 = sadd.s32 %s787, %s788
        %s790 = smul.addr %s789, 8
        %s791 = scalar_lea.vmem %s4, %s790
      $region56: #{inception_a_forward.9} parent=51 // pred_fallthru
        _
    $region52: #{inception_a_forward.9} parent=5 // pred_fallthru
      _
  $region6: #{inception_a_forward.9} parent=0 // loop_footer
    %s14 = sadd.s32 1, %s10
  $region7: #{inception_a_forward.9} parent=0 // loop_footer_branch
    %9 = sbr.rel target = $region3
  $region8: #{inception_a_forward.9} parent=0 // loop_exit
    _

// kernel: inception_a_forward.13
$region0: #{inception_a_forward.13}
  #allocation0 [shape = 'u32[]', space=smem, size = 0x4, offset = 0x4, fixed_abs, tag = 'smem constant byte address 0x4 - core index']
  #allocation1 [shape = 'u32[144,128]{1,0:T(1,128)}', space=vmem, size = 0x12000, scoped, tag = 'internal scratch']
  #allocation2 [shape = 'f32[16,128]{1,0:T(8,128)}', space=vmem, size = 0x2000, scoped, tag = 'scratch operand']
  %s0 = inlined_call_operand.vmem [shape: bf16[2,18,18,4], index: 0, kind: input, shape index: {}]
  %s1 = inlined_call_operand.vmem [shape: bf16[3,3,4,128], index: 1, kind: input, shape index: {}]
  %s2 = inlined_call_operand.vmem [shape: f32[1,128], index: 2, kind: input, shape index: {}]
  %s3 = inlined_call_operand.vmem [shape: f32[1,128], index: 3, kind: input, shape index: {}]
  %s4 = inlined_call_operand.vmem [shape: f32[2,16,16,128], index: 4, kind: output, shape index: {}]
  %s5 = sld [smem:[#allocation0]]
  $region57: #{inception_a_forward.13} parent=0
    _
  %s7 = ssub.s32 1, %s5
  %s8 = scalar_select 0, %s7, %s5
  loop: start=0, step=1, limit=98
  $region2: #{inception_a_forward.13} parent=0 // loop_pre_header
    _
  $region3: #{inception_a_forward.13} parent=0 // loop_header
    %s10 = sphi 0, %s14
    %p11 = scmp.ge.s32.totalorder %s10, 98
    %s17 = sphi 0, %s43
    %s18 = sphi 0, %s39
    %s19 = sphi 0, %s35
    %s20 = sphi 0, %s31
    %s21 = sphi 0, %s17
    %s22 = sphi 0, %s18
    %s23 = sphi 0, %s19
    %s24 = sphi 0, %s20
    %s25 = sphi 0, %s21
    %s26 = sphi 0, %s22
    %s27 = sphi 0, %s23
    %s28 = sphi 0, %s24
    %s50 = sphi 0, %s52
    %s53 = sphi 0, %s50
    %s54 = sphi 0, %s53
    %s70 = sphi 0, %s54
    %s78 = sphi 0, %s80
    %s81 = sphi 0, %s78
    %s82 = sphi 0, %s81
    %s98 = sphi 0, %s82
    %s104 = sphi 0, %s106
    %s107 = sphi 0, %s104
    %s108 = sphi 0, %s107
    %s124 = sphi 0, %s108
    %s130 = sphi 0, %s132
    %s133 = sphi 0, %s130
    %s134 = sphi 0, %s133
    %s150 = sphi 0, %s134
    %s160 = sphi 0, %s162
    %s163 = sphi 0, %s160
    %s164 = sphi 0, %s163
    %s180 = sphi 0, %s164
  $region4: #{inception_a_forward.13} parent=0 // loop_header_branch
    %13 = sbr.rel (%p11) target = $region8
  $region5: #{inception_a_forward.13} parent=0 // loop_body
    %s15 = ssub.s32 %s10, 1
    %s16 = ssub.s32 %s10, 2
    %s29 = sadd.s32 1, %s20
    %p30 = scmp.ge.s32.totalorder %s29, 3
    %s31 = scalar_select %p30, 0, %s29
    %s32 = sadd.s32 1, %s19
    %s33 = scalar_select %p30, %s32, %s19
    %p34 = scmp.ge.s32.totalorder %s33, 1
    %s35 = scalar_select %p34, 0, %s33
    %s36 = sadd.s32 1, %s18
    %s37 = scalar_select %p34, %s36, %s18
    %p38 = scmp.ge.s32.totalorder %s37, 16
    %s39 = scalar_select %p38, 0, %s37
    %s40 = sadd.s32 1, %s17
    %s41 = scalar_select %p38, %s40, %s17
    %p42 = scmp.ge.s32.totalorder %s41, 2
    %s43 = scalar_select %p42, 0, %s41
    %s44 = sadd.s32 %s18, %s20
    %s45 = sadd.s32 %s39, %s31
    %s46 = ssub.s32 %s17, %s43
    %s47 = ssub.s32 %s44, %s45
    %s48 = sor.u32 %s46, %s47
    %p49 = scmp.eq.s32.totalorder %s48, 0
    %s51 = sadd.s32 %s50, 1
    %s52 = scalar_select %p49, %s50, %s51
    %p55 = pneg %p49
    %p56 = scmp.eq.s32.totalorder %s10, 95
    %p57 = por %p55, %p56
    %p58 = scmp.ne.s32.totalorder %s50, %s53
    %p59 = scmp.eq.s32.totalorder %s10, 0
    %p60 = por %p58, %p59
    %p61 = scmp.ne.s32.totalorder %s50, %s53
    %p62 = scmp.eq.s32.totalorder %s15, 95
    %p63 = por %p61, %p62
    %p64 = scmp.ne.s32.totalorder %s53, %s54
    %p65 = scmp.eq.s32.totalorder %s15, 0
    %p66 = por %p64, %p65
    %p67 = scmp.ne.s32.totalorder %s53, %s54
    %p68 = scmp.eq.s32.totalorder %s16, 95
    %p69 = por %p67, %p68
    %p71 = scmp.ne.s32.totalorder %s54, %s70
    %p72 = scmp.eq.s32.totalorder %s16, 0
    %p73 = por %p71, %p72
    %s74 = ssub.s32 %s20, %s31
    %s75 = ssub.s32 %s19, %s35
    %s76 = sor.u32 %s74, %s75
    %p77 = scmp.eq.s32.totalorder %s76, 0
    %s79 = sadd.s32 %s78, 1
    %s80 = scalar_select %p77, %s78, %s79
    %p83 = pneg %p77
    %p84 = scmp.eq.s32.totalorder %s10, 95
    %p85 = por %p83, %p84
    %p86 = scmp.ne.s32.totalorder %s78, %s81
    %p87 = scmp.eq.s32.totalorder %s10, 0
    %p88 = por %p86, %p87
    %p89 = scmp.ne.s32.totalorder %s78, %s81
    %p90 = scmp.eq.s32.totalorder %s15, 95
    %p91 = por %p89, %p90
    %p92 = scmp.ne.s32.totalorder %s81, %s82
    %p93 = scmp.eq.s32.totalorder %s15, 0
    %p94 = por %p92, %p93
    %p95 = scmp.ne.s32.totalorder %s81, %s82
    %p96 = scmp.eq.s32.totalorder %s16, 95
    %p97 = por %p95, %p96
    %p99 = scmp.ne.s32.totalorder %s82, %s98
    %p100 = scmp.eq.s32.totalorder %s16, 0
    %p101 = por %p99, %p100
    %s102 = ssub.s32 %s19, %s35
    %p103 = scmp.eq.s32.totalorder %s102, 0
    %s105 = sadd.s32 %s104, 1
    %s106 = scalar_select %p103, %s104, %s105
    %p109 = pneg %p103
    %p110 = scmp.eq.s32.totalorder %s10, 95
    %p111 = por %p109, %p110
    %p112 = scmp.ne.s32.totalorder %s104, %s107
    %p113 = scmp.eq.s32.totalorder %s10, 0
    %p114 = por %p112, %p113
    %p115 = scmp.ne.s32.totalorder %s104, %s107
    %p116 = scmp.eq.s32.totalorder %s15, 95
    %p117 = por %p115, %p116
    %p118 = scmp.ne.s32.totalorder %s107, %s108
    %p119 = scmp.eq.s32.totalorder %s15, 0
    %p120 = por %p118, %p119
    %p121 = scmp.ne.s32.totalorder %s107, %s108
    %p122 = scmp.eq.s32.totalorder %s16, 95
    %p123 = por %p121, %p122
    %p125 = scmp.ne.s32.totalorder %s108, %s124
    %p126 = scmp.eq.s32.totalorder %s16, 0
    %p127 = por %p125, %p126
    %s128 = ssub.s32 %s19, %s35
    %p129 = scmp.eq.s32.totalorder %s128, 0
    %s131 = sadd.s32 %s130, 1
    %s132 = scalar_select %p129, %s130, %s131
    %p135 = pneg %p129
    %p136 = scmp.eq.s32.totalorder %s10, 95
    %p137 = por %p135, %p136
    %p138 = scmp.ne.s32.totalorder %s130, %s133
    %p139 = scmp.eq.s32.totalorder %s10, 0
    %p140 = por %p138, %p139
    %p141 = scmp.ne.s32.totalorder %s130, %s133
    %p142 = scmp.eq.s32.totalorder %s15, 95
    %p143 = por %p141, %p142
    %p144 = scmp.ne.s32.totalorder %s133, %s134
    %p145 = scmp.eq.s32.totalorder %s15, 0
    %p146 = por %p144, %p145
    %p147 = scmp.ne.s32.totalorder %s133, %s134
    %p148 = scmp.eq.s32.totalorder %s16, 95
    %p149 = por %p147, %p148
    %p151 = scmp.ne.s32.totalorder %s134, %s150
    %p152 = scmp.eq.s32.totalorder %s16, 0
    %p153 = por %p151, %p152
    %s154 = ssub.s32 %s17, %s43
    %s155 = ssub.s32 %s18, %s39
    %s156 = sor.u32 %s154, %s155
    %s157 = ssub.s32 %s19, %s35
    %s158 = sor.u32 %s156, %s157
    %p159 = scmp.eq.s32.totalorder %s158, 0
    %s161 = sadd.s32 %s160, 1
    %s162 = scalar_select %p159, %s160, %s161
    %p165 = pneg %p159
    %p166 = scmp.eq.s32.totalorder %s10, 95
    %p167 = por %p165, %p166
    %p168 = scmp.ne.s32.totalorder %s160, %s163
    %p169 = scmp.eq.s32.totalorder %s10, 0
    %p170 = por %p168, %p169
    %p171 = scmp.ne.s32.totalorder %s160, %s163
    %p172 = scmp.eq.s32.totalorder %s15, 95
    %p173 = por %p171, %p172
    %p174 = scmp.ne.s32.totalorder %s163, %s164
    %p175 = scmp.eq.s32.totalorder %s15, 0
    %p176 = por %p174, %p175
    %p177 = scmp.ne.s32.totalorder %s163, %s164
    %p178 = scmp.eq.s32.totalorder %s16, 95
    %p179 = por %p177, %p178
    %p181 = scmp.ne.s32.totalorder %s164, %s180
    %p182 = scmp.eq.s32.totalorder %s16, 0
    %p183 = por %p181, %p182
    %p184 = scmp.le.s32.totalorder 1, %s10
    %p185 = scmp.lt.s32.totalorder %s10, 97
    %p186 = pnand %p184, %p185
    %p187 = pneg %p186
    // Predicated region
    $region9: #{inception_a_forward.13} parent=5 // pred_check
      _
    $region10: #{inception_a_forward.13} parent=5 // pred_check_branch
      %189 = sbr.rel (%p186) target = $region12
    $region11: #{inception_a_forward.13} parent=5 // pred_region
      %s190 = ssub.s32 %s10, 1
      // Predicated region
      $region13: #{inception_a_forward.13} parent=11 // pred_check
        %p191 = pneg %p120
      $region14: #{inception_a_forward.13} parent=11 // pred_check_branch
        %193 = sbr.rel (%p191) target = $region16
      $region15: #{inception_a_forward.13} parent=11 // pred_region
        %p194 = scmp.lt.s32.totalorder %s23, 0
        %s195 = scalar_select %p194, %s23, 0
        %s196 = scalar_lea.vmem %s2, %s195
      $region16: #{inception_a_forward.13} parent=11 // pred_fallthru
        _
      // Predicated region
      $region17: #{inception_a_forward.13} parent=11 // pred_check
        %p197 = pneg %p146
      $region18: #{inception_a_forward.13} parent=11 // pred_check_branch
        %199 = sbr.rel (%p197) target = $region20
      $region19: #{inception_a_forward.13} parent=11 // pred_region
        %p200 = scmp.lt.s32.totalorder %s23, 0
        %s201 = scalar_select %p200, %s23, 0
        %s202 = scalar_lea.vmem %s3, %s201
      $region20: #{inception_a_forward.13} parent=11 // pred_fallthru
        _
    $region12: #{inception_a_forward.13} parent=5 // pred_fallthru
      _
    %p203 = scmp.lt.s32.totalorder %s10, 96
    // Predicated region
    $region21: #{inception_a_forward.13} parent=5 // pred_check
      %p204 = pneg %p203
    $region22: #{inception_a_forward.13} parent=5 // pred_check_branch
      %206 = sbr.rel (%p204) target = $region24
    $region23: #{inception_a_forward.13} parent=5 // pred_region
      // Predicated region
      $region25: #{inception_a_forward.13} parent=23 // pred_check
        %p207 = pneg %p60
      $region26: #{inception_a_forward.13} parent=23 // pred_check_branch
        %209 = sbr.rel (%p207) target = $region28
      $region27: #{inception_a_forward.13} parent=23 // pred_region
        %s210 = sadd.s32 %s18, %s20
        %p211 = scmp.lt.s32.totalorder %s17, 1
        %s212 = scalar_select %p211, %s17, 1
        %p213 = scmp.lt.s32.totalorder %s210, 17
        %s214 = scalar_select %p213, %s210, 17
        %s215 = smul.addr %s214, 3
        %s216 = smul.addr %s212, 54
        %s217 = sadd.s32 %s215, %s216
        %s218 = smul.addr %s217, 4
        %s219 = scalar_lea.vmem %s0, %s218
        %s220 = sadd.s32 %s18, %s20
      $region28: #{inception_a_forward.13} parent=23 // pred_fallthru
        _
      // Predicated region
      $region29: #{inception_a_forward.13} parent=23 // pred_check
        %p221 = pneg %p88
      $region30: #{inception_a_forward.13} parent=23 // pred_check_branch
        %223 = sbr.rel (%p221) target = $region32
      $region31: #{inception_a_forward.13} parent=23 // pred_region
        %p224 = scmp.lt.s32.totalorder %s20, 2
        %s225 = scalar_select %p224, %s20, 2
        %p226 = scmp.lt.s32.totalorder %s19, 0
        %s227 = scalar_select %p226, %s19, 0
        %s228 = smul.addr %s225, 3
        %s229 = sadd.s32 %s227, %s228
        %s230 = smul.addr %s229, 2
        %s231 = scalar_lea.vmem %s1, %s230
      $region32: #{inception_a_forward.13} parent=23 // pred_fallthru
        _
    $region24: #{inception_a_forward.13} parent=5 // pred_fallthru
      _
    %p232 = scmp.le.s32.totalorder 1, %s10
    %p233 = scmp.lt.s32.totalorder %s10, 97
    %p234 = pnand %p232, %p233
    %p235 = pneg %p234
    // Predicated region
    $region33: #{inception_a_forward.13} parent=5 // pred_check
      _
    $region34: #{inception_a_forward.13} parent=5 // pred_check_branch
      %237 = sbr.rel (%p234) target = $region36
    $region35: #{inception_a_forward.13} parent=5 // pred_region
      %s238 = ssub.s32 %s10, 1
      %s239 = sadd.s32 %s22, %s24
      %p240 = scmp.lt.s32.totalorder %s21, 1
      %s241 = scalar_select %p240, %s21, 1
      %p242 = scmp.lt.s32.totalorder %s239, 17
      %s243 = scalar_select %p242, %s239, 17
      %s244 = smul.addr %s243, 3
      %s245 = smul.addr %s241, 54
      %s246 = sadd.s32 %s244, %s245
      %s247 = smul.addr %s246, 4
      %s248 = scalar_lea.vmem %s0, %s247
      %p249 = pneg %p66
      %p250 = pneg %p63
      %p251 = scmp.lt.s32.totalorder %s24, 2
      %s252 = scalar_select %p251, %s24, 2
      %p253 = scmp.lt.s32.totalorder %s23, 0
      %s254 = scalar_select %p253, %s23, 0
      %s255 = smul.addr %s252, 3
      %s256 = sadd.s32 %s254, %s255
      %s257 = smul.addr %s256, 2
      %s258 = scalar_lea.vmem %s1, %s257
      %p259 = pneg %p94
      %p260 = pneg %p91
      %p261 = scmp.lt.s32.totalorder %s23, 0
      %s262 = scalar_select %p261, %s23, 0
      %s263 = scalar_lea.vmem %s2, %s262
      %p264 = pneg %p120
      %p265 = pneg %p117
      %p266 = scmp.lt.s32.totalorder %s23, 0
      %s267 = scalar_select %p266, %s23, 0
      %s268 = scalar_lea.vmem %s3, %s267
      %p269 = pneg %p146
      %p270 = pneg %p143
      %p271 = pneg %p176
      %p272 = pneg %p173
      %p273 = scmp.lt.s32.totalorder %s21, 1
      %s274 = scalar_select %p273, %s21, 1
      %p275 = scmp.lt.s32.totalorder %s22, 15
      %s276 = scalar_select %p275, %s22, 15
      %p277 = scmp.lt.s32.totalorder %s23, 0
      %s278 = scalar_select %p277, %s23, 0
      %s279 = smul.addr %s276, 2
      %s280 = sadd.s32 %s278, %s279
      %s281 = smul.addr %s274, 32
      %s282 = sadd.s32 %s280, %s281
      %s283 = smul.addr %s282, 8
      %s284 = scalar_lea.vmem %s4, %s283
      %s285 = sadd.s32 %s22, %s24
      %p286 = scmp.lt.s32.totalorder %s21, 1
      %s287 = scalar_select %p286, %s21, 1
      %p288 = scmp.lt.s32.totalorder %s285, 17
      %s289 = scalar_select %p288, %s285, 17
      %s290 = smul.addr %s289, 3
      %s291 = smul.addr %s287, 54
      %s292 = sadd.s32 %s290, %s291
      %s293 = smul.addr %s292, 4
      %s294 = scalar_lea.vmem %s0, %s293
      %s295 = sadd.s32 %s22, %s24
      %p296 = scmp.lt.s32.totalorder %s24, 2
      %s297 = scalar_select %p296, %s24, 2
      %p298 = scmp.lt.s32.totalorder %s23, 0
      %s299 = scalar_select %p298, %s23, 0
      %s300 = smul.addr %s297, 3
      %s301 = sadd.s32 %s299, %s300
      %s302 = smul.addr %s301, 2
      %s303 = scalar_lea.vmem %s1, %s302
      %p304 = scmp.lt.s32.totalorder %s23, 0
      %s305 = scalar_select %p304, %s23, 0
      %s306 = scalar_lea.vmem %s2, %s305
      %p307 = scmp.lt.s32.totalorder %s23, 0
      %s308 = scalar_select %p307, %s23, 0
      %s309 = scalar_lea.vmem %s3, %s308
      %p310 = scmp.lt.s32.totalorder %s21, 1
      %s311 = scalar_select %p310, %s21, 1
      %p312 = scmp.lt.s32.totalorder %s22, 15
      %s313 = scalar_select %p312, %s22, 15
      %p314 = scmp.lt.s32.totalorder %s23, 0
      %s315 = scalar_select %p314, %s23, 0
      %s316 = smul.addr %s313, 2
      %s317 = sadd.s32 %s315, %s316
      %s318 = smul.addr %s311, 32
      %s319 = sadd.s32 %s317, %s318
      %s320 = smul.addr %s319, 8
      %s321 = scalar_lea.vmem %s4, %s320
      %p323 = scmp.eq.s32.totalorder %s24, 0
      // Predicated region
      $region37: #{inception_a_forward.13} parent=35 // pred_check
        %p324 = pneg %p323
      $region38: #{inception_a_forward.13} parent=35 // pred_check_branch
        %326 = sbr.rel (%p324) target = $region40
      $region39: #{inception_a_forward.13} parent=35 // pred_region
        %327 = vst [vmem:[#allocation2] sm:$0xff] 0.0
        %328 = vst [vmem:[#allocation2 + $0x8] sm:$0xff] 0.0
      $region40: #{inception_a_forward.13} parent=35 // pred_fallthru
        _
      %v329 = vld [vmem:[%s294] sm:$0xf]
      %v330 = vld [vmem:[%s294 + $0x4] sm:$0xf]
      %v331 = vld [vmem:[%s294 + $0x8] sm:$0x1]
      %v332 = vld [vmem:[#allocation2] sm:$0xff]
      %v333 = vld [vmem:[#allocation2 + $0x8] sm:$0xff]
      %v334 = vld [vmem:[%s303] sm:$0x3]
      %v337 = vunpack.c.l.b16 %v329
      %v338 = vunpack.c.l.b16 %v330
      %v339 = vpack.c.b16 %v338, %v337
      %vm340 = vcmask 31744
      %v342 = vsel %vm340, %v339, 0
      %vm344 = vcmask 1041408
      %v346 = vsel %vm344, %v334, 0
      %348 = vmatprep.subr.bf16.mxu0 0
      %349 = vmatpush1.bf16.msra.mxu0 0
      %350 = vmatprep.subr.bf16.mxu0 0
      %351 = vmatpush1.bf16.msra.mxu0 0
      %352 = vmatprep.subr.bf16.mxu0 0
      %353 = vmatpush1.bf16.msra.mxu0 0
      %354 = vmatprep.subr.bf16.mxu0 0
      %355 = vmatpush1.bf16.msra.mxu0 0
      %356 = vmatprep.subr.bf16.mxu0 0
      %357 = vmatpush1.bf16.msra.mxu0 0
      %358 = vmatprep.subr.bf16.mxu0 0
      %359 = vmatpush1.bf16.msra.mxu0 0
      %360 = vmatprep.subr.bf16.mxu0 0
      %361 = vmatpush1.bf16.msra.mxu0 0
      %362 = vmatprep.subr.bf16.mxu0 0
      %363 = vmatpush1.bf16.msra.mxu0 %v346
      %364 = vmatprep.subr.bf16.mxu0 0
      %365 = vmatpush2.bf16.msra.mxu0 0
      %366 = vmatprep.subr.bf16.mxu0 0
      %367 = vmatpush2.bf16.msra.mxu0 0
      %368 = vmatprep.subr.bf16.mxu0 0
      %369 = vmatpush2.bf16.msra.mxu0 0
      %370 = vmatprep.subr.bf16.mxu0 0
      %371 = vmatpush2.bf16.msra.mxu0 0
      %372 = vmatprep.subr.bf16.mxu0 0
      %373 = vmatpush2.bf16.msra.mxu0 0
      %374 = vmatprep.subr.bf16.mxu0 0
      %375 = vmatpush2.bf16.msra.mxu0 0
      %376 = vmatprep.subr.bf16.mxu0 0
      %377 = vmatpush2.bf16.msra.mxu0 0
      %378 = vmatprep.subr.bf16.mxu0 0
      %379 = vmatpush2.bf16.msra.mxu0 0
      %380 = vmatprep.mubr.bf16.mxu0 0
      %381 = vmatmul.mubr.bf16.gmra.mxu0 %v342
      %v382 = vpop.f32.mrf.mxu0
      %v383 = vadd.f32 0.0, %v382
      %v384 = vpop.f32.mrf.mxu0
      %v385 = vpop.f32.mrf.mxu0
      %v386 = vadd.f32 0.0, %v385
      %v387 = vpop.f32.mrf.mxu0
      %388 = vdwg.mxu0
      %v389 = vadd.f32 %v332, %v383
      %v390 = vadd.f32 %v333, %v386
      %s391 = scalar_lea.vmem %s303, 2
      %v392 = vld [vmem:[%s391] sm:$0x3]
      %v394 = vunpack.c.l.b16 %v331
      %v395 = vpack.c.b16 %v394, %v394
      %vm396 = vsmask.f32 7424
      %v397 = vshrl.u32 %v339, 16
      %v399 = vshll.u32 %v339, 16
      %v401 = vrot.slane %v399, 1
      %v402 = vor.u32 %v397, %v401
      %v404 = vshll.u32 %v395, 16
      %v406 = vrot.slane %v404, 1
      %v407 = vsel %vm396, %v402, %v406
      %v409 = vsel %vm340, %v407, 0
      %v412 = vsel %vm344, %v392, 0
      %414 = vmatprep.subr.bf16.mxu0 0
      %415 = vmatpush1.bf16.msra.mxu0 0
      %416 = vmatprep.subr.bf16.mxu0 0
      %417 = vmatpush1.bf16.msra.mxu0 0
      %418 = vmatprep.subr.bf16.mxu0 0
      %419 = vmatpush1.bf16.msra.mxu0 0
      %420 = vmatprep.subr.bf16.mxu0 0
      %421 = vmatpush1.bf16.msra.mxu0 0
      %422 = vmatprep.subr.bf16.mxu0 0
      %423 = vmatpush1.bf16.msra.mxu0 0
      %424 = vmatprep.subr.bf16.mxu0 0
      %425 = vmatpush1.bf16.msra.mxu0 0
      %426 = vmatprep.subr.bf16.mxu0 0
      %427 = vmatpush1.bf16.msra.mxu0 0
      %428 = vmatprep.subr.bf16.mxu0 0
      %429 = vmatpush1.bf16.msra.mxu0 %v412
      %430 = vmatprep.subr.bf16.mxu0 0
      %431 = vmatpush2.bf16.msra.mxu0 0
      %432 = vmatprep.subr.bf16.mxu0 0
      %433 = vmatpush2.bf16.msra.mxu0 0
      %434 = vmatprep.subr.bf16.mxu0 0
      %435 = vmatpush2.bf16.msra.mxu0 0
      %436 = vmatprep.subr.bf16.mxu0 0
      %437 = vmatpush2.bf16.msra.mxu0 0
      %438 = vmatprep.subr.bf16.mxu0 0
      %439 = vmatpush2.bf16.msra.mxu0 0
      %440 = vmatprep.subr.bf16.mxu0 0
      %441 = vmatpush2.bf16.msra.mxu0 0
      %442 = vmatprep.subr.bf16.mxu0 0
      %443 = vmatpush2.bf16.msra.mxu0 0
      %444 = vmatprep.subr.bf16.mxu0 0
      %445 = vmatpush2.bf16.msra.mxu0 0
      %446 = vmatprep.mubr.bf16.mxu0 0
      %447 = vmatmul.mubr.bf16.gmra.mxu0 %v409
      %v448 = vpop.f32.mrf.mxu0
      %v449 = vadd.f32 0.0, %v448
      %v450 = vpop.f32.mrf.mxu0
      %v451 = vpop.f32.mrf.mxu0
      %v452 = vadd.f32 0.0, %v451
      %v453 = vpop.f32.mrf.mxu0
      %454 = vdwg.mxu0
      %v455 = vadd.f32 %v389, %v449
      %v456 = vadd.f32 %v390, %v452
      %s457 = scalar_lea.vmem %s303, 4
      %v458 = vld [vmem:[%s457] sm:$0x3]
      %vm459 = vcmask 1046528
      %v460 = vrot.slane %v339, 1
      %v461 = vrot.slane %v395, 1
      %v462 = vsel %vm459, %v460, %v461
      %v464 = vsel %vm340, %v462, 0
      %v467 = vsel %vm344, %v458, 0
      %469 = vmatprep.subr.bf16.mxu0 0
      %470 = vmatpush1.bf16.msra.mxu0 0
      %471 = vmatprep.subr.bf16.mxu0 0
      %472 = vmatpush1.bf16.msra.mxu0 0
      %473 = vmatprep.subr.bf16.mxu0 0
      %474 = vmatpush1.bf16.msra.mxu0 0
      %475 = vmatprep.subr.bf16.mxu0 0
      %476 = vmatpush1.bf16.msra.mxu0 0
      %477 = vmatprep.subr.bf16.mxu0 0
      %478 = vmatpush1.bf16.msra.mxu0 0
      %479 = vmatprep.subr.bf16.mxu0 0
      %480 = vmatpush1.bf16.msra.mxu0 0
      %481 = vmatprep.subr.bf16.mxu0 0
      %482 = vmatpush1.bf16.msra.mxu0 0
      %483 = vmatprep.subr.bf16.mxu0 0
      %484 = vmatpush1.bf16.msra.mxu0 %v467
      %485 = vmatprep.subr.bf16.mxu0 0
      %486 = vmatpush2.bf16.msra.mxu0 0
      %487 = vmatprep.subr.bf16.mxu0 0
      %488 = vmatpush2.bf16.msra.mxu0 0
      %489 = vmatprep.subr.bf16.mxu0 0
      %490 = vmatpush2.bf16.msra.mxu0 0
      %491 = vmatprep.subr.bf16.mxu0 0
      %492 = vmatpush2.bf16.msra.mxu0 0
      %493 = vmatprep.subr.bf16.mxu0 0
      %494 = vmatpush2.bf16.msra.mxu0 0
      %495 = vmatprep.subr.bf16.mxu0 0
      %496 = vmatpush2.bf16.msra.mxu0 0
      %497 = vmatprep.subr.bf16.mxu0 0
      %498 = vmatpush2.bf16.msra.mxu0 0
      %499 = vmatprep.subr.bf16.mxu0 0
      %500 = vmatpush2.bf16.msra.mxu0 0
      %501 = vmatprep.mubr.bf16.mxu0 0
      %502 = vmatmul.mubr.bf16.gmra.mxu0 %v464
      %v503 = vpop.f32.mrf.mxu0
      %v504 = vadd.f32 0.0, %v503
      %v505 = vpop.f32.mrf.mxu0
      %v506 = vpop.f32.mrf.mxu0
      %v507 = vadd.f32 0.0, %v506
      %v508 = vpop.f32.mrf.mxu0
      %509 = vdwg.mxu0
      %v510 = vadd.f32 %v455, %v504
      %v511 = vadd.f32 %v456, %v507
      %512 = vst [vmem:[#allocation2] sm:$0xff] %v510
      %513 = vst [vmem:[#allocation2 + $0x8] sm:$0xff] %v511
      %p514 = scmp.eq.s32.totalorder %s24, 2
      // Predicated region
      $region41: #{inception_a_forward.13} parent=35 // pred_check
        %p515 = pneg %p514
      $region42: #{inception_a_forward.13} parent=35 // pred_check_branch
        %517 = sbr.rel (%p515) target = $region44
      $region43: #{inception_a_forward.13} parent=35 // pred_region
        %v518 = vld [vmem:[#allocation2] sm:$0xff]
        %v519 = vld [vmem:[#allocation2 + $0x8] sm:$0xff]
        %v520 = vld [vmem:[%s306] sm:$0x1]
        %v522 = vlaneseq
        %v523 = vshrl.u32 %v522, 7
        %v524 = vsub.s32 0, %v523
        %v525 = vrot.slane %v520, %v524
        %v527 = vmul.f32 %v518, %v525
        %v528 = vmul.f32 %v519, %v525
        %v529 = vld [vmem:[%s309] sm:$0x1]
        %v531 = vlaneseq
        %v532 = vshrl.u32 %v531, 7
        %v533 = vsub.s32 0, %v532
        %v534 = vrot.slane %v529, %v533
        %v536 = vadd.f32 %v527, %v534
        %v537 = vadd.f32 %v528, %v534
        %v538 = vmax.f32 %v536, 0.0
        %v539 = vmax.f32 %v537, 0.0
        %540 = vst [vmem:[%s321] sm:$0xff] %v538
        %541 = vst [vmem:[%s321 + $0x8] sm:$0xff] %v539
      $region44: #{inception_a_forward.13} parent=35 // pred_fallthru
        _
      %p542 = scmp.lt.s32.totalorder %s21, 1
      %s543 = scalar_select %p542, %s21, 1
      %p544 = scmp.lt.s32.totalorder %s22, 15
      %s545 = scalar_select %p544, %s22, 15
      %p546 = scmp.lt.s32.totalorder %s23, 0
      %s547 = scalar_select %p546, %s23, 0
      %s548 = smul.addr %s545, 2
      %s549 = sadd.s32 %s547, %s548
      %s550 = smul.addr %s543, 32
      %s551 = sadd.s32 %s549, %s550
      %s552 = smul.addr %s551, 8
      %s553 = scalar_lea.vmem %s4, %s552
      // Predicated region
      $region45: #{inception_a_forward.13} parent=35 // pred_check
        %p554 = pneg %p173
      $region46: #{inception_a_forward.13} parent=35 // pred_check_branch
        %556 = sbr.rel (%p554) target = $region48
      $region47: #{inception_a_forward.13} parent=35 // pred_region
        _
      $region48: #{inception_a_forward.13} parent=35 // pred_fallthru
        _
    $region36: #{inception_a_forward.13} parent=5 // pred_fallthru
      _
    %p557 = scmp.le.s32.totalorder 2, %s10
    // Predicated region
    $region49: #{inception_a_forward.13} parent=5 // pred_check
      %p558 = pneg %p557
    $region50: #{inception_a_forward.13} parent=5 // pred_check_branch
      %560 = sbr.rel (%p558) target = $region52
    $region51: #{inception_a_forward.13} parent=5 // pred_region
      %s561 = ssub.s32 %s10, 2
      // Predicated region
      $region53: #{inception_a_forward.13} parent=51 // pred_check
        %p562 = pneg %p179
      $region54: #{inception_a_forward.13} parent=51 // pred_check_branch
        %564 = sbr.rel (%p562) target = $region56
      $region55: #{inception_a_forward.13} parent=51 // pred_region
        %p565 = scmp.lt.s32.totalorder %s25, 1
        %s566 = scalar_select %p565, %s25, 1
        %p567 = scmp.lt.s32.totalorder %s26, 15
        %s568 = scalar_select %p567, %s26, 15
        %p569 = scmp.lt.s32.totalorder %s27, 0
        %s570 = scalar_select %p569, %s27, 0
        %s571 = smul.addr %s568, 2
        %s572 = sadd.s32 %s570, %s571
        %s573 = smul.addr %s566, 32
        %s574 = sadd.s32 %s572, %s573
        %s575 = smul.addr %s574, 8
        %s576 = scalar_lea.vmem %s4, %s575
      $region56: #{inception_a_forward.13} parent=51 // pred_fallthru
        _
    $region52: #{inception_a_forward.13} parent=5 // pred_fallthru
      _
  $region6: #{inception_a_forward.13} parent=0 // loop_footer
    %s14 = sadd.s32 1, %s10
  $region7: #{inception_a_forward.13} parent=0 // loop_footer_branch
    %9 = sbr.rel target = $region3
  $region8: #{inception_a_forward.13} parent=0 // loop_exit
    _

</llo_original>
